<compile_context>
chip_gen: v5e
topology: v5e:2x2
jax: 0.10.0
libtpu: 0.0.40
codegen_flags: <defaults>
</compile_context>

<pallas_src>
import numpy as np

import jax
import jax.numpy as jnp
from jax import lax
from jax.experimental import pallas as pl
from jax.experimental.pallas import tpu as pltpu


def _round_up(x, m):
    return ((x + m - 1) // m) * m


# ----------------------------------------------------------------------------
# Fused kernel (one grid step == one image, everything VMEM-resident)
# ----------------------------------------------------------------------------
def _make_kernel(r1p, p1w, l2, cin2=32):
    """Build the fused kernel closed over the static geometry.

    r1p : padded number of pool1 positions per image (rows of each patch slot)
    p1w : pool1 output width (flat index of pool1 output = ph * p1w + pw)
    l2  : length of the conv2 flat-trick accumulator
    cin2: conv2 input channels (= conv1 output channels = 32)
    """

    def kernel(p1_ref, w1_ref, b1_ref, w2_ref, b2_ref, msk_ref,
               wl1_ref, bl1_ref, wl2_ref, bl2_ref, o_ref, z1_scr):
        i = pl.program_id(0)

        # ---- conv1 (3x3) + bias with the 2x2/2 max-pool fused into the epilogue.
        # p1 slot s holds the im2col patches of the conv1 outputs that land in
        # pool-window slot s, one row per pooled position (flat = ph*p1w + pw).
        w1 = w1_ref[...]                       # (27, 32)  bf16
        b1 = b1_ref[...]                       # (1, 32)   f32
        z1 = None
        for s in range(4):
            pat = p1_ref[s * r1p:(s + 1) * r1p, :]          # (r1p, 27) bf16
            y = jnp.dot(pat, w1, preferred_element_type=jnp.float32) + b1
            z1 = y if z1 is None else jnp.maximum(z1, y)
        z1_scr[...] = z1                       # pool1 output, (r1p, 32) f32, VMEM

        # ---- conv2 (5x5) as 25 shifted matmuls over the VMEM-resident z1.
        # Flat-index trick: tap (kh,kw) contributes z1 rows [kh*p1w+kw, +l2) to
        # conv2-output flat rows h*p1w + w; the wrap-around columns are masked
        # out below, so no im2col matrix is ever materialized.
        acc = None
        for kh in range(5):
            for kw in range(5):
                k = kh * 5 + kw
                start = kh * p1w + kw
                lhs = z1_scr[start:start + l2, :].astype(jnp.bfloat16)  # (l2, 32)
                rhs = w2_ref[k * cin2:(k + 1) * cin2, :]                # (32, 64)
                t = jnp.dot(lhs, rhs, preferred_element_type=jnp.float32)
                acc = t if acc is None else acc + t
        acc = acc + b2_ref[...]                # (l2, 64) f32

        # ---- maxpool2 (2x2/2) + AdaptiveMaxPool2d((1,1)) fused into one masked
        # global max over the conv2 rows covered by the pool windows.
        feats = jnp.max(acc + msk_ref[...], axis=0, keepdims=True)      # (1, 64)

        # ---- Linear(64,32) + ReLU + Linear(32,1) + Sigmoid (f32 epilogue).
        h = jnp.dot(feats, wl1_ref[...], preferred_element_type=jnp.float32)
        h = jnp.maximum(h + bl1_ref[...], 0.0)                          # (1, 32)
        z = jnp.sum(h * wl2_ref[...], axis=1, keepdims=True) + bl2_ref[...]
        o_ref[pl.ds(i, 1), :] = 1.0 / (1.0 + jnp.exp(-z))               # (1, 1)

    return kernel


# ----------------------------------------------------------------------------
# Forward pass: wrapper does only layout plumbing on the raw input + one
# pallas_call for the whole network.
# ----------------------------------------------------------------------------
def net_forward(x_nchw, params):
    n, cin, hh, ww = x_nchw.shape
    assert cin == 3
    h1, w1o = hh - 2, ww - 2                  # conv1 output spatial
    p1h, p1w = h1 // 2, w1o // 2              # pool1 output spatial
    r1 = p1h * p1w                            # pooled positions per image
    r1p = _round_up(r1, 16)                   # bf16 sublane-aligned slot blocks
    h2, w2o = p1h - 4, p1w - 4                # conv2 output spatial
    l2 = (h2 - 1) * p1w + w2o                 # conv2 flat-trick accumulator rows
    p2h, p2w = h2 // 2, w2o // 2              # pool2 output spatial

    x = jnp.transpose(x_nchw, (0, 2, 3, 1)).astype(jnp.float32)   # NHWC

    # conv1 im2col patches at every conv1 output position: (N, h1, w1o, 27),
    # column order (kh, kw, ci) with ci fastest (matches w_conv1_m).
    cols = []
    for kh in range(3):
        for kw in range(3):
            cols.append(x[:, kh:kh + h1, kw:kw + w1o, :])
    pat = jnp.stack(cols, axis=3).reshape(n, h1, w1o, 27)

    # Regroup by 2x2 pool-window slot, flatten pooled positions, pad to r1p rows.
    slots = []
    for dh in range(2):
        for dw in range(2):
            sl = pat[:, dh:dh + 2 * p1h:2, dw:dw + 2 * p1w:2, :]   # (N,p1h,p1w,27)
            sl = sl.reshape(n, r1, 27)
            sl = jnp.pad(sl, ((0, 0), (0, r1p - r1), (0, 0)))
            slots.append(sl)
    p1 = jnp.concatenate(slots, axis=1).astype(jnp.bfloat16)       # (N, 4*r1p, 27)

    # Additive mask selecting the conv2-output rows covered by the 2x2 pool
    # windows (implements maxpool2 + adaptive max pool as one masked max).
    rr = np.arange(l2)
    valid = ((rr // p1w) <= 2 * p2h - 1) & ((rr % p1w) <= 2 * p2w - 1)
    msk = jnp.asarray(np.where(valid, 0.0, -1e30), dtype=np.float32).reshape(l2, 1)

    def _full(shape):
        return pl.BlockSpec(shape, lambda *_: (0,) * len(shape))

    kernel = _make_kernel(r1p, p1w, l2)
    out = pl.pallas_call(
        kernel,
        out_shape=jax.ShapeDtypeStruct((n, 1), jnp.float32),
        grid=(n,),
        in_specs=[
            pl.BlockSpec((None, 4 * r1p, 27), lambda i: (i, 0, 0)),  # patches
            _full((27, 32)),     # conv1 weights (bf16)
            _full((1, 32)),      # conv1 bias
            _full((800, 64)),    # conv2 weights (bf16), 25 taps x 32 rows
            _full((1, 64)),      # conv2 bias
            _full((l2, 1)),      # pool-coverage mask
            _full((64, 32)),     # linear1 weight (in, out)
            _full((1, 32)),      # linear1 bias
            _full((1, 32)),      # linear2 weight (PyTorch layout)
            _full((1, 1)),       # linear2 bias
        ],
        out_specs=pl.BlockSpec((n, 1), lambda i: (0, 0)),
        scratch_shapes=[pltpu.VMEM((r1p, 32), jnp.float32)],
        compiler_params=pltpu.CompilerParams(
            dimension_semantics=("arbitrary",)),
    )(p1,
      params["w_conv1_m"], params["b_conv1"].reshape(1, 32),
      params["w_conv2_m"], params["b_conv2"].reshape(1, 64),
      msk,
      params["w_lin1_m"], params["b_lin1"].reshape(1, 32),
      params["w_lin2"], params["b_lin2"].reshape(1, 1))
    return out


# ----------------------------------------------------------------------------
# Parameters (deterministic, PyTorch-default-style uniform init)
# ----------------------------------------------------------------------------
def init_params(seed=42):
    ks = jax.random.split(jax.random.PRNGKey(seed), 8)

    def uinit(k, shape, fan_in):
        bound = 1.0 / np.sqrt(fan_in)
        return jax.random.uniform(k, shape, jnp.float32, -bound, bound)

    p = {
        # PyTorch layouts: conv (Cout, Cin, KH, KW), linear (out, in)
        "w_conv1": uinit(ks[0], (32, 3, 3, 3), 27),
        "b_conv1": uinit(ks[1], (32,), 27),
        "w_conv2": uinit(ks[2], (64, 32, 5, 5), 800),
        "b_conv2": uinit(ks[3], (64,), 800),
        "w_lin1": uinit(ks[4], (32, 64), 64),
        "b_lin1": uinit(ks[5], (32,), 64),
        "w_lin2": uinit(ks[6], (1, 32), 32),
        "b_lin2": uinit(ks[7], (1,), 32),
    }
    # Kernel-side layouts: conv -> (KH*KW*Cin, Cout) bf16, linear1 -> (in, out)
    p["w_conv1_m"] = (jnp.transpose(p["w_conv1"], (2, 3, 1, 0))
                      .reshape(27, 32).astype(jnp.bfloat16))
    p["w_conv2_m"] = (jnp.transpose(p["w_conv2"], (2, 3, 1, 0))
                      .reshape(800, 64).astype(jnp.bfloat16))
    p["w_lin1_m"] = p["w_lin1"].T  # (64, 32) f32
    return p


# ----------------------------------------------------------------------------
# Pure-JAX reference (mirrors the bf16 matmul inputs / f32 accumulation)
# ----------------------------------------------------------------------------
def net_reference(x_nchw, p):
    dn = ("NCHW", "OIHW", "NCHW")
    y = lax.conv_general_dilated(
        x_nchw.astype(jnp.bfloat16), p["w_conv1"].astype(jnp.bfloat16),
        (1, 1), "VALID", dimension_numbers=dn,
        preferred_element_type=jnp.float32)
    y = y + p["b_conv1"][None, :, None, None]
    y = lax.reduce_window(y, -jnp.inf, lax.max, (1, 1, 2, 2), (1, 1, 2, 2), "VALID")
    y = lax.conv_general_dilated(
        y.astype(jnp.bfloat16), p["w_conv2"].astype(jnp.bfloat16),
        (1, 1), "VALID", dimension_numbers=dn,
        preferred_element_type=jnp.float32)
    y = y + p["b_conv2"][None, :, None, None]
    y = lax.reduce_window(y, -jnp.inf, lax.max, (1, 1, 2, 2), (1, 1, 2, 2), "VALID")
    f = jnp.max(y, axis=(2, 3))                    # adaptive max pool + flatten
    h = jnp.maximum(f @ p["w_lin1"].T + p["b_lin1"], 0.0)
    z = h @ p["w_lin2"].T + p["b_lin2"]
    return jax.nn.sigmoid(z)


if __name__ == "__main__":
    params = init_params(seed=42)
    # PyTorch-convention NCHW input: batch=2, channels=3, spatial=32x32
    x = jax.random.normal(jax.random.PRNGKey(0), (2, 3, 32, 32), dtype=jnp.float32)

    fwd = jax.jit(net_forward)
    out = jax.block_until_ready(fwd(x, params))

    ref = net_reference(x, params)
    assert out.shape == (2, 1), out.shape
    assert np.allclose(np.asarray(out), np.asarray(ref), atol=5e-3, rtol=5e-3), (
        np.asarray(out), np.asarray(ref))

    print("KERNEL_OK")
</pallas_src>

<mosaic_0001>
module attributes {stable_mosaic.version = 11 : i64} {
  func.func @kernel(%arg0: i32, %arg1: memref<1x960x27xbf16, #tpu.memory_space<vmem>>, %arg2: memref<27x32xbf16, #tpu.memory_space<vmem>>, %arg3: memref<1x32xf32, #tpu.memory_space<vmem>>, %arg4: memref<800x64xbf16, #tpu.memory_space<vmem>>, %arg5: memref<1x64xf32, #tpu.memory_space<vmem>>, %arg6: memref<161x1xf32, #tpu.memory_space<vmem>>, %arg7: memref<64x32xf32, #tpu.memory_space<vmem>>, %arg8: memref<1x32xf32, #tpu.memory_space<vmem>>, %arg9: memref<1x32xf32, #tpu.memory_space<vmem>>, %arg10: memref<1x1xf32, #tpu.memory_space<vmem>>, %arg11: memref<2x1xf32, #tpu.memory_space<vmem>>, %arg12: memref<240x32xf32, #tpu.memory_space<vmem>>) attributes {dimension_semantics = [#tpu.dimension_semantics<arbitrary>], iteration_bounds = array<i64: 2>, scalar_prefetch = 0 : i64, scratch_operands = 1 : i64, tpu.core_type = #tpu.core_type<tc>, window_params = [{transform_indices = @transform_0, window_bounds = array<i64: 1, 960, 27>}, {pipeline_mode = #tpu.pipeline_mode<synchronous>, transform_indices = @transform_1, window_bounds = array<i64: 27, 32>}, {pipeline_mode = #tpu.pipeline_mode<synchronous>, transform_indices = @transform_2, window_bounds = array<i64: 1, 32>}, {pipeline_mode = #tpu.pipeline_mode<synchronous>, transform_indices = @transform_3, window_bounds = array<i64: 800, 64>}, {pipeline_mode = #tpu.pipeline_mode<synchronous>, transform_indices = @transform_4, window_bounds = array<i64: 1, 64>}, {pipeline_mode = #tpu.pipeline_mode<synchronous>, transform_indices = @transform_5, window_bounds = array<i64: 161, 1>}, {pipeline_mode = #tpu.pipeline_mode<synchronous>, transform_indices = @transform_6, window_bounds = array<i64: 64, 32>}, {pipeline_mode = #tpu.pipeline_mode<synchronous>, transform_indices = @transform_7, window_bounds = array<i64: 1, 32>}, {pipeline_mode = #tpu.pipeline_mode<synchronous>, transform_indices = @transform_8, window_bounds = array<i64: 1, 32>}, {pipeline_mode = #tpu.pipeline_mode<synchronous>, transform_indices = @transform_9, window_bounds = array<i64: 1, 1>}, {pipeline_mode = #tpu.pipeline_mode<synchronous>, transform_indices = @transform_10, window_bounds = array<i64: 2, 1>}]} {
    %c0 = arith.constant 0 : index
    %c0_0 = arith.constant 0 : index
    %0 = vector.load %arg2[%c0, %c0_0] : memref<27x32xbf16, #tpu.memory_space<vmem>>, vector<27x32xbf16>
    %c0_1 = arith.constant 0 : index
    %c0_2 = arith.constant 0 : index
    %1 = vector.load %arg3[%c0_1, %c0_2] : memref<1x32xf32, #tpu.memory_space<vmem>>, vector<1x32xf32>
    %c0_3 = arith.constant 0 : index
    %c0_4 = arith.constant 0 : index
    %c0_5 = arith.constant 0 : index
    %2 = vector.load %arg1[%c0_3, %c0_4, %c0_5] : memref<1x960x27xbf16, #tpu.memory_space<vmem>>, vector<1x240x27xbf16>
    %3 = vector.shape_cast %2 : vector<1x240x27xbf16> to vector<240x27xbf16>
    %cst = arith.constant dense<0.000000e+00> : vector<240x32xf32>
    %4 = tpu.matmul %3, %0, %cst {dimension_numbers = #tpu.dot_dimension_numbers<[1], [0], [0], [1], [0, 0, 1, 1], [], []>} : vector<240x27xbf16>, vector<27x32xbf16>, vector<240x32xf32> -> vector<240x32xf32>
    %5 = vector.broadcast %1 : vector<1x32xf32> to vector<240x32xf32>
    %6 = arith.addf %4, %5 : vector<240x32xf32>
    %c0_6 = arith.constant 0 : index
    %c240 = arith.constant 240 : index
    %c0_7 = arith.constant 0 : index
    %7 = vector.load %arg1[%c0_6, %c240, %c0_7] : memref<1x960x27xbf16, #tpu.memory_space<vmem>>, vector<1x240x27xbf16>
    %8 = vector.shape_cast %7 : vector<1x240x27xbf16> to vector<240x27xbf16>
    %cst_8 = arith.constant dense<0.000000e+00> : vector<240x32xf32>
    %9 = tpu.matmul %8, %0, %cst_8 {dimension_numbers = #tpu.dot_dimension_numbers<[1], [0], [0], [1], [0, 0, 1, 1], [], []>} : vector<240x27xbf16>, vector<27x32xbf16>, vector<240x32xf32> -> vector<240x32xf32>
    %10 = vector.broadcast %1 : vector<1x32xf32> to vector<240x32xf32>
    %11 = arith.addf %9, %10 : vector<240x32xf32>
    %12 = arith.maximumf %6, %11 : vector<240x32xf32>
    %c0_9 = arith.constant 0 : index
    %c480 = arith.constant 480 : index
    %c0_10 = arith.constant 0 : index
    %13 = vector.load %arg1[%c0_9, %c480, %c0_10] : memref<1x960x27xbf16, #tpu.memory_space<vmem>>, vector<1x240x27xbf16>
    %14 = vector.shape_cast %13 : vector<1x240x27xbf16> to vector<240x27xbf16>
    %cst_11 = arith.constant dense<0.000000e+00> : vector<240x32xf32>
    %15 = tpu.matmul %14, %0, %cst_11 {dimension_numbers = #tpu.dot_dimension_numbers<[1], [0], [0], [1], [0, 0, 1, 1], [], []>} : vector<240x27xbf16>, vector<27x32xbf16>, vector<240x32xf32> -> vector<240x32xf32>
    %16 = vector.broadcast %1 : vector<1x32xf32> to vector<240x32xf32>
    %17 = arith.addf %15, %16 : vector<240x32xf32>
    %18 = arith.maximumf %12, %17 : vector<240x32xf32>
    %c0_12 = arith.constant 0 : index
    %c720 = arith.constant 720 : index
    %c0_13 = arith.constant 0 : index
    %19 = vector.load %arg1[%c0_12, %c720, %c0_13] : memref<1x960x27xbf16, #tpu.memory_space<vmem>>, vector<1x240x27xbf16>
    %20 = vector.shape_cast %19 : vector<1x240x27xbf16> to vector<240x27xbf16>
    %cst_14 = arith.constant dense<0.000000e+00> : vector<240x32xf32>
    %21 = tpu.matmul %20, %0, %cst_14 {dimension_numbers = #tpu.dot_dimension_numbers<[1], [0], [0], [1], [0, 0, 1, 1], [], []>} : vector<240x27xbf16>, vector<27x32xbf16>, vector<240x32xf32> -> vector<240x32xf32>
    %22 = vector.broadcast %1 : vector<1x32xf32> to vector<240x32xf32>
    %23 = arith.addf %21, %22 : vector<240x32xf32>
    %24 = arith.maximumf %18, %23 : vector<240x32xf32>
    %c0_15 = arith.constant 0 : index
    %c0_16 = arith.constant 0 : index
    %25 = vector.load %arg12[%c0_15, %c0_16] : memref<240x32xf32, #tpu.memory_space<vmem>>, vector<240x32xf32>
    tpu.vector_store %arg12[%c0_15, %c0_16], %24 {strides = array<i32>} : memref<240x32xf32, #tpu.memory_space<vmem>>, vector<240x32xf32>,
    %c0_17 = arith.constant 0 : index
    %c0_18 = arith.constant 0 : index
    %26 = vector.load %arg12[%c0_17, %c0_18] : memref<240x32xf32, #tpu.memory_space<vmem>>, vector<161x32xf32>
    %27 = arith.truncf %26 : vector<161x32xf32> to vector<161x32xbf16>
    %c0_19 = arith.constant 0 : index
    %c0_20 = arith.constant 0 : index
    %28 = vector.load %arg4[%c0_19, %c0_20] : memref<800x64xbf16, #tpu.memory_space<vmem>>, vector<32x64xbf16>
    %cst_21 = arith.constant dense<0.000000e+00> : vector<161x64xf32>
    %29 = tpu.matmul %27, %28, %cst_21 {dimension_numbers = #tpu.dot_dimension_numbers<[1], [0], [0], [1], [0, 0, 1, 1], [], []>} : vector<161x32xbf16>, vector<32x64xbf16>, vector<161x64xf32> -> vector<161x64xf32>
    %c1 = arith.constant 1 : index
    %c0_22 = arith.constant 0 : index
    %30 = vector.load %arg12[%c1, %c0_22] : memref<240x32xf32, #tpu.memory_space<vmem>>, vector<161x32xf32>
    %31 = arith.truncf %30 : vector<161x32xf32> to vector<161x32xbf16>
    %c32 = arith.constant 32 : index
    %c0_23 = arith.constant 0 : index
    %32 = vector.load %arg4[%c32, %c0_23] : memref<800x64xbf16, #tpu.memory_space<vmem>>, vector<32x64xbf16>
    %cst_24 = arith.constant dense<0.000000e+00> : vector<161x64xf32>
    %33 = tpu.matmul %31, %32, %cst_24 {dimension_numbers = #tpu.dot_dimension_numbers<[1], [0], [0], [1], [0, 0, 1, 1], [], []>} : vector<161x32xbf16>, vector<32x64xbf16>, vector<161x64xf32> -> vector<161x64xf32>
    %34 = arith.addf %29, %33 : vector<161x64xf32>
    %c2 = arith.constant 2 : index
    %c0_25 = arith.constant 0 : index
    %35 = vector.load %arg12[%c2, %c0_25] : memref<240x32xf32, #tpu.memory_space<vmem>>, vector<161x32xf32>
    %36 = arith.truncf %35 : vector<161x32xf32> to vector<161x32xbf16>
    %c64 = arith.constant 64 : index
    %c0_26 = arith.constant 0 : index
    %37 = vector.load %arg4[%c64, %c0_26] : memref<800x64xbf16, #tpu.memory_space<vmem>>, vector<32x64xbf16>
    %cst_27 = arith.constant dense<0.000000e+00> : vector<161x64xf32>
    %38 = tpu.matmul %36, %37, %cst_27 {dimension_numbers = #tpu.dot_dimension_numbers<[1], [0], [0], [1], [0, 0, 1, 1], [], []>} : vector<161x32xbf16>, vector<32x64xbf16>, vector<161x64xf32> -> vector<161x64xf32>
    %39 = arith.addf %34, %38 : vector<161x64xf32>
    %c3 = arith.constant 3 : index
    %c0_28 = arith.constant 0 : index
    %40 = vector.load %arg12[%c3, %c0_28] : memref<240x32xf32, #tpu.memory_space<vmem>>, vector<161x32xf32>
    %41 = arith.truncf %40 : vector<161x32xf32> to vector<161x32xbf16>
    %c96 = arith.constant 96 : index
    %c0_29 = arith.constant 0 : index
    %42 = vector.load %arg4[%c96, %c0_29] : memref<800x64xbf16, #tpu.memory_space<vmem>>, vector<32x64xbf16>
    %cst_30 = arith.constant dense<0.000000e+00> : vector<161x64xf32>
    %43 = tpu.matmul %41, %42, %cst_30 {dimension_numbers = #tpu.dot_dimension_numbers<[1], [0], [0], [1], [0, 0, 1, 1], [], []>} : vector<161x32xbf16>, vector<32x64xbf16>, vector<161x64xf32> -> vector<161x64xf32>
    %44 = arith.addf %39, %43 : vector<161x64xf32>
    %c4 = arith.constant 4 : index
    %c0_31 = arith.constant 0 : index
    %45 = vector.load %arg12[%c4, %c0_31] : memref<240x32xf32, #tpu.memory_space<vmem>>, vector<161x32xf32>
    %46 = arith.truncf %45 : vector<161x32xf32> to vector<161x32xbf16>
    %c128 = arith.constant 128 : index
    %c0_32 = arith.constant 0 : index
    %47 = vector.load %arg4[%c128, %c0_32] : memref<800x64xbf16, #tpu.memory_space<vmem>>, vector<32x64xbf16>
    %cst_33 = arith.constant dense<0.000000e+00> : vector<161x64xf32>
    %48 = tpu.matmul %46, %47, %cst_33 {dimension_numbers = #tpu.dot_dimension_numbers<[1], [0], [0], [1], [0, 0, 1, 1], [], []>} : vector<161x32xbf16>, vector<32x64xbf16>, vector<161x64xf32> -> vector<161x64xf32>
    %49 = arith.addf %44, %48 : vector<161x64xf32>
    %c15 = arith.constant 15 : index
    %c0_34 = arith.constant 0 : index
    %50 = vector.load %arg12[%c15, %c0_34] : memref<240x32xf32, #tpu.memory_space<vmem>>, vector<161x32xf32>
    %51 = arith.truncf %50 : vector<161x32xf32> to vector<161x32xbf16>
    %c160 = arith.constant 160 : index
    %c0_35 = arith.constant 0 : index
    %52 = vector.load %arg4[%c160, %c0_35] : memref<800x64xbf16, #tpu.memory_space<vmem>>, vector<32x64xbf16>
    %cst_36 = arith.constant dense<0.000000e+00> : vector<161x64xf32>
    %53 = tpu.matmul %51, %52, %cst_36 {dimension_numbers = #tpu.dot_dimension_numbers<[1], [0], [0], [1], [0, 0, 1, 1], [], []>} : vector<161x32xbf16>, vector<32x64xbf16>, vector<161x64xf32> -> vector<161x64xf32>
    %54 = arith.addf %49, %53 : vector<161x64xf32>
    %c16 = arith.constant 16 : index
    %c0_37 = arith.constant 0 : index
    %55 = vector.load %arg12[%c16, %c0_37] : memref<240x32xf32, #tpu.memory_space<vmem>>, vector<161x32xf32>
    %56 = arith.truncf %55 : vector<161x32xf32> to vector<161x32xbf16>
    %c192 = arith.constant 192 : index
    %c0_38 = arith.constant 0 : index
    %57 = vector.load %arg4[%c192, %c0_38] : memref<800x64xbf16, #tpu.memory_space<vmem>>, vector<32x64xbf16>
    %cst_39 = arith.constant dense<0.000000e+00> : vector<161x64xf32>
    %58 = tpu.matmul %56, %57, %cst_39 {dimension_numbers = #tpu.dot_dimension_numbers<[1], [0], [0], [1], [0, 0, 1, 1], [], []>} : vector<161x32xbf16>, vector<32x64xbf16>, vector<161x64xf32> -> vector<161x64xf32>
    %59 = arith.addf %54, %58 : vector<161x64xf32>
    %c17 = arith.constant 17 : index
    %c0_40 = arith.constant 0 : index
    %60 = vector.load %arg12[%c17, %c0_40] : memref<240x32xf32, #tpu.memory_space<vmem>>, vector<161x32xf32>
    %61 = arith.truncf %60 : vector<161x32xf32> to vector<161x32xbf16>
    %c224 = arith.constant 224 : index
    %c0_41 = arith.constant 0 : index
    %62 = vector.load %arg4[%c224, %c0_41] : memref<800x64xbf16, #tpu.memory_space<vmem>>, vector<32x64xbf16>
    %cst_42 = arith.constant dense<0.000000e+00> : vector<161x64xf32>
    %63 = tpu.matmul %61, %62, %cst_42 {dimension_numbers = #tpu.dot_dimension_numbers<[1], [0], [0], [1], [0, 0, 1, 1], [], []>} : vector<161x32xbf16>, vector<32x64xbf16>, vector<161x64xf32> -> vector<161x64xf32>
    %64 = arith.addf %59, %63 : vector<161x64xf32>
    %c18 = arith.constant 18 : index
    %c0_43 = arith.constant 0 : index
    %65 = vector.load %arg12[%c18, %c0_43] : memref<240x32xf32, #tpu.memory_space<vmem>>, vector<161x32xf32>
    %66 = arith.truncf %65 : vector<161x32xf32> to vector<161x32xbf16>
    %c256 = arith.constant 256 : index
    %c0_44 = arith.constant 0 : index
    %67 = vector.load %arg4[%c256, %c0_44] : memref<800x64xbf16, #tpu.memory_space<vmem>>, vector<32x64xbf16>
    %cst_45 = arith.constant dense<0.000000e+00> : vector<161x64xf32>
    %68 = tpu.matmul %66, %67, %cst_45 {dimension_numbers = #tpu.dot_dimension_numbers<[1], [0], [0], [1], [0, 0, 1, 1], [], []>} : vector<161x32xbf16>, vector<32x64xbf16>, vector<161x64xf32> -> vector<161x64xf32>
    %69 = arith.addf %64, %68 : vector<161x64xf32>
    %c19 = arith.constant 19 : index
    %c0_46 = arith.constant 0 : index
    %70 = vector.load %arg12[%c19, %c0_46] : memref<240x32xf32, #tpu.memory_space<vmem>>, vector<161x32xf32>
    %71 = arith.truncf %70 : vector<161x32xf32> to vector<161x32xbf16>
    %c288 = arith.constant 288 : index
    %c0_47 = arith.constant 0 : index
    %72 = vector.load %arg4[%c288, %c0_47] : memref<800x64xbf16, #tpu.memory_space<vmem>>, vector<32x64xbf16>
    %cst_48 = arith.constant dense<0.000000e+00> : vector<161x64xf32>
    %73 = tpu.matmul %71, %72, %cst_48 {dimension_numbers = #tpu.dot_dimension_numbers<[1], [0], [0], [1], [0, 0, 1, 1], [], []>} : vector<161x32xbf16>, vector<32x64xbf16>, vector<161x64xf32> -> vector<161x64xf32>
    %74 = arith.addf %69, %73 : vector<161x64xf32>
    %c30 = arith.constant 30 : index
    %c0_49 = arith.constant 0 : index
    %75 = vector.load %arg12[%c30, %c0_49] : memref<240x32xf32, #tpu.memory_space<vmem>>, vector<161x32xf32>
    %76 = arith.truncf %75 : vector<161x32xf32> to vector<161x32xbf16>
    %c320 = arith.constant 320 : index
    %c0_50 = arith.constant 0 : index
    %77 = vector.load %arg4[%c320, %c0_50] : memref<800x64xbf16, #tpu.memory_space<vmem>>, vector<32x64xbf16>
    %cst_51 = arith.constant dense<0.000000e+00> : vector<161x64xf32>
    %78 = tpu.matmul %76, %77, %cst_51 {dimension_numbers = #tpu.dot_dimension_numbers<[1], [0], [0], [1], [0, 0, 1, 1], [], []>} : vector<161x32xbf16>, vector<32x64xbf16>, vector<161x64xf32> -> vector<161x64xf32>
    %79 = arith.addf %74, %78 : vector<161x64xf32>
    %c31 = arith.constant 31 : index
    %c0_52 = arith.constant 0 : index
    %80 = vector.load %arg12[%c31, %c0_52] : memref<240x32xf32, #tpu.memory_space<vmem>>, vector<161x32xf32>
    %81 = arith.truncf %80 : vector<161x32xf32> to vector<161x32xbf16>
    %c352 = arith.constant 352 : index
    %c0_53 = arith.constant 0 : index
    %82 = vector.load %arg4[%c352, %c0_53] : memref<800x64xbf16, #tpu.memory_space<vmem>>, vector<32x64xbf16>
    %cst_54 = arith.constant dense<0.000000e+00> : vector<161x64xf32>
    %83 = tpu.matmul %81, %82, %cst_54 {dimension_numbers = #tpu.dot_dimension_numbers<[1], [0], [0], [1], [0, 0, 1, 1], [], []>} : vector<161x32xbf16>, vector<32x64xbf16>, vector<161x64xf32> -> vector<161x64xf32>
    %84 = arith.addf %79, %83 : vector<161x64xf32>
    %c32_55 = arith.constant 32 : index
    %c0_56 = arith.constant 0 : index
    %85 = vector.load %arg12[%c32_55, %c0_56] : memref<240x32xf32, #tpu.memory_space<vmem>>, vector<161x32xf32>
    %86 = arith.truncf %85 : vector<161x32xf32> to vector<161x32xbf16>
    %c384 = arith.constant 384 : index
    %c0_57 = arith.constant 0 : index
    %87 = vector.load %arg4[%c384, %c0_57] : memref<800x64xbf16, #tpu.memory_space<vmem>>, vector<32x64xbf16>
    %cst_58 = arith.constant dense<0.000000e+00> : vector<161x64xf32>
    %88 = tpu.matmul %86, %87, %cst_58 {dimension_numbers = #tpu.dot_dimension_numbers<[1], [0], [0], [1], [0, 0, 1, 1], [], []>} : vector<161x32xbf16>, vector<32x64xbf16>, vector<161x64xf32> -> vector<161x64xf32>
    %89 = arith.addf %84, %88 : vector<161x64xf32>
    %c33 = arith.constant 33 : index
    %c0_59 = arith.constant 0 : index
    %90 = vector.load %arg12[%c33, %c0_59] : memref<240x32xf32, #tpu.memory_space<vmem>>, vector<161x32xf32>
    %91 = arith.truncf %90 : vector<161x32xf32> to vector<161x32xbf16>
    %c416 = arith.constant 416 : index
    %c0_60 = arith.constant 0 : index
    %92 = vector.load %arg4[%c416, %c0_60] : memref<800x64xbf16, #tpu.memory_space<vmem>>, vector<32x64xbf16>
    %cst_61 = arith.constant dense<0.000000e+00> : vector<161x64xf32>
    %93 = tpu.matmul %91, %92, %cst_61 {dimension_numbers = #tpu.dot_dimension_numbers<[1], [0], [0], [1], [0, 0, 1, 1], [], []>} : vector<161x32xbf16>, vector<32x64xbf16>, vector<161x64xf32> -> vector<161x64xf32>
    %94 = arith.addf %89, %93 : vector<161x64xf32>
    %c34 = arith.constant 34 : index
    %c0_62 = arith.constant 0 : index
    %95 = vector.load %arg12[%c34, %c0_62] : memref<240x32xf32, #tpu.memory_space<vmem>>, vector<161x32xf32>
    %96 = arith.truncf %95 : vector<161x32xf32> to vector<161x32xbf16>
    %c448 = arith.constant 448 : index
    %c0_63 = arith.constant 0 : index
    %97 = vector.load %arg4[%c448, %c0_63] : memref<800x64xbf16, #tpu.memory_space<vmem>>, vector<32x64xbf16>
    %cst_64 = arith.constant dense<0.000000e+00> : vector<161x64xf32>
    %98 = tpu.matmul %96, %97, %cst_64 {dimension_numbers = #tpu.dot_dimension_numbers<[1], [0], [0], [1], [0, 0, 1, 1], [], []>} : vector<161x32xbf16>, vector<32x64xbf16>, vector<161x64xf32> -> vector<161x64xf32>
    %99 = arith.addf %94, %98 : vector<161x64xf32>
    %c45 = arith.constant 45 : index
    %c0_65 = arith.constant 0 : index
    %100 = vector.load %arg12[%c45, %c0_65] : memref<240x32xf32, #tpu.memory_space<vmem>>, vector<161x32xf32>
    %101 = arith.truncf %100 : vector<161x32xf32> to vector<161x32xbf16>
    %c480_66 = arith.constant 480 : index
    %c0_67 = arith.constant 0 : index
    %102 = vector.load %arg4[%c480_66, %c0_67] : memref<800x64xbf16, #tpu.memory_space<vmem>>, vector<32x64xbf16>
    %cst_68 = arith.constant dense<0.000000e+00> : vector<161x64xf32>
    %103 = tpu.matmul %101, %102, %cst_68 {dimension_numbers = #tpu.dot_dimension_numbers<[1], [0], [0], [1], [0, 0, 1, 1], [], []>} : vector<161x32xbf16>, vector<32x64xbf16>, vector<161x64xf32> -> vector<161x64xf32>
    %104 = arith.addf %99, %103 : vector<161x64xf32>
    %c46 = arith.constant 46 : index
    %c0_69 = arith.constant 0 : index
    %105 = vector.load %arg12[%c46, %c0_69] : memref<240x32xf32, #tpu.memory_space<vmem>>, vector<161x32xf32>
    %106 = arith.truncf %105 : vector<161x32xf32> to vector<161x32xbf16>
    %c512 = arith.constant 512 : index
    %c0_70 = arith.constant 0 : index
    %107 = vector.load %arg4[%c512, %c0_70] : memref<800x64xbf16, #tpu.memory_space<vmem>>, vector<32x64xbf16>
    %cst_71 = arith.constant dense<0.000000e+00> : vector<161x64xf32>
    %108 = tpu.matmul %106, %107, %cst_71 {dimension_numbers = #tpu.dot_dimension_numbers<[1], [0], [0], [1], [0, 0, 1, 1], [], []>} : vector<161x32xbf16>, vector<32x64xbf16>, vector<161x64xf32> -> vector<161x64xf32>
    %109 = arith.addf %104, %108 : vector<161x64xf32>
    %c47 = arith.constant 47 : index
    %c0_72 = arith.constant 0 : index
    %110 = vector.load %arg12[%c47, %c0_72] : memref<240x32xf32, #tpu.memory_space<vmem>>, vector<161x32xf32>
    %111 = arith.truncf %110 : vector<161x32xf32> to vector<161x32xbf16>
    %c544 = arith.constant 544 : index
    %c0_73 = arith.constant 0 : index
    %112 = vector.load %arg4[%c544, %c0_73] : memref<800x64xbf16, #tpu.memory_space<vmem>>, vector<32x64xbf16>
    %cst_74 = arith.constant dense<0.000000e+00> : vector<161x64xf32>
    %113 = tpu.matmul %111, %112, %cst_74 {dimension_numbers = #tpu.dot_dimension_numbers<[1], [0], [0], [1], [0, 0, 1, 1], [], []>} : vector<161x32xbf16>, vector<32x64xbf16>, vector<161x64xf32> -> vector<161x64xf32>
    %114 = arith.addf %109, %113 : vector<161x64xf32>
    %c48 = arith.constant 48 : index
    %c0_75 = arith.constant 0 : index
    %115 = vector.load %arg12[%c48, %c0_75] : memref<240x32xf32, #tpu.memory_space<vmem>>, vector<161x32xf32>
    %116 = arith.truncf %115 : vector<161x32xf32> to vector<161x32xbf16>
    %c576 = arith.constant 576 : index
    %c0_76 = arith.constant 0 : index
    %117 = vector.load %arg4[%c576, %c0_76] : memref<800x64xbf16, #tpu.memory_space<vmem>>, vector<32x64xbf16>
    %cst_77 = arith.constant dense<0.000000e+00> : vector<161x64xf32>
    %118 = tpu.matmul %116, %117, %cst_77 {dimension_numbers = #tpu.dot_dimension_numbers<[1], [0], [0], [1], [0, 0, 1, 1], [], []>} : vector<161x32xbf16>, vector<32x64xbf16>, vector<161x64xf32> -> vector<161x64xf32>
    %119 = arith.addf %114, %118 : vector<161x64xf32>
    %c49 = arith.constant 49 : index
    %c0_78 = arith.constant 0 : index
    %120 = vector.load %arg12[%c49, %c0_78] : memref<240x32xf32, #tpu.memory_space<vmem>>, vector<161x32xf32>
    %121 = arith.truncf %120 : vector<161x32xf32> to vector<161x32xbf16>
    %c608 = arith.constant 608 : index
    %c0_79 = arith.constant 0 : index
    %122 = vector.load %arg4[%c608, %c0_79] : memref<800x64xbf16, #tpu.memory_space<vmem>>, vector<32x64xbf16>
    %cst_80 = arith.constant dense<0.000000e+00> : vector<161x64xf32>
    %123 = tpu.matmul %121, %122, %cst_80 {dimension_numbers = #tpu.dot_dimension_numbers<[1], [0], [0], [1], [0, 0, 1, 1], [], []>} : vector<161x32xbf16>, vector<32x64xbf16>, vector<161x64xf32> -> vector<161x64xf32>
    %124 = arith.addf %119, %123 : vector<161x64xf32>
    %c60 = arith.constant 60 : index
    %c0_81 = arith.constant 0 : index
    %125 = vector.load %arg12[%c60, %c0_81] : memref<240x32xf32, #tpu.memory_space<vmem>>, vector<161x32xf32>
    %126 = arith.truncf %125 : vector<161x32xf32> to vector<161x32xbf16>
    %c640 = arith.constant 640 : index
    %c0_82 = arith.constant 0 : index
    %127 = vector.load %arg4[%c640, %c0_82] : memref<800x64xbf16, #tpu.memory_space<vmem>>, vector<32x64xbf16>
    %cst_83 = arith.constant dense<0.000000e+00> : vector<161x64xf32>
    %128 = tpu.matmul %126, %127, %cst_83 {dimension_numbers = #tpu.dot_dimension_numbers<[1], [0], [0], [1], [0, 0, 1, 1], [], []>} : vector<161x32xbf16>, vector<32x64xbf16>, vector<161x64xf32> -> vector<161x64xf32>
    %129 = arith.addf %124, %128 : vector<161x64xf32>
    %c61 = arith.constant 61 : index
    %c0_84 = arith.constant 0 : index
    %130 = vector.load %arg12[%c61, %c0_84] : memref<240x32xf32, #tpu.memory_space<vmem>>, vector<161x32xf32>
    %131 = arith.truncf %130 : vector<161x32xf32> to vector<161x32xbf16>
    %c672 = arith.constant 672 : index
    %c0_85 = arith.constant 0 : index
    %132 = vector.load %arg4[%c672, %c0_85] : memref<800x64xbf16, #tpu.memory_space<vmem>>, vector<32x64xbf16>
    %cst_86 = arith.constant dense<0.000000e+00> : vector<161x64xf32>
    %133 = tpu.matmul %131, %132, %cst_86 {dimension_numbers = #tpu.dot_dimension_numbers<[1], [0], [0], [1], [0, 0, 1, 1], [], []>} : vector<161x32xbf16>, vector<32x64xbf16>, vector<161x64xf32> -> vector<161x64xf32>
    %134 = arith.addf %129, %133 : vector<161x64xf32>
    %c62 = arith.constant 62 : index
    %c0_87 = arith.constant 0 : index
    %135 = vector.load %arg12[%c62, %c0_87] : memref<240x32xf32, #tpu.memory_space<vmem>>, vector<161x32xf32>
    %136 = arith.truncf %135 : vector<161x32xf32> to vector<161x32xbf16>
    %c704 = arith.constant 704 : index
    %c0_88 = arith.constant 0 : index
    %137 = vector.load %arg4[%c704, %c0_88] : memref<800x64xbf16, #tpu.memory_space<vmem>>, vector<32x64xbf16>
    %cst_89 = arith.constant dense<0.000000e+00> : vector<161x64xf32>
    %138 = tpu.matmul %136, %137, %cst_89 {dimension_numbers = #tpu.dot_dimension_numbers<[1], [0], [0], [1], [0, 0, 1, 1], [], []>} : vector<161x32xbf16>, vector<32x64xbf16>, vector<161x64xf32> -> vector<161x64xf32>
    %139 = arith.addf %134, %138 : vector<161x64xf32>
    %c63 = arith.constant 63 : index
    %c0_90 = arith.constant 0 : index
    %140 = vector.load %arg12[%c63, %c0_90] : memref<240x32xf32, #tpu.memory_space<vmem>>, vector<161x32xf32>
    %141 = arith.truncf %140 : vector<161x32xf32> to vector<161x32xbf16>
    %c736 = arith.constant 736 : index
    %c0_91 = arith.constant 0 : index
    %142 = vector.load %arg4[%c736, %c0_91] : memref<800x64xbf16, #tpu.memory_space<vmem>>, vector<32x64xbf16>
    %cst_92 = arith.constant dense<0.000000e+00> : vector<161x64xf32>
    %143 = tpu.matmul %141, %142, %cst_92 {dimension_numbers = #tpu.dot_dimension_numbers<[1], [0], [0], [1], [0, 0, 1, 1], [], []>} : vector<161x32xbf16>, vector<32x64xbf16>, vector<161x64xf32> -> vector<161x64xf32>
    %144 = arith.addf %139, %143 : vector<161x64xf32>
    %c64_93 = arith.constant 64 : index
    %c0_94 = arith.constant 0 : index
    %145 = vector.load %arg12[%c64_93, %c0_94] : memref<240x32xf32, #tpu.memory_space<vmem>>, vector<161x32xf32>
    %146 = arith.truncf %145 : vector<161x32xf32> to vector<161x32xbf16>
    %c768 = arith.constant 768 : index
    %c0_95 = arith.constant 0 : index
    %147 = vector.load %arg4[%c768, %c0_95] : memref<800x64xbf16, #tpu.memory_space<vmem>>, vector<32x64xbf16>
    %cst_96 = arith.constant dense<0.000000e+00> : vector<161x64xf32>
    %148 = tpu.matmul %146, %147, %cst_96 {dimension_numbers = #tpu.dot_dimension_numbers<[1], [0], [0], [1], [0, 0, 1, 1], [], []>} : vector<161x32xbf16>, vector<32x64xbf16>, vector<161x64xf32> -> vector<161x64xf32>
    %149 = arith.addf %144, %148 : vector<161x64xf32>
    %c0_97 = arith.constant 0 : index
    %c0_98 = arith.constant 0 : index
    %150 = vector.load %arg5[%c0_97, %c0_98] : memref<1x64xf32, #tpu.memory_space<vmem>>, vector<1x64xf32>
    %151 = vector.broadcast %150 : vector<1x64xf32> to vector<161x64xf32>
    %152 = arith.addf %149, %151 : vector<161x64xf32>
    %c0_99 = arith.constant 0 : index
    %c0_100 = arith.constant 0 : index
    %153 = vector.load %arg6[%c0_99, %c0_100] : memref<161x1xf32, #tpu.memory_space<vmem>>, vector<161x1xf32>
    %154 = vector.broadcast %153 : vector<161x1xf32> to vector<161x64xf32>
    %155 = arith.addf %152, %154 : vector<161x64xf32>
    %cst_101 = arith.constant dense<0xFF800000> : vector<64xf32>
    %156 = vector.multi_reduction <maximumf>, %155, %cst_101 [0] : vector<161x64xf32> to vector<64xf32>
    %157 = vector.shape_cast %156 : vector<64xf32> to vector<1x64xf32>
    %c0_102 = arith.constant 0 : index
    %c0_103 = arith.constant 0 : index
    %158 = vector.load %arg7[%c0_102, %c0_103] : memref<64x32xf32, #tpu.memory_space<vmem>>, vector<64x32xf32>
    %cst_104 = arith.constant dense<0.000000e+00> : vector<1x32xf32>
    %159 = tpu.matmul %157, %158, %cst_104 {dimension_numbers = #tpu.dot_dimension_numbers<[1], [0], [0], [1], [0, 0, 1, 1], [], []>} : vector<1x64xf32>, vector<64x32xf32>, vector<1x32xf32> -> vector<1x32xf32>
    %c0_105 = arith.constant 0 : index
    %c0_106 = arith.constant 0 : index
    %160 = vector.load %arg8[%c0_105, %c0_106] : memref<1x32xf32, #tpu.memory_space<vmem>>, vector<1x32xf32>
    %161 = arith.addf %159, %160 : vector<1x32xf32>
    %cst_107 = arith.constant 0.000000e+00 : f32
    %162 = vector.broadcast %cst_107 : f32 to vector<1x32xf32>
    %163 = arith.maximumf %161, %162 : vector<1x32xf32>
    %c0_108 = arith.constant 0 : index
    %c0_109 = arith.constant 0 : index
    %164 = vector.load %arg9[%c0_108, %c0_109] : memref<1x32xf32, #tpu.memory_space<vmem>>, vector<1x32xf32>
    %165 = arith.mulf %163, %164 : vector<1x32xf32>
    %cst_110 = arith.constant dense<0.000000e+00> : vector<1xf32>
    %166 = vector.multi_reduction <add>, %165, %cst_110 [1] : vector<1x32xf32> to vector<1xf32>
    %167 = vector.shape_cast %166 : vector<1xf32> to vector<1x1xf32>
    %c0_111 = arith.constant 0 : index
    %c0_112 = arith.constant 0 : index
    %168 = vector.load %arg10[%c0_111, %c0_112] : memref<1x1xf32, #tpu.memory_space<vmem>>, vector<1x1xf32>
    %169 = arith.addf %167, %168 : vector<1x1xf32>
    %cst_113 = arith.constant 0.000000e+00 : f32
    %170 = vector.broadcast %cst_113 : f32 to vector<1x1xf32>
    %171 = arith.subf %170, %169 : vector<1x1xf32>
    %172 = math.exp %171 : vector<1x1xf32>
    %cst_114 = arith.constant 1.000000e+00 : f32
    %173 = vector.broadcast %cst_114 : f32 to vector<1x1xf32>
    %174 = arith.addf %173, %172 : vector<1x1xf32>
    %cst_115 = arith.constant 1.000000e+00 : f32
    %175 = vector.broadcast %cst_115 : f32 to vector<1x1xf32>
    %176 = arith.divf %175, %174 : vector<1x1xf32>
    %177 = arith.index_cast %arg0 : i32 to index
    %c0_116 = arith.constant 0 : index
    %178 = vector.load %arg11[%177, %c0_116] : memref<2x1xf32, #tpu.memory_space<vmem>>, vector<1x1xf32>
    tpu.vector_store %arg11[%177, %c0_116], %176 {strides = array<i32>} : memref<2x1xf32, #tpu.memory_space<vmem>>, vector<1x1xf32>,
    return
  }
  func.func @transform_0(%arg0: i32) -> (i32, i32, i32) {
    %c0_i32 = arith.constant 0 : i32
    %c0_i32_0 = arith.constant 0 : i32
    %c0_i32_1 = arith.constant 0 : i32
    return %arg0, %c0_i32, %c0_i32_0 : i32, i32, i32
  }
  func.func @transform_1(%arg0: i32) -> (i32, i32) {
    %c0_i32 = arith.constant 0 : i32
    %c0_i32_0 = arith.constant 0 : i32
    %c0_i32_1 = arith.constant 0 : i32
    return %c0_i32, %c0_i32_0 : i32, i32
  }
  func.func @transform_2(%arg0: i32) -> (i32, i32) {
    %c0_i32 = arith.constant 0 : i32
    %c0_i32_0 = arith.constant 0 : i32
    %c0_i32_1 = arith.constant 0 : i32
    return %c0_i32, %c0_i32_0 : i32, i32
  }
  func.func @transform_3(%arg0: i32) -> (i32, i32) {
    %c0_i32 = arith.constant 0 : i32
    %c0_i32_0 = arith.constant 0 : i32
    %c0_i32_1 = arith.constant 0 : i32
    return %c0_i32, %c0_i32_0 : i32, i32
  }
  func.func @transform_4(%arg0: i32) -> (i32, i32) {
    %c0_i32 = arith.constant 0 : i32
    %c0_i32_0 = arith.constant 0 : i32
    %c0_i32_1 = arith.constant 0 : i32
    return %c0_i32, %c0_i32_0 : i32, i32
  }
  func.func @transform_5(%arg0: i32) -> (i32, i32) {
    %c0_i32 = arith.constant 0 : i32
    %c0_i32_0 = arith.constant 0 : i32
    %c0_i32_1 = arith.constant 0 : i32
    return %c0_i32, %c0_i32_0 : i32, i32
  }
  func.func @transform_6(%arg0: i32) -> (i32, i32) {
    %c0_i32 = arith.constant 0 : i32
    %c0_i32_0 = arith.constant 0 : i32
    %c0_i32_1 = arith.constant 0 : i32
    return %c0_i32, %c0_i32_0 : i32, i32
  }
  func.func @transform_7(%arg0: i32) -> (i32, i32) {
    %c0_i32 = arith.constant 0 : i32
    %c0_i32_0 = arith.constant 0 : i32
    %c0_i32_1 = arith.constant 0 : i32
    return %c0_i32, %c0_i32_0 : i32, i32
  }
  func.func @transform_8(%arg0: i32) -> (i32, i32) {
    %c0_i32 = arith.constant 0 : i32
    %c0_i32_0 = arith.constant 0 : i32
    %c0_i32_1 = arith.constant 0 : i32
    return %c0_i32, %c0_i32_0 : i32, i32
  }
  func.func @transform_9(%arg0: i32) -> (i32, i32) {
    %c0_i32 = arith.constant 0 : i32
    %c0_i32_0 = arith.constant 0 : i32
    %c0_i32_1 = arith.constant 0 : i32
    return %c0_i32, %c0_i32_0 : i32, i32
  }
  func.func @transform_10(%arg0: i32) -> (i32, i32) {
    %c0_i32 = arith.constant 0 : i32
    %c0_i32_0 = arith.constant 0 : i32
    %c0_i32_1 = arith.constant 0 : i32
    return %c0_i32, %c0_i32_0 : i32, i32
  }
}

</mosaic_0001>

<llo_original>
// kernel: net_forward.1
$region0: #{net_forward.1}
  #allocation0 [shape = 'u32[]', space=smem, size = 0x4, offset = 0x4, fixed_abs, tag = 'smem constant byte address 0x4 - core index']
  #allocation1 [shape = 'u32[72,128]{1,0:T(1,128)}', space=vmem, size = 0x9000, scoped, tag = 'internal scratch']
  #allocation2 [shape = 'f32[240,32]{1,0:T(8,128)}', space=vmem, size = 0x1e000, scoped, tag = 'scratch operand']
  #allocation3 [shape = 'f32[1,1]{1,0:T(1,128)S(1)}', space=vmem, size = 0x200, scoped, tag = 'scoped memory for net_forward.1']
  %s0 = inlined_call_operand.vmem [shape: bf16[2,960,27], index: 0, kind: input, shape index: {}]
  %s1 = inlined_call_operand.vmem [shape: bf16[27,32], index: 1, kind: input, shape index: {}]
  %s2 = inlined_call_operand.vmem [shape: f32[1,32], index: 2, kind: input, shape index: {}]
  %s3 = inlined_call_operand.vmem [shape: bf16[800,64], index: 3, kind: input, shape index: {}]
  %s4 = inlined_call_operand.vmem [shape: f32[1,64], index: 4, kind: input, shape index: {}]
  %s5 = inlined_call_operand.vmem [shape: f32[161,1], index: 5, kind: input, shape index: {}]
  %s6 = inlined_call_operand.vmem [shape: f32[64,32], index: 6, kind: input, shape index: {}]
  %s7 = inlined_call_operand.vmem [shape: f32[1,32], index: 7, kind: input, shape index: {}]
  %s8 = inlined_call_operand.vmem [shape: f32[1,32], index: 8, kind: input, shape index: {}]
  %s9 = inlined_call_operand.<no memory space> [shape: f32[1,1], index: 9, kind: input, shape index: {}]
  %s10 = inlined_call_operand.vmem [shape: f32[2,1], index: 10, kind: output, shape index: {}]
  %s11 = sld [smem:[#allocation0]]
  $region73: #{net_forward.1} parent=0
    _
  %s13 = ssub.s32 1, %s11
  %s14 = scalar_select 0, %s13, %s11
  %v15 = vstv %s9
  %16 = vst [vmem:[#allocation3] sm:$0x1] %v15
  loop: start=0, step=1, limit=4
  $region2: #{net_forward.1} parent=0 // loop_pre_header
    _
  $region3: #{net_forward.1} parent=0 // loop_header
    %s18 = sphi 0, %s22
    %p19 = scmp.ge.s32.totalorder %s18, 4
    %s28 = sphi 0, %s30
    %s31 = sphi 0, %s28
    %s32 = sphi 0, %s31
    %s48 = sphi 0, %s32
    %s52 = sphi 0, %s52
    %s54 = sphi 0, %s52
    %s55 = sphi 0, %s54
    %s69 = sphi 0, %s55
    %s73 = sphi 0, %s73
    %s75 = sphi 0, %s73
    %s76 = sphi 0, %s75
    %s90 = sphi 0, %s76
    %s94 = sphi 0, %s94
    %s96 = sphi 0, %s94
    %s97 = sphi 0, %s96
    %s111 = sphi 0, %s97
    %s115 = sphi 0, %s115
    %s117 = sphi 0, %s115
    %s118 = sphi 0, %s117
    %s132 = sphi 0, %s118
    %s136 = sphi 0, %s136
    %s138 = sphi 0, %s136
    %s139 = sphi 0, %s138
    %s153 = sphi 0, %s139
    %s157 = sphi 0, %s157
    %s159 = sphi 0, %s157
    %s160 = sphi 0, %s159
    %s174 = sphi 0, %s160
    %s178 = sphi 0, %s178
    %s180 = sphi 0, %s178
    %s181 = sphi 0, %s180
    %s195 = sphi 0, %s181
    %s199 = sphi 0, %s199
    %s201 = sphi 0, %s199
    %s202 = sphi 0, %s201
    %s216 = sphi 0, %s202
    %s220 = sphi 0, %s220
    %s222 = sphi 0, %s220
    %s223 = sphi 0, %s222
    %s237 = sphi 0, %s223
    %s241 = sphi 0, %s241
    %s243 = sphi 0, %s241
    %s244 = sphi 0, %s243
    %s258 = sphi 0, %s244
  $region4: #{net_forward.1} parent=0 // loop_header_branch
    %21 = sbr.rel (%p19) target = $region8
  $region5: #{net_forward.1} parent=0 // loop_body
    %s23 = ssub.s32 %s18, 1
    %s24 = ssub.s32 %s18, 2
    %s25 = sadd.s32 %s18, 1
    %s26 = ssub.s32 %s18, %s25
    %p27 = scmp.eq.s32.totalorder %s26, 0
    %s29 = sadd.s32 %s28, 1
    %s30 = scalar_select %p27, %s28, %s29
    %p33 = pneg %p27
    %p34 = scmp.eq.s32.totalorder %s18, 1
    %p35 = por %p33, %p34
    %p36 = scmp.ne.s32.totalorder %s28, %s31
    %p37 = scmp.eq.s32.totalorder %s18, 0
    %p38 = por %p36, %p37
    %p39 = scmp.ne.s32.totalorder %s28, %s31
    %p40 = scmp.eq.s32.totalorder %s23, 1
    %p41 = por %p39, %p40
    %p42 = scmp.ne.s32.totalorder %s31, %s32
    %p43 = scmp.eq.s32.totalorder %s23, 0
    %p44 = por %p42, %p43
    %p45 = scmp.ne.s32.totalorder %s31, %s32
    %p46 = scmp.eq.s32.totalorder %s24, 1
    %p47 = por %p45, %p46
    %p49 = scmp.ne.s32.totalorder %s32, %s48
    %p50 = scmp.eq.s32.totalorder %s24, 0
    %p51 = por %p49, %p50
    %s53 = sadd.s32 %s52, 1
    %p56 = scmp.eq.s32.totalorder %s18, 1
    %p57 = scmp.ne.s32.totalorder %s52, %s54
    %p58 = scmp.eq.s32.totalorder %s18, 0
    %p59 = por %p57, %p58
    %p60 = scmp.ne.s32.totalorder %s52, %s54
    %p61 = scmp.eq.s32.totalorder %s23, 1
    %p62 = por %p60, %p61
    %p63 = scmp.ne.s32.totalorder %s54, %s55
    %p64 = scmp.eq.s32.totalorder %s23, 0
    %p65 = por %p63, %p64
    %p66 = scmp.ne.s32.totalorder %s54, %s55
    %p67 = scmp.eq.s32.totalorder %s24, 1
    %p68 = por %p66, %p67
    %p70 = scmp.ne.s32.totalorder %s55, %s69
    %p71 = scmp.eq.s32.totalorder %s24, 0
    %p72 = por %p70, %p71
    %s74 = sadd.s32 %s73, 1
    %p77 = scmp.eq.s32.totalorder %s18, 1
    %p78 = scmp.ne.s32.totalorder %s73, %s75
    %p79 = scmp.eq.s32.totalorder %s18, 0
    %p80 = por %p78, %p79
    %p81 = scmp.ne.s32.totalorder %s73, %s75
    %p82 = scmp.eq.s32.totalorder %s23, 1
    %p83 = por %p81, %p82
    %p84 = scmp.ne.s32.totalorder %s75, %s76
    %p85 = scmp.eq.s32.totalorder %s23, 0
    %p86 = por %p84, %p85
    %p87 = scmp.ne.s32.totalorder %s75, %s76
    %p88 = scmp.eq.s32.totalorder %s24, 1
    %p89 = por %p87, %p88
    %p91 = scmp.ne.s32.totalorder %s76, %s90
    %p92 = scmp.eq.s32.totalorder %s24, 0
    %p93 = por %p91, %p92
    %s95 = sadd.s32 %s94, 1
    %p98 = scmp.eq.s32.totalorder %s18, 1
    %p99 = scmp.ne.s32.totalorder %s94, %s96
    %p100 = scmp.eq.s32.totalorder %s18, 0
    %p101 = por %p99, %p100
    %p102 = scmp.ne.s32.totalorder %s94, %s96
    %p103 = scmp.eq.s32.totalorder %s23, 1
    %p104 = por %p102, %p103
    %p105 = scmp.ne.s32.totalorder %s96, %s97
    %p106 = scmp.eq.s32.totalorder %s23, 0
    %p107 = por %p105, %p106
    %p108 = scmp.ne.s32.totalorder %s96, %s97
    %p109 = scmp.eq.s32.totalorder %s24, 1
    %p110 = por %p108, %p109
    %p112 = scmp.ne.s32.totalorder %s97, %s111
    %p113 = scmp.eq.s32.totalorder %s24, 0
    %p114 = por %p112, %p113
    %s116 = sadd.s32 %s115, 1
    %p119 = scmp.eq.s32.totalorder %s18, 1
    %p120 = scmp.ne.s32.totalorder %s115, %s117
    %p121 = scmp.eq.s32.totalorder %s18, 0
    %p122 = por %p120, %p121
    %p123 = scmp.ne.s32.totalorder %s115, %s117
    %p124 = scmp.eq.s32.totalorder %s23, 1
    %p125 = por %p123, %p124
    %p126 = scmp.ne.s32.totalorder %s117, %s118
    %p127 = scmp.eq.s32.totalorder %s23, 0
    %p128 = por %p126, %p127
    %p129 = scmp.ne.s32.totalorder %s117, %s118
    %p130 = scmp.eq.s32.totalorder %s24, 1
    %p131 = por %p129, %p130
    %p133 = scmp.ne.s32.totalorder %s118, %s132
    %p134 = scmp.eq.s32.totalorder %s24, 0
    %p135 = por %p133, %p134
    %s137 = sadd.s32 %s136, 1
    %p140 = scmp.eq.s32.totalorder %s18, 1
    %p141 = scmp.ne.s32.totalorder %s136, %s138
    %p142 = scmp.eq.s32.totalorder %s18, 0
    %p143 = por %p141, %p142
    %p144 = scmp.ne.s32.totalorder %s136, %s138
    %p145 = scmp.eq.s32.totalorder %s23, 1
    %p146 = por %p144, %p145
    %p147 = scmp.ne.s32.totalorder %s138, %s139
    %p148 = scmp.eq.s32.totalorder %s23, 0
    %p149 = por %p147, %p148
    %p150 = scmp.ne.s32.totalorder %s138, %s139
    %p151 = scmp.eq.s32.totalorder %s24, 1
    %p152 = por %p150, %p151
    %p154 = scmp.ne.s32.totalorder %s139, %s153
    %p155 = scmp.eq.s32.totalorder %s24, 0
    %p156 = por %p154, %p155
    %s158 = sadd.s32 %s157, 1
    %p161 = scmp.eq.s32.totalorder %s18, 1
    %p162 = scmp.ne.s32.totalorder %s157, %s159
    %p163 = scmp.eq.s32.totalorder %s18, 0
    %p164 = por %p162, %p163
    %p165 = scmp.ne.s32.totalorder %s157, %s159
    %p166 = scmp.eq.s32.totalorder %s23, 1
    %p167 = por %p165, %p166
    %p168 = scmp.ne.s32.totalorder %s159, %s160
    %p169 = scmp.eq.s32.totalorder %s23, 0
    %p170 = por %p168, %p169
    %p171 = scmp.ne.s32.totalorder %s159, %s160
    %p172 = scmp.eq.s32.totalorder %s24, 1
    %p173 = por %p171, %p172
    %p175 = scmp.ne.s32.totalorder %s160, %s174
    %p176 = scmp.eq.s32.totalorder %s24, 0
    %p177 = por %p175, %p176
    %s179 = sadd.s32 %s178, 1
    %p182 = scmp.eq.s32.totalorder %s18, 1
    %p183 = scmp.ne.s32.totalorder %s178, %s180
    %p184 = scmp.eq.s32.totalorder %s18, 0
    %p185 = por %p183, %p184
    %p186 = scmp.ne.s32.totalorder %s178, %s180
    %p187 = scmp.eq.s32.totalorder %s23, 1
    %p188 = por %p186, %p187
    %p189 = scmp.ne.s32.totalorder %s180, %s181
    %p190 = scmp.eq.s32.totalorder %s23, 0
    %p191 = por %p189, %p190
    %p192 = scmp.ne.s32.totalorder %s180, %s181
    %p193 = scmp.eq.s32.totalorder %s24, 1
    %p194 = por %p192, %p193
    %p196 = scmp.ne.s32.totalorder %s181, %s195
    %p197 = scmp.eq.s32.totalorder %s24, 0
    %p198 = por %p196, %p197
    %s200 = sadd.s32 %s199, 1
    %p203 = scmp.eq.s32.totalorder %s18, 1
    %p204 = scmp.ne.s32.totalorder %s199, %s201
    %p205 = scmp.eq.s32.totalorder %s18, 0
    %p206 = por %p204, %p205
    %p207 = scmp.ne.s32.totalorder %s199, %s201
    %p208 = scmp.eq.s32.totalorder %s23, 1
    %p209 = por %p207, %p208
    %p210 = scmp.ne.s32.totalorder %s201, %s202
    %p211 = scmp.eq.s32.totalorder %s23, 0
    %p212 = por %p210, %p211
    %p213 = scmp.ne.s32.totalorder %s201, %s202
    %p214 = scmp.eq.s32.totalorder %s24, 1
    %p215 = por %p213, %p214
    %p217 = scmp.ne.s32.totalorder %s202, %s216
    %p218 = scmp.eq.s32.totalorder %s24, 0
    %p219 = por %p217, %p218
    %s221 = sadd.s32 %s220, 1
    %p224 = scmp.eq.s32.totalorder %s18, 1
    %p225 = scmp.ne.s32.totalorder %s220, %s222
    %p226 = scmp.eq.s32.totalorder %s18, 0
    %p227 = por %p225, %p226
    %p228 = scmp.ne.s32.totalorder %s220, %s222
    %p229 = scmp.eq.s32.totalorder %s23, 1
    %p230 = por %p228, %p229
    %p231 = scmp.ne.s32.totalorder %s222, %s223
    %p232 = scmp.eq.s32.totalorder %s23, 0
    %p233 = por %p231, %p232
    %p234 = scmp.ne.s32.totalorder %s222, %s223
    %p235 = scmp.eq.s32.totalorder %s24, 1
    %p236 = por %p234, %p235
    %p238 = scmp.ne.s32.totalorder %s223, %s237
    %p239 = scmp.eq.s32.totalorder %s24, 0
    %p240 = por %p238, %p239
    %s242 = sadd.s32 %s241, 1
    %p245 = scmp.eq.s32.totalorder %s18, 1
    %p246 = scmp.ne.s32.totalorder %s241, %s243
    %p247 = scmp.eq.s32.totalorder %s18, 0
    %p248 = por %p246, %p247
    %p249 = scmp.ne.s32.totalorder %s241, %s243
    %p250 = scmp.eq.s32.totalorder %s23, 1
    %p251 = por %p249, %p250
    %p252 = scmp.ne.s32.totalorder %s243, %s244
    %p253 = scmp.eq.s32.totalorder %s23, 0
    %p254 = por %p252, %p253
    %p255 = scmp.ne.s32.totalorder %s243, %s244
    %p256 = scmp.eq.s32.totalorder %s24, 1
    %p257 = por %p255, %p256
    %p259 = scmp.ne.s32.totalorder %s244, %s258
    %p260 = scmp.eq.s32.totalorder %s24, 0
    %p261 = por %p259, %p260
    %p262 = scmp.le.s32.totalorder 1, %s18
    %p263 = scmp.lt.s32.totalorder %s18, 3
    %p264 = pnand %p262, %p263
    %p265 = pneg %p264
    // Predicated region
    $region9: #{net_forward.1} parent=5 // pred_check
      _
    $region10: #{net_forward.1} parent=5 // pred_check_branch
      %267 = sbr.rel (%p264) target = $region12
    $region11: #{net_forward.1} parent=5 // pred_region
      %s268 = ssub.s32 %s18, 1
      // Predicated region
      $region13: #{net_forward.1} parent=11 // pred_check
        %p269 = pneg %p65
      $region14: #{net_forward.1} parent=11 // pred_check_branch
        %271 = sbr.rel (%p269) target = $region16
      $region15: #{net_forward.1} parent=11 // pred_region
        _
      $region16: #{net_forward.1} parent=11 // pred_fallthru
        _
      // Predicated region
      $region17: #{net_forward.1} parent=11 // pred_check
        %p272 = pneg %p86
      $region18: #{net_forward.1} parent=11 // pred_check_branch
        %274 = sbr.rel (%p272) target = $region20
      $region19: #{net_forward.1} parent=11 // pred_region
        _
      $region20: #{net_forward.1} parent=11 // pred_fallthru
        _
      // Predicated region
      $region21: #{net_forward.1} parent=11 // pred_check
        %p275 = pneg %p107
      $region22: #{net_forward.1} parent=11 // pred_check_branch
        %277 = sbr.rel (%p275) target = $region24
      $region23: #{net_forward.1} parent=11 // pred_region
        _
      $region24: #{net_forward.1} parent=11 // pred_fallthru
        _
      // Predicated region
      $region25: #{net_forward.1} parent=11 // pred_check
        %p278 = pneg %p128
      $region26: #{net_forward.1} parent=11 // pred_check_branch
        %280 = sbr.rel (%p278) target = $region28
      $region27: #{net_forward.1} parent=11 // pred_region
        _
      $region28: #{net_forward.1} parent=11 // pred_fallthru
        _
      // Predicated region
      $region29: #{net_forward.1} parent=11 // pred_check
        %p281 = pneg %p149
      $region30: #{net_forward.1} parent=11 // pred_check_branch
        %283 = sbr.rel (%p281) target = $region32
      $region31: #{net_forward.1} parent=11 // pred_region
        _
      $region32: #{net_forward.1} parent=11 // pred_fallthru
        _
      // Predicated region
      $region33: #{net_forward.1} parent=11 // pred_check
        %p284 = pneg %p170
      $region34: #{net_forward.1} parent=11 // pred_check_branch
        %286 = sbr.rel (%p284) target = $region36
      $region35: #{net_forward.1} parent=11 // pred_region
        _
      $region36: #{net_forward.1} parent=11 // pred_fallthru
        _
      // Predicated region
      $region37: #{net_forward.1} parent=11 // pred_check
        %p287 = pneg %p191
      $region38: #{net_forward.1} parent=11 // pred_check_branch
        %289 = sbr.rel (%p287) target = $region40
      $region39: #{net_forward.1} parent=11 // pred_region
        _
      $region40: #{net_forward.1} parent=11 // pred_fallthru
        _
      // Predicated region
      $region41: #{net_forward.1} parent=11 // pred_check
        %p290 = pneg %p212
      $region42: #{net_forward.1} parent=11 // pred_check_branch
        %292 = sbr.rel (%p290) target = $region44
      $region43: #{net_forward.1} parent=11 // pred_region
        _
      $region44: #{net_forward.1} parent=11 // pred_fallthru
        _
      // Predicated region
      $region45: #{net_forward.1} parent=11 // pred_check
        %p293 = pneg %p233
      $region46: #{net_forward.1} parent=11 // pred_check_branch
        %295 = sbr.rel (%p293) target = $region48
      $region47: #{net_forward.1} parent=11 // pred_region
        _
      $region48: #{net_forward.1} parent=11 // pred_fallthru
        _
    $region12: #{net_forward.1} parent=5 // pred_fallthru
      _
    %p296 = scmp.lt.s32.totalorder %s18, 2
    // Predicated region
    $region49: #{net_forward.1} parent=5 // pred_check
      %p297 = pneg %p296
    $region50: #{net_forward.1} parent=5 // pred_check_branch
      %299 = sbr.rel (%p297) target = $region52
    $region51: #{net_forward.1} parent=5 // pred_region
      // Predicated region
      $region53: #{net_forward.1} parent=51 // pred_check
        %p300 = pneg %p38
      $region54: #{net_forward.1} parent=51 // pred_check_branch
        %302 = sbr.rel (%p300) target = $region56
      $region55: #{net_forward.1} parent=51 // pred_region
        %p303 = scmp.lt.s32.totalorder %s18, 1
        %s304 = scalar_select %p303, %s18, 1
        %s305 = smul.addr %s304, 120
        %s306 = smul.addr %s305, 4
        %s307 = scalar_lea.vmem %s0, %s306
      $region56: #{net_forward.1} parent=51 // pred_fallthru
        _
    $region52: #{net_forward.1} parent=5 // pred_fallthru
      _
    %p308 = scmp.le.s32.totalorder 1, %s18
    %p309 = scmp.lt.s32.totalorder %s18, 3
    %p310 = pnand %p308, %p309
    %p311 = pneg %p310
    // Predicated region
    $region57: #{net_forward.1} parent=5 // pred_check
      _
    $region58: #{net_forward.1} parent=5 // pred_check_branch
      %313 = sbr.rel (%p310) target = $region60
    $region59: #{net_forward.1} parent=5 // pred_region
      %s314 = ssub.s32 %s18, 1
      %p315 = scmp.lt.s32.totalorder %s23, 1
      %s316 = scalar_select %p315, %s23, 1
      %s317 = smul.addr %s316, 120
      %s318 = smul.addr %s317, 4
      %s319 = scalar_lea.vmem %s0, %s318
      %p320 = pneg %p44
      %p321 = pneg %p41
      %p322 = pneg %p65
      %p323 = pneg %p62
      %p324 = pneg %p86
      %p325 = pneg %p83
      %p326 = pneg %p107
      %p327 = pneg %p104
      %p328 = pneg %p128
      %p329 = pneg %p125
      %p330 = pneg %p149
      %p331 = pneg %p146
      %p332 = pneg %p170
      %p333 = pneg %p167
      %p334 = pneg %p191
      %p335 = pneg %p188
      %p336 = pneg %p212
      %p337 = pneg %p209
      %p338 = pneg %p233
      %p339 = pneg %p230
      %p340 = pneg %p254
      %p341 = pneg %p251
      %p342 = scmp.lt.s32.totalorder %s23, 1
      %s343 = scalar_select %p342, %s23, 1
      %s344 = smul.addr %s343, 120
      %s345 = smul.addr %s344, 4
      %s346 = scalar_lea.vmem %s0, %s345
      %v348 = vld [vmem:[%s1] sm:$0xf]
      %v349 = vld [vmem:[%s1 + $0x4] sm:$0xf]
      %v350 = vld [vmem:[%s1 + $0x8] sm:$0xf]
      %v351 = vld [vmem:[%s1 + $0xc] sm:$0x3]
      %v352 = vld [vmem:[%s2] sm:$0x1]
      %v353 = vld [vmem:[%s346] sm:$0xf]
      %v354 = vld [vmem:[%s346 + $0x4] sm:$0xf]
      %v355 = vld [vmem:[%s346 + $0x8] sm:$0xf]
      %v356 = vld [vmem:[%s346 + $0xc] sm:$0xf]
      %v357 = vld [vmem:[%s346 + $0x10] sm:$0xf]
      %v358 = vld [vmem:[%s346 + $0x14] sm:$0xf]
      %v359 = vld [vmem:[%s346 + $0x18] sm:$0xf]
      %v360 = vld [vmem:[%s346 + $0x1c] sm:$0xf]
      %v361 = vld [vmem:[%s346 + $0x20] sm:$0xf]
      %v362 = vld [vmem:[%s346 + $0x24] sm:$0xf]
      %v363 = vld [vmem:[%s346 + $0x28] sm:$0xf]
      %v364 = vld [vmem:[%s346 + $0x2c] sm:$0xf]
      %v365 = vld [vmem:[%s346 + $0x30] sm:$0xf]
      %v366 = vld [vmem:[%s346 + $0x34] sm:$0xf]
      %v367 = vld [vmem:[%s346 + $0x38] sm:$0xf]
      %v368 = vld [vmem:[%s346 + $0x3c] sm:$0xf]
      %v369 = vld [vmem:[%s346 + $0x40] sm:$0xf]
      %v370 = vld [vmem:[%s346 + $0x44] sm:$0xf]
      %v371 = vld [vmem:[%s346 + $0x48] sm:$0xf]
      %v372 = vld [vmem:[%s346 + $0x4c] sm:$0xf]
      %v373 = vld [vmem:[%s346 + $0x50] sm:$0xf]
      %v374 = vld [vmem:[%s346 + $0x54] sm:$0xf]
      %v375 = vld [vmem:[%s346 + $0x58] sm:$0xf]
      %v376 = vld [vmem:[%s346 + $0x5c] sm:$0xf]
      %v377 = vld [vmem:[%s346 + $0x60] sm:$0xf]
      %v378 = vld [vmem:[%s346 + $0x64] sm:$0xf]
      %v379 = vld [vmem:[%s346 + $0x68] sm:$0xf]
      %v380 = vld [vmem:[%s346 + $0x6c] sm:$0xf]
      %v381 = vld [vmem:[%s346 + $0x70] sm:$0xf]
      %v382 = vld [vmem:[%s346 + $0x74] sm:$0xf]
      %v384 = vperm.slane %v352, 0
      %v416 = vunpack.c.l.b16 %v353
      %v417 = vunpack.c.l.b16 %v354
      %v418 = vunpack.c.l.b16 %v355
      %v419 = vunpack.c.l.b16 %v356
      %v420 = vunpack.c.l.b16 %v357
      %v421 = vunpack.c.l.b16 %v358
      %v422 = vunpack.c.l.b16 %v359
      %v423 = vunpack.c.l.b16 %v360
      %v424 = vunpack.c.l.b16 %v361
      %v425 = vunpack.c.l.b16 %v362
      %v426 = vunpack.c.l.b16 %v363
      %v427 = vunpack.c.l.b16 %v364
      %v428 = vunpack.c.l.b16 %v365
      %v429 = vunpack.c.l.b16 %v366
      %v430 = vunpack.c.l.b16 %v367
      %v431 = vunpack.c.l.b16 %v368
      %v432 = vunpack.c.l.b16 %v369
      %v433 = vunpack.c.l.b16 %v370
      %v434 = vunpack.c.l.b16 %v371
      %v435 = vunpack.c.l.b16 %v372
      %v436 = vunpack.c.l.b16 %v373
      %v437 = vunpack.c.l.b16 %v374
      %v438 = vunpack.c.l.b16 %v375
      %v439 = vunpack.c.l.b16 %v376
      %v440 = vunpack.c.l.b16 %v377
      %v441 = vunpack.c.l.b16 %v378
      %v442 = vunpack.c.l.b16 %v379
      %v443 = vunpack.c.l.b16 %v380
      %v444 = vunpack.c.l.b16 %v381
      %v445 = vunpack.c.l.b16 %v382
      %v446 = vpack.c.b16 %v417, %v416
      %v447 = vpack.c.b16 %v419, %v418
      %v448 = vpack.c.b16 %v421, %v420
      %v449 = vpack.c.b16 %v423, %v422
      %v450 = vpack.c.b16 %v425, %v424
      %v451 = vpack.c.b16 %v427, %v426
      %v452 = vpack.c.b16 %v429, %v428
      %v453 = vpack.c.b16 %v431, %v430
      %v454 = vpack.c.b16 %v433, %v432
      %v455 = vpack.c.b16 %v435, %v434
      %v456 = vpack.c.b16 %v437, %v436
      %v457 = vpack.c.b16 %v439, %v438
      %v458 = vpack.c.b16 %v441, %v440
      %v459 = vpack.c.b16 %v443, %v442
      %v460 = vpack.c.b16 %v445, %v444
      %v465 = vunpack.c.l.b16 %v348
      %v466 = vunpack.c.l.b16 %v349
      %v467 = vunpack.c.l.b16 %v350
      %v468 = vunpack.c.l.b16 %v351
      %v469 = vpack.c.b16 %v466, %v465
      %v470 = vpack.c.b16 %v468, %v467
      %vm472 = vcmask 220160
      %v474 = vsel %vm472, %v446, 0
      %v477 = vsel %vm472, %v447, 0
      %v480 = vsel %vm472, %v448, 0
      %v483 = vsel %vm472, %v449, 0
      %v486 = vsel %vm472, %v450, 0
      %v489 = vsel %vm472, %v451, 0
      %v492 = vsel %vm472, %v452, 0
      %v495 = vsel %vm472, %v453, 0
      %v498 = vsel %vm472, %v454, 0
      %v501 = vsel %vm472, %v455, 0
      %v504 = vsel %vm472, %v456, 0
      %v507 = vsel %vm472, %v457, 0
      %v510 = vsel %vm472, %v458, 0
      %v513 = vsel %vm472, %v459, 0
      %v516 = vsel %vm472, %v460, 0
      %vm518 = vcmask 1044480
      %vm519 = vcmask 1045504
      %v520 = vsel %vm518, 4294967295, 65535
      %v521 = vsel %vm519, %v520, 0
      %v523 = vand.u32 %v470, %v521
      %525 = vmatpush.bf16.msra.mxu0 0
      %526 = vmatpush.bf16.msra.mxu0 0
      %527 = vmatpush.bf16.msra.mxu0 0
      %528 = vmatpush.bf16.msra.mxu0 0
      %529 = vmatpush.bf16.msra.mxu0 0
      %530 = vmatpush.bf16.msra.mxu0 0
      %531 = vmatpush.bf16.msra.mxu0 %v523
      %532 = vmatpush.bf16.msra.mxu0 %v469
      %533 = vmatmul.bf16.gmra.mxu0 %v474
      %v534 = vpop.f32.mrf.mxu0
      %v535 = vadd.f32 %v384, %v534
      %v536 = vpop.f32.mrf.mxu0
      %v537 = vadd.f32 %v384, %v536
      %538 = vmatmul.bf16.gmra.mxu0 %v477
      %v539 = vpop.f32.mrf.mxu0
      %v540 = vadd.f32 %v384, %v539
      %v541 = vpop.f32.mrf.mxu0
      %v542 = vadd.f32 %v384, %v541
      %543 = vmatmul.bf16.gmra.mxu0 %v480
      %v544 = vpop.f32.mrf.mxu0
      %v545 = vadd.f32 %v384, %v544
      %v546 = vpop.f32.mrf.mxu0
      %v547 = vadd.f32 %v384, %v546
      %548 = vmatmul.bf16.gmra.mxu0 %v483
      %v549 = vpop.f32.mrf.mxu0
      %v550 = vadd.f32 %v384, %v549
      %v551 = vpop.f32.mrf.mxu0
      %v552 = vadd.f32 %v384, %v551
      %553 = vmatmul.bf16.gmra.mxu0 %v486
      %v554 = vpop.f32.mrf.mxu0
      %v555 = vadd.f32 %v384, %v554
      %v556 = vpop.f32.mrf.mxu0
      %v557 = vadd.f32 %v384, %v556
      %558 = vmatmul.bf16.gmra.mxu0 %v489
      %v559 = vpop.f32.mrf.mxu0
      %v560 = vadd.f32 %v384, %v559
      %v561 = vpop.f32.mrf.mxu0
      %v562 = vadd.f32 %v384, %v561
      %563 = vmatmul.bf16.gmra.mxu0 %v492
      %v564 = vpop.f32.mrf.mxu0
      %v565 = vadd.f32 %v384, %v564
      %v566 = vpop.f32.mrf.mxu0
      %v567 = vadd.f32 %v384, %v566
      %568 = vmatmul.bf16.gmra.mxu0 %v495
      %v569 = vpop.f32.mrf.mxu0
      %v570 = vadd.f32 %v384, %v569
      %v571 = vpop.f32.mrf.mxu0
      %v572 = vadd.f32 %v384, %v571
      %573 = vmatmul.bf16.gmra.mxu0 %v498
      %v574 = vpop.f32.mrf.mxu0
      %v575 = vadd.f32 %v384, %v574
      %v576 = vpop.f32.mrf.mxu0
      %v577 = vadd.f32 %v384, %v576
      %578 = vmatmul.bf16.gmra.mxu0 %v501
      %v579 = vpop.f32.mrf.mxu0
      %v580 = vadd.f32 %v384, %v579
      %v581 = vpop.f32.mrf.mxu0
      %v582 = vadd.f32 %v384, %v581
      %583 = vmatmul.bf16.gmra.mxu0 %v504
      %v584 = vpop.f32.mrf.mxu0
      %v585 = vadd.f32 %v384, %v584
      %v586 = vpop.f32.mrf.mxu0
      %v587 = vadd.f32 %v384, %v586
      %588 = vmatmul.bf16.gmra.mxu0 %v507
      %v589 = vpop.f32.mrf.mxu0
      %v590 = vadd.f32 %v384, %v589
      %v591 = vpop.f32.mrf.mxu0
      %v592 = vadd.f32 %v384, %v591
      %593 = vmatmul.bf16.gmra.mxu0 %v510
      %v594 = vpop.f32.mrf.mxu0
      %v595 = vadd.f32 %v384, %v594
      %v596 = vpop.f32.mrf.mxu0
      %v597 = vadd.f32 %v384, %v596
      %598 = vmatmul.bf16.gmra.mxu0 %v513
      %v599 = vpop.f32.mrf.mxu0
      %v600 = vadd.f32 %v384, %v599
      %v601 = vpop.f32.mrf.mxu0
      %v602 = vadd.f32 %v384, %v601
      %603 = vmatmul.bf16.gmra.mxu0 %v516
      %v604 = vpop.f32.mrf.mxu0
      %v605 = vadd.f32 %v384, %v604
      %v606 = vpop.f32.mrf.mxu0
      %v607 = vadd.f32 %v384, %v606
      %608 = vdwg.mxu0
      %v609 = vld [vmem:[%s346 + $0x78] sm:$0xf]
      %v610 = vld [vmem:[%s346 + $0x7c] sm:$0xf]
      %v611 = vld [vmem:[%s346 + $0x80] sm:$0xf]
      %v612 = vld [vmem:[%s346 + $0x84] sm:$0xf]
      %v613 = vld [vmem:[%s346 + $0x88] sm:$0xf]
      %v614 = vld [vmem:[%s346 + $0x8c] sm:$0xf]
      %v615 = vld [vmem:[%s346 + $0x90] sm:$0xf]
      %v616 = vld [vmem:[%s346 + $0x94] sm:$0xf]
      %v617 = vld [vmem:[%s346 + $0x98] sm:$0xf]
      %v618 = vld [vmem:[%s346 + $0x9c] sm:$0xf]
      %v619 = vld [vmem:[%s346 + $0xa0] sm:$0xf]
      %v620 = vld [vmem:[%s346 + $0xa4] sm:$0xf]
      %v621 = vld [vmem:[%s346 + $0xa8] sm:$0xf]
      %v622 = vld [vmem:[%s346 + $0xac] sm:$0xf]
      %v623 = vld [vmem:[%s346 + $0xb0] sm:$0xf]
      %v624 = vld [vmem:[%s346 + $0xb4] sm:$0xf]
      %v625 = vld [vmem:[%s346 + $0xb8] sm:$0xf]
      %v626 = vld [vmem:[%s346 + $0xbc] sm:$0xf]
      %v627 = vld [vmem:[%s346 + $0xc0] sm:$0xf]
      %v628 = vld [vmem:[%s346 + $0xc4] sm:$0xf]
      %v629 = vld [vmem:[%s346 + $0xc8] sm:$0xf]
      %v630 = vld [vmem:[%s346 + $0xcc] sm:$0xf]
      %v631 = vld [vmem:[%s346 + $0xd0] sm:$0xf]
      %v632 = vld [vmem:[%s346 + $0xd4] sm:$0xf]
      %v633 = vld [vmem:[%s346 + $0xd8] sm:$0xf]
      %v634 = vld [vmem:[%s346 + $0xdc] sm:$0xf]
      %v635 = vld [vmem:[%s346 + $0xe0] sm:$0xf]
      %v636 = vld [vmem:[%s346 + $0xe4] sm:$0xf]
      %v637 = vld [vmem:[%s346 + $0xe8] sm:$0xf]
      %v638 = vld [vmem:[%s346 + $0xec] sm:$0xf]
      %v669 = vunpack.c.l.b16 %v609
      %v670 = vunpack.c.l.b16 %v610
      %v671 = vunpack.c.l.b16 %v611
      %v672 = vunpack.c.l.b16 %v612
      %v673 = vunpack.c.l.b16 %v613
      %v674 = vunpack.c.l.b16 %v614
      %v675 = vunpack.c.l.b16 %v615
      %v676 = vunpack.c.l.b16 %v616
      %v677 = vunpack.c.l.b16 %v617
      %v678 = vunpack.c.l.b16 %v618
      %v679 = vunpack.c.l.b16 %v619
      %v680 = vunpack.c.l.b16 %v620
      %v681 = vunpack.c.l.b16 %v621
      %v682 = vunpack.c.l.b16 %v622
      %v683 = vunpack.c.l.b16 %v623
      %v684 = vunpack.c.l.b16 %v624
      %v685 = vunpack.c.l.b16 %v625
      %v686 = vunpack.c.l.b16 %v626
      %v687 = vunpack.c.l.b16 %v627
      %v688 = vunpack.c.l.b16 %v628
      %v689 = vunpack.c.l.b16 %v629
      %v690 = vunpack.c.l.b16 %v630
      %v691 = vunpack.c.l.b16 %v631
      %v692 = vunpack.c.l.b16 %v632
      %v693 = vunpack.c.l.b16 %v633
      %v694 = vunpack.c.l.b16 %v634
      %v695 = vunpack.c.l.b16 %v635
      %v696 = vunpack.c.l.b16 %v636
      %v697 = vunpack.c.l.b16 %v637
      %v698 = vunpack.c.l.b16 %v638
      %v699 = vpack.c.b16 %v670, %v669
      %v700 = vpack.c.b16 %v672, %v671
      %v701 = vpack.c.b16 %v674, %v673
      %v702 = vpack.c.b16 %v676, %v675
      %v703 = vpack.c.b16 %v678, %v677
      %v704 = vpack.c.b16 %v680, %v679
      %v705 = vpack.c.b16 %v682, %v681
      %v706 = vpack.c.b16 %v684, %v683
      %v707 = vpack.c.b16 %v686, %v685
      %v708 = vpack.c.b16 %v688, %v687
      %v709 = vpack.c.b16 %v690, %v689
      %v710 = vpack.c.b16 %v692, %v691
      %v711 = vpack.c.b16 %v694, %v693
      %v712 = vpack.c.b16 %v696, %v695
      %v713 = vpack.c.b16 %v698, %v697
      %v715 = vsel %vm472, %v699, 0
      %v718 = vsel %vm472, %v700, 0
      %v721 = vsel %vm472, %v701, 0
      %v724 = vsel %vm472, %v702, 0
      %v727 = vsel %vm472, %v703, 0
      %v730 = vsel %vm472, %v704, 0
      %v733 = vsel %vm472, %v705, 0
      %v736 = vsel %vm472, %v706, 0
      %v739 = vsel %vm472, %v707, 0
      %v742 = vsel %vm472, %v708, 0
      %v745 = vsel %vm472, %v709, 0
      %v748 = vsel %vm472, %v710, 0
      %v751 = vsel %vm472, %v711, 0
      %v754 = vsel %vm472, %v712, 0
      %v757 = vsel %vm472, %v713, 0
      %759 = vmatpush.bf16.msra.mxu0 0
      %760 = vmatpush.bf16.msra.mxu0 0
      %761 = vmatpush.bf16.msra.mxu0 0
      %762 = vmatpush.bf16.msra.mxu0 0
      %763 = vmatpush.bf16.msra.mxu0 0
      %764 = vmatpush.bf16.msra.mxu0 0
      %765 = vmatpush.bf16.msra.mxu0 %v523
      %766 = vmatpush.bf16.msra.mxu0 %v469
      %767 = vmatmul.bf16.gmra.mxu0 %v715
      %v768 = vpop.f32.mrf.mxu0
      %v769 = vadd.f32 %v384, %v768
      %v770 = vpop.f32.mrf.mxu0
      %v771 = vadd.f32 %v384, %v770
      %772 = vmatmul.bf16.gmra.mxu0 %v718
      %v773 = vpop.f32.mrf.mxu0
      %v774 = vadd.f32 %v384, %v773
      %v775 = vpop.f32.mrf.mxu0
      %v776 = vadd.f32 %v384, %v775
      %777 = vmatmul.bf16.gmra.mxu0 %v721
      %v778 = vpop.f32.mrf.mxu0
      %v779 = vadd.f32 %v384, %v778
      %v780 = vpop.f32.mrf.mxu0
      %v781 = vadd.f32 %v384, %v780
      %782 = vmatmul.bf16.gmra.mxu0 %v724
      %v783 = vpop.f32.mrf.mxu0
      %v784 = vadd.f32 %v384, %v783
      %v785 = vpop.f32.mrf.mxu0
      %v786 = vadd.f32 %v384, %v785
      %787 = vmatmul.bf16.gmra.mxu0 %v727
      %v788 = vpop.f32.mrf.mxu0
      %v789 = vadd.f32 %v384, %v788
      %v790 = vpop.f32.mrf.mxu0
      %v791 = vadd.f32 %v384, %v790
      %792 = vmatmul.bf16.gmra.mxu0 %v730
      %v793 = vpop.f32.mrf.mxu0
      %v794 = vadd.f32 %v384, %v793
      %v795 = vpop.f32.mrf.mxu0
      %v796 = vadd.f32 %v384, %v795
      %797 = vmatmul.bf16.gmra.mxu0 %v733
      %v798 = vpop.f32.mrf.mxu0
      %v799 = vadd.f32 %v384, %v798
      %v800 = vpop.f32.mrf.mxu0
      %v801 = vadd.f32 %v384, %v800
      %802 = vmatmul.bf16.gmra.mxu0 %v736
      %v803 = vpop.f32.mrf.mxu0
      %v804 = vadd.f32 %v384, %v803
      %v805 = vpop.f32.mrf.mxu0
      %v806 = vadd.f32 %v384, %v805
      %807 = vmatmul.bf16.gmra.mxu0 %v739
      %v808 = vpop.f32.mrf.mxu0
      %v809 = vadd.f32 %v384, %v808
      %v810 = vpop.f32.mrf.mxu0
      %v811 = vadd.f32 %v384, %v810
      %812 = vmatmul.bf16.gmra.mxu0 %v742
      %v813 = vpop.f32.mrf.mxu0
      %v814 = vadd.f32 %v384, %v813
      %v815 = vpop.f32.mrf.mxu0
      %v816 = vadd.f32 %v384, %v815
      %817 = vmatmul.bf16.gmra.mxu0 %v745
      %v818 = vpop.f32.mrf.mxu0
      %v819 = vadd.f32 %v384, %v818
      %v820 = vpop.f32.mrf.mxu0
      %v821 = vadd.f32 %v384, %v820
      %822 = vmatmul.bf16.gmra.mxu0 %v748
      %v823 = vpop.f32.mrf.mxu0
      %v824 = vadd.f32 %v384, %v823
      %v825 = vpop.f32.mrf.mxu0
      %v826 = vadd.f32 %v384, %v825
      %827 = vmatmul.bf16.gmra.mxu0 %v751
      %v828 = vpop.f32.mrf.mxu0
      %v829 = vadd.f32 %v384, %v828
      %v830 = vpop.f32.mrf.mxu0
      %v831 = vadd.f32 %v384, %v830
      %832 = vmatmul.bf16.gmra.mxu0 %v754
      %v833 = vpop.f32.mrf.mxu0
      %v834 = vadd.f32 %v384, %v833
      %v835 = vpop.f32.mrf.mxu0
      %v836 = vadd.f32 %v384, %v835
      %837 = vmatmul.bf16.gmra.mxu0 %v757
      %v838 = vpop.f32.mrf.mxu0
      %v839 = vadd.f32 %v384, %v838
      %v840 = vpop.f32.mrf.mxu0
      %v841 = vadd.f32 %v384, %v840
      %842 = vdwg.mxu0
      %v843 = vmax.f32 %v535, %v769
      %v844 = vmax.f32 %v537, %v771
      %v845 = vmax.f32 %v540, %v774
      %v846 = vmax.f32 %v542, %v776
      %v847 = vmax.f32 %v545, %v779
      %v848 = vmax.f32 %v547, %v781
      %v849 = vmax.f32 %v550, %v784
      %v850 = vmax.f32 %v552, %v786
      %v851 = vmax.f32 %v555, %v789
      %v852 = vmax.f32 %v557, %v791
      %v853 = vmax.f32 %v560, %v794
      %v854 = vmax.f32 %v562, %v796
      %v855 = vmax.f32 %v565, %v799
      %v856 = vmax.f32 %v567, %v801
      %v857 = vmax.f32 %v570, %v804
      %v858 = vmax.f32 %v572, %v806
      %v859 = vmax.f32 %v575, %v809
      %v860 = vmax.f32 %v577, %v811
      %v861 = vmax.f32 %v580, %v814
      %v862 = vmax.f32 %v582, %v816
      %v863 = vmax.f32 %v585, %v819
      %v864 = vmax.f32 %v587, %v821
      %v865 = vmax.f32 %v590, %v824
      %v866 = vmax.f32 %v592, %v826
      %v867 = vmax.f32 %v595, %v829
      %v868 = vmax.f32 %v597, %v831
      %v869 = vmax.f32 %v600, %v834
      %v870 = vmax.f32 %v602, %v836
      %v871 = vmax.f32 %v605, %v839
      %v872 = vmax.f32 %v607, %v841
      %v873 = vld [vmem:[%s346 + $0xf0] sm:$0xf]
      %v874 = vld [vmem:[%s346 + $0xf4] sm:$0xf]
      %v875 = vld [vmem:[%s346 + $0xf8] sm:$0xf]
      %v876 = vld [vmem:[%s346 + $0xfc] sm:$0xf]
      %v877 = vld [vmem:[%s346 + $0x100] sm:$0xf]
      %v878 = vld [vmem:[%s346 + $0x104] sm:$0xf]
      %v879 = vld [vmem:[%s346 + $0x108] sm:$0xf]
      %v880 = vld [vmem:[%s346 + $0x10c] sm:$0xf]
      %v881 = vld [vmem:[%s346 + $0x110] sm:$0xf]
      %v882 = vld [vmem:[%s346 + $0x114] sm:$0xf]
      %v883 = vld [vmem:[%s346 + $0x118] sm:$0xf]
      %v884 = vld [vmem:[%s346 + $0x11c] sm:$0xf]
      %v885 = vld [vmem:[%s346 + $0x120] sm:$0xf]
      %v886 = vld [vmem:[%s346 + $0x124] sm:$0xf]
      %v887 = vld [vmem:[%s346 + $0x128] sm:$0xf]
      %v888 = vld [vmem:[%s346 + $0x12c] sm:$0xf]
      %v889 = vld [vmem:[%s346 + $0x130] sm:$0xf]
      %v890 = vld [vmem:[%s346 + $0x134] sm:$0xf]
      %v891 = vld [vmem:[%s346 + $0x138] sm:$0xf]
      %v892 = vld [vmem:[%s346 + $0x13c] sm:$0xf]
      %v893 = vld [vmem:[%s346 + $0x140] sm:$0xf]
      %v894 = vld [vmem:[%s346 + $0x144] sm:$0xf]
      %v895 = vld [vmem:[%s346 + $0x148] sm:$0xf]
      %v896 = vld [vmem:[%s346 + $0x14c] sm:$0xf]
      %v897 = vld [vmem:[%s346 + $0x150] sm:$0xf]
      %v898 = vld [vmem:[%s346 + $0x154] sm:$0xf]
      %v899 = vld [vmem:[%s346 + $0x158] sm:$0xf]
      %v900 = vld [vmem:[%s346 + $0x15c] sm:$0xf]
      %v901 = vld [vmem:[%s346 + $0x160] sm:$0xf]
      %v902 = vld [vmem:[%s346 + $0x164] sm:$0xf]
      %v933 = vunpack.c.l.b16 %v873
      %v934 = vunpack.c.l.b16 %v874
      %v935 = vunpack.c.l.b16 %v875
      %v936 = vunpack.c.l.b16 %v876
      %v937 = vunpack.c.l.b16 %v877
      %v938 = vunpack.c.l.b16 %v878
      %v939 = vunpack.c.l.b16 %v879
      %v940 = vunpack.c.l.b16 %v880
      %v941 = vunpack.c.l.b16 %v881
      %v942 = vunpack.c.l.b16 %v882
      %v943 = vunpack.c.l.b16 %v883
      %v944 = vunpack.c.l.b16 %v884
      %v945 = vunpack.c.l.b16 %v885
      %v946 = vunpack.c.l.b16 %v886
      %v947 = vunpack.c.l.b16 %v887
      %v948 = vunpack.c.l.b16 %v888
      %v949 = vunpack.c.l.b16 %v889
      %v950 = vunpack.c.l.b16 %v890
      %v951 = vunpack.c.l.b16 %v891
      %v952 = vunpack.c.l.b16 %v892
      %v953 = vunpack.c.l.b16 %v893
      %v954 = vunpack.c.l.b16 %v894
      %v955 = vunpack.c.l.b16 %v895
      %v956 = vunpack.c.l.b16 %v896
      %v957 = vunpack.c.l.b16 %v897
      %v958 = vunpack.c.l.b16 %v898
      %v959 = vunpack.c.l.b16 %v899
      %v960 = vunpack.c.l.b16 %v900
      %v961 = vunpack.c.l.b16 %v901
      %v962 = vunpack.c.l.b16 %v902
      %v963 = vpack.c.b16 %v934, %v933
      %v964 = vpack.c.b16 %v936, %v935
      %v965 = vpack.c.b16 %v938, %v937
      %v966 = vpack.c.b16 %v940, %v939
      %v967 = vpack.c.b16 %v942, %v941
      %v968 = vpack.c.b16 %v944, %v943
      %v969 = vpack.c.b16 %v946, %v945
      %v970 = vpack.c.b16 %v948, %v947
      %v971 = vpack.c.b16 %v950, %v949
      %v972 = vpack.c.b16 %v952, %v951
      %v973 = vpack.c.b16 %v954, %v953
      %v974 = vpack.c.b16 %v956, %v955
      %v975 = vpack.c.b16 %v958, %v957
      %v976 = vpack.c.b16 %v960, %v959
      %v977 = vpack.c.b16 %v962, %v961
      %v979 = vsel %vm472, %v963, 0
      %v982 = vsel %vm472, %v964, 0
      %v985 = vsel %vm472, %v965, 0
      %v988 = vsel %vm472, %v966, 0
      %v991 = vsel %vm472, %v967, 0
      %v994 = vsel %vm472, %v968, 0
      %v997 = vsel %vm472, %v969, 0
      %v1000 = vsel %vm472, %v970, 0
      %v1003 = vsel %vm472, %v971, 0
      %v1006 = vsel %vm472, %v972, 0
      %v1009 = vsel %vm472, %v973, 0
      %v1012 = vsel %vm472, %v974, 0
      %v1015 = vsel %vm472, %v975, 0
      %v1018 = vsel %vm472, %v976, 0
      %v1021 = vsel %vm472, %v977, 0
      %1023 = vmatpush.bf16.msra.mxu0 0
      %1024 = vmatpush.bf16.msra.mxu0 0
      %1025 = vmatpush.bf16.msra.mxu0 0
      %1026 = vmatpush.bf16.msra.mxu0 0
      %1027 = vmatpush.bf16.msra.mxu0 0
      %1028 = vmatpush.bf16.msra.mxu0 0
      %1029 = vmatpush.bf16.msra.mxu0 %v523
      %1030 = vmatpush.bf16.msra.mxu0 %v469
      %1031 = vmatmul.bf16.gmra.mxu0 %v979
      %v1032 = vpop.f32.mrf.mxu0
      %v1033 = vadd.f32 %v384, %v1032
      %v1034 = vpop.f32.mrf.mxu0
      %v1035 = vadd.f32 %v384, %v1034
      %1036 = vmatmul.bf16.gmra.mxu0 %v982
      %v1037 = vpop.f32.mrf.mxu0
      %v1038 = vadd.f32 %v384, %v1037
      %v1039 = vpop.f32.mrf.mxu0
      %v1040 = vadd.f32 %v384, %v1039
      %1041 = vmatmul.bf16.gmra.mxu0 %v985
      %v1042 = vpop.f32.mrf.mxu0
      %v1043 = vadd.f32 %v384, %v1042
      %v1044 = vpop.f32.mrf.mxu0
      %v1045 = vadd.f32 %v384, %v1044
      %1046 = vmatmul.bf16.gmra.mxu0 %v988
      %v1047 = vpop.f32.mrf.mxu0
      %v1048 = vadd.f32 %v384, %v1047
      %v1049 = vpop.f32.mrf.mxu0
      %v1050 = vadd.f32 %v384, %v1049
      %1051 = vmatmul.bf16.gmra.mxu0 %v991
      %v1052 = vpop.f32.mrf.mxu0
      %v1053 = vadd.f32 %v384, %v1052
      %v1054 = vpop.f32.mrf.mxu0
      %v1055 = vadd.f32 %v384, %v1054
      %1056 = vmatmul.bf16.gmra.mxu0 %v994
      %v1057 = vpop.f32.mrf.mxu0
      %v1058 = vadd.f32 %v384, %v1057
      %v1059 = vpop.f32.mrf.mxu0
      %v1060 = vadd.f32 %v384, %v1059
      %1061 = vmatmul.bf16.gmra.mxu0 %v997
      %v1062 = vpop.f32.mrf.mxu0
      %v1063 = vadd.f32 %v384, %v1062
      %v1064 = vpop.f32.mrf.mxu0
      %v1065 = vadd.f32 %v384, %v1064
      %1066 = vmatmul.bf16.gmra.mxu0 %v1000
      %v1067 = vpop.f32.mrf.mxu0
      %v1068 = vadd.f32 %v384, %v1067
      %v1069 = vpop.f32.mrf.mxu0
      %v1070 = vadd.f32 %v384, %v1069
      %1071 = vmatmul.bf16.gmra.mxu0 %v1003
      %v1072 = vpop.f32.mrf.mxu0
      %v1073 = vadd.f32 %v384, %v1072
      %v1074 = vpop.f32.mrf.mxu0
      %v1075 = vadd.f32 %v384, %v1074
      %1076 = vmatmul.bf16.gmra.mxu0 %v1006
      %v1077 = vpop.f32.mrf.mxu0
      %v1078 = vadd.f32 %v384, %v1077
      %v1079 = vpop.f32.mrf.mxu0
      %v1080 = vadd.f32 %v384, %v1079
      %1081 = vmatmul.bf16.gmra.mxu0 %v1009
      %v1082 = vpop.f32.mrf.mxu0
      %v1083 = vadd.f32 %v384, %v1082
      %v1084 = vpop.f32.mrf.mxu0
      %v1085 = vadd.f32 %v384, %v1084
      %1086 = vmatmul.bf16.gmra.mxu0 %v1012
      %v1087 = vpop.f32.mrf.mxu0
      %v1088 = vadd.f32 %v384, %v1087
      %v1089 = vpop.f32.mrf.mxu0
      %v1090 = vadd.f32 %v384, %v1089
      %1091 = vmatmul.bf16.gmra.mxu0 %v1015
      %v1092 = vpop.f32.mrf.mxu0
      %v1093 = vadd.f32 %v384, %v1092
      %v1094 = vpop.f32.mrf.mxu0
      %v1095 = vadd.f32 %v384, %v1094
      %1096 = vmatmul.bf16.gmra.mxu0 %v1018
      %v1097 = vpop.f32.mrf.mxu0
      %v1098 = vadd.f32 %v384, %v1097
      %v1099 = vpop.f32.mrf.mxu0
      %v1100 = vadd.f32 %v384, %v1099
      %1101 = vmatmul.bf16.gmra.mxu0 %v1021
      %v1102 = vpop.f32.mrf.mxu0
      %v1103 = vadd.f32 %v384, %v1102
      %v1104 = vpop.f32.mrf.mxu0
      %v1105 = vadd.f32 %v384, %v1104
      %1106 = vdwg.mxu0
      %v1107 = vmax.f32 %v843, %v1033
      %v1108 = vmax.f32 %v844, %v1035
      %v1109 = vmax.f32 %v845, %v1038
      %v1110 = vmax.f32 %v846, %v1040
      %v1111 = vmax.f32 %v847, %v1043
      %v1112 = vmax.f32 %v848, %v1045
      %v1113 = vmax.f32 %v849, %v1048
      %v1114 = vmax.f32 %v850, %v1050
      %v1115 = vmax.f32 %v851, %v1053
      %v1116 = vmax.f32 %v852, %v1055
      %v1117 = vmax.f32 %v853, %v1058
      %v1118 = vmax.f32 %v854, %v1060
      %v1119 = vmax.f32 %v855, %v1063
      %v1120 = vmax.f32 %v856, %v1065
      %v1121 = vmax.f32 %v857, %v1068
      %v1122 = vmax.f32 %v858, %v1070
      %v1123 = vmax.f32 %v859, %v1073
      %v1124 = vmax.f32 %v860, %v1075
      %v1125 = vmax.f32 %v861, %v1078
      %v1126 = vmax.f32 %v862, %v1080
      %v1127 = vmax.f32 %v863, %v1083
      %v1128 = vmax.f32 %v864, %v1085
      %v1129 = vmax.f32 %v865, %v1088
      %v1130 = vmax.f32 %v866, %v1090
      %v1131 = vmax.f32 %v867, %v1093
      %v1132 = vmax.f32 %v868, %v1095
      %v1133 = vmax.f32 %v869, %v1098
      %v1134 = vmax.f32 %v870, %v1100
      %v1135 = vmax.f32 %v871, %v1103
      %v1136 = vmax.f32 %v872, %v1105
      %v1137 = vld [vmem:[%s346 + $0x168] sm:$0xf]
      %v1138 = vld [vmem:[%s346 + $0x16c] sm:$0xf]
      %v1139 = vld [vmem:[%s346 + $0x170] sm:$0xf]
      %v1140 = vld [vmem:[%s346 + $0x174] sm:$0xf]
      %v1141 = vld [vmem:[%s346 + $0x178] sm:$0xf]
      %v1142 = vld [vmem:[%s346 + $0x17c] sm:$0xf]
      %v1143 = vld [vmem:[%s346 + $0x180] sm:$0xf]
      %v1144 = vld [vmem:[%s346 + $0x184] sm:$0xf]
      %v1145 = vld [vmem:[%s346 + $0x188] sm:$0xf]
      %v1146 = vld [vmem:[%s346 + $0x18c] sm:$0xf]
      %v1147 = vld [vmem:[%s346 + $0x190] sm:$0xf]
      %v1148 = vld [vmem:[%s346 + $0x194] sm:$0xf]
      %v1149 = vld [vmem:[%s346 + $0x198] sm:$0xf]
      %v1150 = vld [vmem:[%s346 + $0x19c] sm:$0xf]
      %v1151 = vld [vmem:[%s346 + $0x1a0] sm:$0xf]
      %v1152 = vld [vmem:[%s346 + $0x1a4] sm:$0xf]
      %v1153 = vld [vmem:[%s346 + $0x1a8] sm:$0xf]
      %v1154 = vld [vmem:[%s346 + $0x1ac] sm:$0xf]
      %v1155 = vld [vmem:[%s346 + $0x1b0] sm:$0xf]
      %v1156 = vld [vmem:[%s346 + $0x1b4] sm:$0xf]
      %v1157 = vld [vmem:[%s346 + $0x1b8] sm:$0xf]
      %v1158 = vld [vmem:[%s346 + $0x1bc] sm:$0xf]
      %v1159 = vld [vmem:[%s346 + $0x1c0] sm:$0xf]
      %v1160 = vld [vmem:[%s346 + $0x1c4] sm:$0xf]
      %v1161 = vld [vmem:[%s346 + $0x1c8] sm:$0xf]
      %v1162 = vld [vmem:[%s346 + $0x1cc] sm:$0xf]
      %v1163 = vld [vmem:[%s346 + $0x1d0] sm:$0xf]
      %v1164 = vld [vmem:[%s346 + $0x1d4] sm:$0xf]
      %v1165 = vld [vmem:[%s346 + $0x1d8] sm:$0xf]
      %v1166 = vld [vmem:[%s346 + $0x1dc] sm:$0xf]
      %v1197 = vunpack.c.l.b16 %v1137
      %v1198 = vunpack.c.l.b16 %v1138
      %v1199 = vunpack.c.l.b16 %v1139
      %v1200 = vunpack.c.l.b16 %v1140
      %v1201 = vunpack.c.l.b16 %v1141
      %v1202 = vunpack.c.l.b16 %v1142
      %v1203 = vunpack.c.l.b16 %v1143
      %v1204 = vunpack.c.l.b16 %v1144
      %v1205 = vunpack.c.l.b16 %v1145
      %v1206 = vunpack.c.l.b16 %v1146
      %v1207 = vunpack.c.l.b16 %v1147
      %v1208 = vunpack.c.l.b16 %v1148
      %v1209 = vunpack.c.l.b16 %v1149
      %v1210 = vunpack.c.l.b16 %v1150
      %v1211 = vunpack.c.l.b16 %v1151
      %v1212 = vunpack.c.l.b16 %v1152
      %v1213 = vunpack.c.l.b16 %v1153
      %v1214 = vunpack.c.l.b16 %v1154
      %v1215 = vunpack.c.l.b16 %v1155
      %v1216 = vunpack.c.l.b16 %v1156
      %v1217 = vunpack.c.l.b16 %v1157
      %v1218 = vunpack.c.l.b16 %v1158
      %v1219 = vunpack.c.l.b16 %v1159
      %v1220 = vunpack.c.l.b16 %v1160
      %v1221 = vunpack.c.l.b16 %v1161
      %v1222 = vunpack.c.l.b16 %v1162
      %v1223 = vunpack.c.l.b16 %v1163
      %v1224 = vunpack.c.l.b16 %v1164
      %v1225 = vunpack.c.l.b16 %v1165
      %v1226 = vunpack.c.l.b16 %v1166
      %v1227 = vpack.c.b16 %v1198, %v1197
      %v1228 = vpack.c.b16 %v1200, %v1199
      %v1229 = vpack.c.b16 %v1202, %v1201
      %v1230 = vpack.c.b16 %v1204, %v1203
      %v1231 = vpack.c.b16 %v1206, %v1205
      %v1232 = vpack.c.b16 %v1208, %v1207
      %v1233 = vpack.c.b16 %v1210, %v1209
      %v1234 = vpack.c.b16 %v1212, %v1211
      %v1235 = vpack.c.b16 %v1214, %v1213
      %v1236 = vpack.c.b16 %v1216, %v1215
      %v1237 = vpack.c.b16 %v1218, %v1217
      %v1238 = vpack.c.b16 %v1220, %v1219
      %v1239 = vpack.c.b16 %v1222, %v1221
      %v1240 = vpack.c.b16 %v1224, %v1223
      %v1241 = vpack.c.b16 %v1226, %v1225
      %v1243 = vsel %vm472, %v1227, 0
      %v1246 = vsel %vm472, %v1228, 0
      %v1249 = vsel %vm472, %v1229, 0
      %v1252 = vsel %vm472, %v1230, 0
      %v1255 = vsel %vm472, %v1231, 0
      %v1258 = vsel %vm472, %v1232, 0
      %v1261 = vsel %vm472, %v1233, 0
      %v1264 = vsel %vm472, %v1234, 0
      %v1267 = vsel %vm472, %v1235, 0
      %v1270 = vsel %vm472, %v1236, 0
      %v1273 = vsel %vm472, %v1237, 0
      %v1276 = vsel %vm472, %v1238, 0
      %v1279 = vsel %vm472, %v1239, 0
      %v1282 = vsel %vm472, %v1240, 0
      %v1285 = vsel %vm472, %v1241, 0
      %1287 = vmatpush.bf16.msra.mxu0 0
      %1288 = vmatpush.bf16.msra.mxu0 0
      %1289 = vmatpush.bf16.msra.mxu0 0
      %1290 = vmatpush.bf16.msra.mxu0 0
      %1291 = vmatpush.bf16.msra.mxu0 0
      %1292 = vmatpush.bf16.msra.mxu0 0
      %1293 = vmatpush.bf16.msra.mxu0 %v523
      %1294 = vmatpush.bf16.msra.mxu0 %v469
      %1295 = vmatmul.bf16.gmra.mxu0 %v1243
      %v1296 = vpop.f32.mrf.mxu0
      %v1297 = vadd.f32 %v384, %v1296
      %v1298 = vpop.f32.mrf.mxu0
      %v1299 = vadd.f32 %v384, %v1298
      %1300 = vmatmul.bf16.gmra.mxu0 %v1246
      %v1301 = vpop.f32.mrf.mxu0
      %v1302 = vadd.f32 %v384, %v1301
      %v1303 = vpop.f32.mrf.mxu0
      %v1304 = vadd.f32 %v384, %v1303
      %1305 = vmatmul.bf16.gmra.mxu0 %v1249
      %v1306 = vpop.f32.mrf.mxu0
      %v1307 = vadd.f32 %v384, %v1306
      %v1308 = vpop.f32.mrf.mxu0
      %v1309 = vadd.f32 %v384, %v1308
      %1310 = vmatmul.bf16.gmra.mxu0 %v1252
      %v1311 = vpop.f32.mrf.mxu0
      %v1312 = vadd.f32 %v384, %v1311
      %v1313 = vpop.f32.mrf.mxu0
      %v1314 = vadd.f32 %v384, %v1313
      %1315 = vmatmul.bf16.gmra.mxu0 %v1255
      %v1316 = vpop.f32.mrf.mxu0
      %v1317 = vadd.f32 %v384, %v1316
      %v1318 = vpop.f32.mrf.mxu0
      %v1319 = vadd.f32 %v384, %v1318
      %1320 = vmatmul.bf16.gmra.mxu0 %v1258
      %v1321 = vpop.f32.mrf.mxu0
      %v1322 = vadd.f32 %v384, %v1321
      %v1323 = vpop.f32.mrf.mxu0
      %v1324 = vadd.f32 %v384, %v1323
      %1325 = vmatmul.bf16.gmra.mxu0 %v1261
      %v1326 = vpop.f32.mrf.mxu0
      %v1327 = vadd.f32 %v384, %v1326
      %v1328 = vpop.f32.mrf.mxu0
      %v1329 = vadd.f32 %v384, %v1328
      %1330 = vmatmul.bf16.gmra.mxu0 %v1264
      %v1331 = vpop.f32.mrf.mxu0
      %v1332 = vadd.f32 %v384, %v1331
      %v1333 = vpop.f32.mrf.mxu0
      %v1334 = vadd.f32 %v384, %v1333
      %1335 = vmatmul.bf16.gmra.mxu0 %v1267
      %v1336 = vpop.f32.mrf.mxu0
      %v1337 = vadd.f32 %v384, %v1336
      %v1338 = vpop.f32.mrf.mxu0
      %v1339 = vadd.f32 %v384, %v1338
      %1340 = vmatmul.bf16.gmra.mxu0 %v1270
      %v1341 = vpop.f32.mrf.mxu0
      %v1342 = vadd.f32 %v384, %v1341
      %v1343 = vpop.f32.mrf.mxu0
      %v1344 = vadd.f32 %v384, %v1343
      %1345 = vmatmul.bf16.gmra.mxu0 %v1273
      %v1346 = vpop.f32.mrf.mxu0
      %v1347 = vadd.f32 %v384, %v1346
      %v1348 = vpop.f32.mrf.mxu0
      %v1349 = vadd.f32 %v384, %v1348
      %1350 = vmatmul.bf16.gmra.mxu0 %v1276
      %v1351 = vpop.f32.mrf.mxu0
      %v1352 = vadd.f32 %v384, %v1351
      %v1353 = vpop.f32.mrf.mxu0
      %v1354 = vadd.f32 %v384, %v1353
      %1355 = vmatmul.bf16.gmra.mxu0 %v1279
      %v1356 = vpop.f32.mrf.mxu0
      %v1357 = vadd.f32 %v384, %v1356
      %v1358 = vpop.f32.mrf.mxu0
      %v1359 = vadd.f32 %v384, %v1358
      %1360 = vmatmul.bf16.gmra.mxu0 %v1282
      %v1361 = vpop.f32.mrf.mxu0
      %v1362 = vadd.f32 %v384, %v1361
      %v1363 = vpop.f32.mrf.mxu0
      %v1364 = vadd.f32 %v384, %v1363
      %1365 = vmatmul.bf16.gmra.mxu0 %v1285
      %v1366 = vpop.f32.mrf.mxu0
      %v1367 = vadd.f32 %v384, %v1366
      %v1368 = vpop.f32.mrf.mxu0
      %v1369 = vadd.f32 %v384, %v1368
      %1370 = vdwg.mxu0
      %v1371 = vmax.f32 %v1107, %v1297
      %v1372 = vmax.f32 %v1108, %v1299
      %v1373 = vmax.f32 %v1109, %v1302
      %v1374 = vmax.f32 %v1110, %v1304
      %v1375 = vmax.f32 %v1111, %v1307
      %v1376 = vmax.f32 %v1112, %v1309
      %v1377 = vmax.f32 %v1113, %v1312
      %v1378 = vmax.f32 %v1114, %v1314
      %v1379 = vmax.f32 %v1115, %v1317
      %v1380 = vmax.f32 %v1116, %v1319
      %v1381 = vmax.f32 %v1117, %v1322
      %v1382 = vmax.f32 %v1118, %v1324
      %v1383 = vmax.f32 %v1119, %v1327
      %v1384 = vmax.f32 %v1120, %v1329
      %v1385 = vmax.f32 %v1121, %v1332
      %v1386 = vmax.f32 %v1122, %v1334
      %v1387 = vmax.f32 %v1123, %v1337
      %v1388 = vmax.f32 %v1124, %v1339
      %v1389 = vmax.f32 %v1125, %v1342
      %v1390 = vmax.f32 %v1126, %v1344
      %v1391 = vmax.f32 %v1127, %v1347
      %v1392 = vmax.f32 %v1128, %v1349
      %v1393 = vmax.f32 %v1129, %v1352
      %v1394 = vmax.f32 %v1130, %v1354
      %v1395 = vmax.f32 %v1131, %v1357
      %v1396 = vmax.f32 %v1132, %v1359
      %v1397 = vmax.f32 %v1133, %v1362
      %v1398 = vmax.f32 %v1134, %v1364
      %v1399 = vmax.f32 %v1135, %v1367
      %v1400 = vmax.f32 %v1136, %v1369
      %vm1401 = vcmask 261120
      %1402 = vst.msk [vmem:[#allocation2] sm:$0xff] %vm1401, %v1371
      %1403 = vst.msk [vmem:[#allocation2 + $0x8] sm:$0xff] %vm1401, %v1372
      %1404 = vst.msk [vmem:[#allocation2 + $0x10] sm:$0xff] %vm1401, %v1373
      %1405 = vst.msk [vmem:[#allocation2 + $0x18] sm:$0xff] %vm1401, %v1374
      %1406 = vst.msk [vmem:[#allocation2 + $0x20] sm:$0xff] %vm1401, %v1375
      %1407 = vst.msk [vmem:[#allocation2 + $0x28] sm:$0xff] %vm1401, %v1376
      %1408 = vst.msk [vmem:[#allocation2 + $0x30] sm:$0xff] %vm1401, %v1377
      %1409 = vst.msk [vmem:[#allocation2 + $0x38] sm:$0xff] %vm1401, %v1378
      %1410 = vst.msk [vmem:[#allocation2 + $0x40] sm:$0xff] %vm1401, %v1379
      %1411 = vst.msk [vmem:[#allocation2 + $0x48] sm:$0xff] %vm1401, %v1380
      %1412 = vst.msk [vmem:[#allocation2 + $0x50] sm:$0xff] %vm1401, %v1381
      %1413 = vst.msk [vmem:[#allocation2 + $0x58] sm:$0xff] %vm1401, %v1382
      %1414 = vst.msk [vmem:[#allocation2 + $0x60] sm:$0xff] %vm1401, %v1383
      %1415 = vst.msk [vmem:[#allocation2 + $0x68] sm:$0xff] %vm1401, %v1384
      %1416 = vst.msk [vmem:[#allocation2 + $0x70] sm:$0xff] %vm1401, %v1385
      %1417 = vst.msk [vmem:[#allocation2 + $0x78] sm:$0xff] %vm1401, %v1386
      %1418 = vst.msk [vmem:[#allocation2 + $0x80] sm:$0xff] %vm1401, %v1387
      %1419 = vst.msk [vmem:[#allocation2 + $0x88] sm:$0xff] %vm1401, %v1388
      %1420 = vst.msk [vmem:[#allocation2 + $0x90] sm:$0xff] %vm1401, %v1389
      %1421 = vst.msk [vmem:[#allocation2 + $0x98] sm:$0xff] %vm1401, %v1390
      %1422 = vst.msk [vmem:[#allocation2 + $0xa0] sm:$0xff] %vm1401, %v1391
      %1423 = vst.msk [vmem:[#allocation2 + $0xa8] sm:$0xff] %vm1401, %v1392
      %1424 = vst.msk [vmem:[#allocation2 + $0xb0] sm:$0xff] %vm1401, %v1393
      %1425 = vst.msk [vmem:[#allocation2 + $0xb8] sm:$0xff] %vm1401, %v1394
      %1426 = vst.msk [vmem:[#allocation2 + $0xc0] sm:$0xff] %vm1401, %v1395
      %1427 = vst.msk [vmem:[#allocation2 + $0xc8] sm:$0xff] %vm1401, %v1396
      %1428 = vst.msk [vmem:[#allocation2 + $0xd0] sm:$0xff] %vm1401, %v1397
      %1429 = vst.msk [vmem:[#allocation2 + $0xd8] sm:$0xff] %vm1401, %v1398
      %1430 = vst.msk [vmem:[#allocation2 + $0xe0] sm:$0xff] %vm1401, %v1399
      %1431 = vst.msk [vmem:[#allocation2 + $0xe8] sm:$0xff] %vm1401, %v1400
      %v1432 = vld [vmem:[#allocation2] sm:$0xff]
      %v1433 = vld [vmem:[#allocation2 + $0x8] sm:$0xff]
      %v1434 = vld [vmem:[#allocation2 + $0x10] sm:$0xff]
      %v1435 = vld [vmem:[#allocation2 + $0x18] sm:$0xff]
      %v1436 = vld [vmem:[#allocation2 + $0x20] sm:$0xff]
      %v1437 = vld [vmem:[#allocation2 + $0x28] sm:$0xff]
      %v1438 = vld [vmem:[#allocation2 + $0x30] sm:$0xff]
      %v1439 = vld [vmem:[#allocation2 + $0x38] sm:$0xff]
      %v1440 = vld [vmem:[#allocation2 + $0x40] sm:$0xff]
      %v1441 = vld [vmem:[#allocation2 + $0x48] sm:$0xff]
      %v1442 = vld [vmem:[#allocation2 + $0x50] sm:$0xff]
      %v1443 = vld [vmem:[#allocation2 + $0x58] sm:$0xff]
      %v1444 = vld [vmem:[#allocation2 + $0x60] sm:$0xff]
      %v1445 = vld [vmem:[#allocation2 + $0x68] sm:$0xff]
      %v1446 = vld [vmem:[#allocation2 + $0x70] sm:$0xff]
      %v1447 = vld [vmem:[#allocation2 + $0x78] sm:$0xff]
      %v1448 = vld [vmem:[#allocation2 + $0x80] sm:$0xff]
      %v1449 = vld [vmem:[#allocation2 + $0x88] sm:$0xff]
      %v1450 = vld [vmem:[#allocation2 + $0x90] sm:$0xff]
      %v1451 = vld [vmem:[#allocation2 + $0x98] sm:$0xff]
      %v1452 = vld [vmem:[#allocation2 + $0xa0] sm:$0x1]
      %v1453 = vpack.c.bf16 %v1433, %v1432
      %v1454 = vpack.c.bf16 %v1435, %v1434
      %v1455 = vpack.c.bf16 %v1437, %v1436
      %v1456 = vpack.c.bf16 %v1439, %v1438
      %v1457 = vpack.c.bf16 %v1441, %v1440
      %v1458 = vpack.c.bf16 %v1443, %v1442
      %v1459 = vpack.c.bf16 %v1445, %v1444
      %v1460 = vpack.c.bf16 %v1447, %v1446
      %v1461 = vpack.c.bf16 %v1449, %v1448
      %v1462 = vpack.c.bf16 %v1451, %v1450
      %v1463 = vpack.c.bf16 %v1452, %v1452
      %v1464 = vld [vmem:[%s3] sm:$0xf]
      %v1465 = vld [vmem:[%s3 + $0x4] sm:$0xf]
      %v1466 = vld [vmem:[%s3 + $0x8] sm:$0xf]
      %v1467 = vld [vmem:[%s3 + $0xc] sm:$0xf]
      %v1468 = vld [vmem:[#allocation2 + $0x1] sm:$0xff]
      %v1469 = vld [vmem:[#allocation2 + $0x9] sm:$0xff]
      %v1470 = vld [vmem:[#allocation2 + $0x11] sm:$0xff]
      %v1471 = vld [vmem:[#allocation2 + $0x19] sm:$0xff]
      %v1472 = vld [vmem:[#allocation2 + $0x21] sm:$0xff]
      %v1473 = vld [vmem:[#allocation2 + $0x29] sm:$0xff]
      %v1474 = vld [vmem:[#allocation2 + $0x31] sm:$0xff]
      %v1475 = vld [vmem:[#allocation2 + $0x39] sm:$0xff]
      %v1476 = vld [vmem:[#allocation2 + $0x41] sm:$0xff]
      %v1477 = vld [vmem:[#allocation2 + $0x49] sm:$0xff]
      %v1478 = vld [vmem:[#allocation2 + $0x51] sm:$0xff]
      %v1479 = vld [vmem:[#allocation2 + $0x59] sm:$0xff]
      %v1480 = vld [vmem:[#allocation2 + $0x61] sm:$0xff]
      %v1481 = vld [vmem:[#allocation2 + $0x69] sm:$0xff]
      %v1482 = vld [vmem:[#allocation2 + $0x71] sm:$0xff]
      %v1483 = vld [vmem:[#allocation2 + $0x79] sm:$0xff]
      %v1484 = vld [vmem:[#allocation2 + $0x81] sm:$0xff]
      %v1485 = vld [vmem:[#allocation2 + $0x89] sm:$0xff]
      %v1486 = vld [vmem:[#allocation2 + $0x91] sm:$0xff]
      %v1487 = vld [vmem:[#allocation2 + $0x99] sm:$0xff]
      %v1488 = vld [vmem:[#allocation2 + $0xa1] sm:$0x1]
      %v1489 = vpack.c.bf16 %v1469, %v1468
      %v1490 = vpack.c.bf16 %v1471, %v1470
      %v1491 = vpack.c.bf16 %v1473, %v1472
      %v1492 = vpack.c.bf16 %v1475, %v1474
      %v1493 = vpack.c.bf16 %v1477, %v1476
      %v1494 = vpack.c.bf16 %v1479, %v1478
      %v1495 = vpack.c.bf16 %v1481, %v1480
      %v1496 = vpack.c.bf16 %v1483, %v1482
      %v1497 = vpack.c.bf16 %v1485, %v1484
      %v1498 = vpack.c.bf16 %v1487, %v1486
      %v1499 = vpack.c.bf16 %v1488, %v1488
      %v1500 = vld [vmem:[%s3 + $0x10] sm:$0xf]
      %v1501 = vld [vmem:[%s3 + $0x14] sm:$0xf]
      %v1502 = vld [vmem:[%s3 + $0x18] sm:$0xf]
      %v1503 = vld [vmem:[%s3 + $0x1c] sm:$0xf]
      %v1508 = vunpack.c.l.b16 %v1500
      %v1509 = vunpack.c.l.b16 %v1501
      %v1510 = vunpack.c.l.b16 %v1502
      %v1511 = vunpack.c.l.b16 %v1503
      %v1512 = vpack.c.b16 %v1509, %v1508
      %v1513 = vpack.c.b16 %v1511, %v1510
      %v1517 = vsel %vm1401, %v1489, 0
      %v1520 = vsel %vm1401, %v1490, 0
      %v1523 = vsel %vm1401, %v1491, 0
      %v1526 = vsel %vm1401, %v1492, 0
      %v1529 = vsel %vm1401, %v1493, 0
      %v1532 = vsel %vm1401, %v1494, 0
      %v1535 = vsel %vm1401, %v1495, 0
      %v1538 = vsel %vm1401, %v1496, 0
      %v1541 = vsel %vm1401, %v1497, 0
      %v1544 = vsel %vm1401, %v1498, 0
      %v1547 = vsel %vm1401, %v1499, 0
      %1549 = vmatpush.bf16.msra.mxu0 0
      %1550 = vmatpush.bf16.msra.mxu0 0
      %1551 = vmatpush.bf16.msra.mxu0 0
      %1552 = vmatpush.bf16.msra.mxu0 0
      %1553 = vmatpush.bf16.msra.mxu0 0
      %1554 = vmatpush.bf16.msra.mxu0 0
      %1555 = vmatpush.bf16.msra.mxu0 %v1513
      %1556 = vmatpush.bf16.msra.mxu0 %v1512
      %1557 = vmatmul.bf16.gmra.mxu0 %v1517
      %v1558 = vpop.f32.mrf.mxu0
      %v1559 = vadd.f32 0.0, %v1558
      %v1560 = vpop.f32.mrf.mxu0
      %v1561 = vadd.f32 0.0, %v1560
      %1562 = vmatmul.bf16.gmra.mxu0 %v1520
      %v1563 = vpop.f32.mrf.mxu0
      %v1564 = vadd.f32 0.0, %v1563
      %v1565 = vpop.f32.mrf.mxu0
      %v1566 = vadd.f32 0.0, %v1565
      %1567 = vmatmul.bf16.gmra.mxu0 %v1523
      %v1568 = vpop.f32.mrf.mxu0
      %v1569 = vadd.f32 0.0, %v1568
      %v1570 = vpop.f32.mrf.mxu0
      %v1571 = vadd.f32 0.0, %v1570
      %1572 = vmatmul.bf16.gmra.mxu0 %v1526
      %v1573 = vpop.f32.mrf.mxu0
      %v1574 = vadd.f32 0.0, %v1573
      %v1575 = vpop.f32.mrf.mxu0
      %v1576 = vadd.f32 0.0, %v1575
      %1577 = vmatmul.bf16.gmra.mxu0 %v1529
      %v1578 = vpop.f32.mrf.mxu0
      %v1579 = vadd.f32 0.0, %v1578
      %v1580 = vpop.f32.mrf.mxu0
      %v1581 = vadd.f32 0.0, %v1580
      %1582 = vmatmul.bf16.gmra.mxu0 %v1532
      %v1583 = vpop.f32.mrf.mxu0
      %v1584 = vadd.f32 0.0, %v1583
      %v1585 = vpop.f32.mrf.mxu0
      %v1586 = vadd.f32 0.0, %v1585
      %1587 = vmatmul.bf16.gmra.mxu0 %v1535
      %v1588 = vpop.f32.mrf.mxu0
      %v1589 = vadd.f32 0.0, %v1588
      %v1590 = vpop.f32.mrf.mxu0
      %v1591 = vadd.f32 0.0, %v1590
      %1592 = vmatmul.bf16.gmra.mxu0 %v1538
      %v1593 = vpop.f32.mrf.mxu0
      %v1594 = vadd.f32 0.0, %v1593
      %v1595 = vpop.f32.mrf.mxu0
      %v1596 = vadd.f32 0.0, %v1595
      %1597 = vmatmul.bf16.gmra.mxu0 %v1541
      %v1598 = vpop.f32.mrf.mxu0
      %v1599 = vadd.f32 0.0, %v1598
      %v1600 = vpop.f32.mrf.mxu0
      %v1601 = vadd.f32 0.0, %v1600
      %1602 = vmatmul.bf16.gmra.mxu0 %v1544
      %v1603 = vpop.f32.mrf.mxu0
      %v1604 = vadd.f32 0.0, %v1603
      %v1605 = vpop.f32.mrf.mxu0
      %v1606 = vadd.f32 0.0, %v1605
      %1607 = vmatmul.bf16.gmra.mxu0 %v1547
      %v1608 = vpop.f32.mrf.mxu0
      %v1609 = vadd.f32 0.0, %v1608
      %v1610 = vpop.f32.mrf.mxu0
      %1611 = vdwg.mxu0
      %v1616 = vunpack.c.l.b16 %v1464
      %v1617 = vunpack.c.l.b16 %v1465
      %v1618 = vunpack.c.l.b16 %v1466
      %v1619 = vunpack.c.l.b16 %v1467
      %v1620 = vpack.c.b16 %v1617, %v1616
      %v1621 = vpack.c.b16 %v1619, %v1618
      %v1625 = vsel %vm1401, %v1453, 0
      %v1628 = vsel %vm1401, %v1454, 0
      %v1631 = vsel %vm1401, %v1455, 0
      %v1634 = vsel %vm1401, %v1456, 0
      %v1637 = vsel %vm1401, %v1457, 0
      %v1640 = vsel %vm1401, %v1458, 0
      %v1643 = vsel %vm1401, %v1459, 0
      %v1646 = vsel %vm1401, %v1460, 0
      %v1649 = vsel %vm1401, %v1461, 0
      %v1652 = vsel %vm1401, %v1462, 0
      %v1655 = vsel %vm1401, %v1463, 0
      %1657 = vmatpush.bf16.msra.mxu0 0
      %1658 = vmatpush.bf16.msra.mxu0 0
      %1659 = vmatpush.bf16.msra.mxu0 0
      %1660 = vmatpush.bf16.msra.mxu0 0
      %1661 = vmatpush.bf16.msra.mxu0 0
      %1662 = vmatpush.bf16.msra.mxu0 0
      %1663 = vmatpush.bf16.msra.mxu0 %v1621
      %1664 = vmatpush.bf16.msra.mxu0 %v1620
      %1665 = vmatmul.bf16.gmra.mxu0 %v1625
      %v1666 = vpop.f32.mrf.mxu0
      %v1667 = vadd.f32 %v1559, %v1666
      %v1668 = vpop.f32.mrf.mxu0
      %v1669 = vadd.f32 %v1561, %v1668
      %1670 = vmatmul.bf16.gmra.mxu0 %v1628
      %v1671 = vpop.f32.mrf.mxu0
      %v1672 = vadd.f32 %v1564, %v1671
      %v1673 = vpop.f32.mrf.mxu0
      %v1674 = vadd.f32 %v1566, %v1673
      %1675 = vmatmul.bf16.gmra.mxu0 %v1631
      %v1676 = vpop.f32.mrf.mxu0
      %v1677 = vadd.f32 %v1569, %v1676
      %v1678 = vpop.f32.mrf.mxu0
      %v1679 = vadd.f32 %v1571, %v1678
      %1680 = vmatmul.bf16.gmra.mxu0 %v1634
      %v1681 = vpop.f32.mrf.mxu0
      %v1682 = vadd.f32 %v1574, %v1681
      %v1683 = vpop.f32.mrf.mxu0
      %v1684 = vadd.f32 %v1576, %v1683
      %1685 = vmatmul.bf16.gmra.mxu0 %v1637
      %v1686 = vpop.f32.mrf.mxu0
      %v1687 = vadd.f32 %v1579, %v1686
      %v1688 = vpop.f32.mrf.mxu0
      %v1689 = vadd.f32 %v1581, %v1688
      %1690 = vmatmul.bf16.gmra.mxu0 %v1640
      %v1691 = vpop.f32.mrf.mxu0
      %v1692 = vadd.f32 %v1584, %v1691
      %v1693 = vpop.f32.mrf.mxu0
      %v1694 = vadd.f32 %v1586, %v1693
      %1695 = vmatmul.bf16.gmra.mxu0 %v1643
      %v1696 = vpop.f32.mrf.mxu0
      %v1697 = vadd.f32 %v1589, %v1696
      %v1698 = vpop.f32.mrf.mxu0
      %v1699 = vadd.f32 %v1591, %v1698
      %1700 = vmatmul.bf16.gmra.mxu0 %v1646
      %v1701 = vpop.f32.mrf.mxu0
      %v1702 = vadd.f32 %v1594, %v1701
      %v1703 = vpop.f32.mrf.mxu0
      %v1704 = vadd.f32 %v1596, %v1703
      %1705 = vmatmul.bf16.gmra.mxu0 %v1649
      %v1706 = vpop.f32.mrf.mxu0
      %v1707 = vadd.f32 %v1599, %v1706
      %v1708 = vpop.f32.mrf.mxu0
      %v1709 = vadd.f32 %v1601, %v1708
      %1710 = vmatmul.bf16.gmra.mxu0 %v1652
      %v1711 = vpop.f32.mrf.mxu0
      %v1712 = vadd.f32 %v1604, %v1711
      %v1713 = vpop.f32.mrf.mxu0
      %v1714 = vadd.f32 %v1606, %v1713
      %1715 = vmatmul.bf16.gmra.mxu0 %v1655
      %v1716 = vpop.f32.mrf.mxu0
      %v1717 = vadd.f32 %v1609, %v1716
      %v1718 = vpop.f32.mrf.mxu0
      %1719 = vdwg.mxu0
      %v1720 = vld [vmem:[#allocation2 + $0x2] sm:$0xff]
      %v1721 = vld [vmem:[#allocation2 + $0xa] sm:$0xff]
      %v1722 = vld [vmem:[#allocation2 + $0x12] sm:$0xff]
      %v1723 = vld [vmem:[#allocation2 + $0x1a] sm:$0xff]
      %v1724 = vld [vmem:[#allocation2 + $0x22] sm:$0xff]
      %v1725 = vld [vmem:[#allocation2 + $0x2a] sm:$0xff]
      %v1726 = vld [vmem:[#allocation2 + $0x32] sm:$0xff]
      %v1727 = vld [vmem:[#allocation2 + $0x3a] sm:$0xff]
      %v1728 = vld [vmem:[#allocation2 + $0x42] sm:$0xff]
      %v1729 = vld [vmem:[#allocation2 + $0x4a] sm:$0xff]
      %v1730 = vld [vmem:[#allocation2 + $0x52] sm:$0xff]
      %v1731 = vld [vmem:[#allocation2 + $0x5a] sm:$0xff]
      %v1732 = vld [vmem:[#allocation2 + $0x62] sm:$0xff]
      %v1733 = vld [vmem:[#allocation2 + $0x6a] sm:$0xff]
      %v1734 = vld [vmem:[#allocation2 + $0x72] sm:$0xff]
      %v1735 = vld [vmem:[#allocation2 + $0x7a] sm:$0xff]
      %v1736 = vld [vmem:[#allocation2 + $0x82] sm:$0xff]
      %v1737 = vld [vmem:[#allocation2 + $0x8a] sm:$0xff]
      %v1738 = vld [vmem:[#allocation2 + $0x92] sm:$0xff]
      %v1739 = vld [vmem:[#allocation2 + $0x9a] sm:$0xff]
      %v1740 = vld [vmem:[#allocation2 + $0xa2] sm:$0x1]
      %v1741 = vpack.c.bf16 %v1721, %v1720
      %v1742 = vpack.c.bf16 %v1723, %v1722
      %v1743 = vpack.c.bf16 %v1725, %v1724
      %v1744 = vpack.c.bf16 %v1727, %v1726
      %v1745 = vpack.c.bf16 %v1729, %v1728
      %v1746 = vpack.c.bf16 %v1731, %v1730
      %v1747 = vpack.c.bf16 %v1733, %v1732
      %v1748 = vpack.c.bf16 %v1735, %v1734
      %v1749 = vpack.c.bf16 %v1737, %v1736
      %v1750 = vpack.c.bf16 %v1739, %v1738
      %v1751 = vpack.c.bf16 %v1740, %v1740
      %v1752 = vld [vmem:[%s3 + $0x20] sm:$0xf]
      %v1753 = vld [vmem:[%s3 + $0x24] sm:$0xf]
      %v1754 = vld [vmem:[%s3 + $0x28] sm:$0xf]
      %v1755 = vld [vmem:[%s3 + $0x2c] sm:$0xf]
      %v1760 = vunpack.c.l.b16 %v1752
      %v1761 = vunpack.c.l.b16 %v1753
      %v1762 = vunpack.c.l.b16 %v1754
      %v1763 = vunpack.c.l.b16 %v1755
      %v1764 = vpack.c.b16 %v1761, %v1760
      %v1765 = vpack.c.b16 %v1763, %v1762
      %v1769 = vsel %vm1401, %v1741, 0
      %v1772 = vsel %vm1401, %v1742, 0
      %v1775 = vsel %vm1401, %v1743, 0
      %v1778 = vsel %vm1401, %v1744, 0
      %v1781 = vsel %vm1401, %v1745, 0
      %v1784 = vsel %vm1401, %v1746, 0
      %v1787 = vsel %vm1401, %v1747, 0
      %v1790 = vsel %vm1401, %v1748, 0
      %v1793 = vsel %vm1401, %v1749, 0
      %v1796 = vsel %vm1401, %v1750, 0
      %v1799 = vsel %vm1401, %v1751, 0
      %1801 = vmatpush.bf16.msra.mxu0 0
      %1802 = vmatpush.bf16.msra.mxu0 0
      %1803 = vmatpush.bf16.msra.mxu0 0
      %1804 = vmatpush.bf16.msra.mxu0 0
      %1805 = vmatpush.bf16.msra.mxu0 0
      %1806 = vmatpush.bf16.msra.mxu0 0
      %1807 = vmatpush.bf16.msra.mxu0 %v1765
      %1808 = vmatpush.bf16.msra.mxu0 %v1764
      %1809 = vmatmul.bf16.gmra.mxu0 %v1769
      %v1810 = vpop.f32.mrf.mxu0
      %v1811 = vadd.f32 0.0, %v1810
      %v1812 = vpop.f32.mrf.mxu0
      %v1813 = vadd.f32 0.0, %v1812
      %1814 = vmatmul.bf16.gmra.mxu0 %v1772
      %v1815 = vpop.f32.mrf.mxu0
      %v1816 = vadd.f32 0.0, %v1815
      %v1817 = vpop.f32.mrf.mxu0
      %v1818 = vadd.f32 0.0, %v1817
      %1819 = vmatmul.bf16.gmra.mxu0 %v1775
      %v1820 = vpop.f32.mrf.mxu0
      %v1821 = vadd.f32 0.0, %v1820
      %v1822 = vpop.f32.mrf.mxu0
      %v1823 = vadd.f32 0.0, %v1822
      %1824 = vmatmul.bf16.gmra.mxu0 %v1778
      %v1825 = vpop.f32.mrf.mxu0
      %v1826 = vadd.f32 0.0, %v1825
      %v1827 = vpop.f32.mrf.mxu0
      %v1828 = vadd.f32 0.0, %v1827
      %1829 = vmatmul.bf16.gmra.mxu0 %v1781
      %v1830 = vpop.f32.mrf.mxu0
      %v1831 = vadd.f32 0.0, %v1830
      %v1832 = vpop.f32.mrf.mxu0
      %v1833 = vadd.f32 0.0, %v1832
      %1834 = vmatmul.bf16.gmra.mxu0 %v1784
      %v1835 = vpop.f32.mrf.mxu0
      %v1836 = vadd.f32 0.0, %v1835
      %v1837 = vpop.f32.mrf.mxu0
      %v1838 = vadd.f32 0.0, %v1837
      %1839 = vmatmul.bf16.gmra.mxu0 %v1787
      %v1840 = vpop.f32.mrf.mxu0
      %v1841 = vadd.f32 0.0, %v1840
      %v1842 = vpop.f32.mrf.mxu0
      %v1843 = vadd.f32 0.0, %v1842
      %1844 = vmatmul.bf16.gmra.mxu0 %v1790
      %v1845 = vpop.f32.mrf.mxu0
      %v1846 = vadd.f32 0.0, %v1845
      %v1847 = vpop.f32.mrf.mxu0
      %v1848 = vadd.f32 0.0, %v1847
      %1849 = vmatmul.bf16.gmra.mxu0 %v1793
      %v1850 = vpop.f32.mrf.mxu0
      %v1851 = vadd.f32 0.0, %v1850
      %v1852 = vpop.f32.mrf.mxu0
      %v1853 = vadd.f32 0.0, %v1852
      %1854 = vmatmul.bf16.gmra.mxu0 %v1796
      %v1855 = vpop.f32.mrf.mxu0
      %v1856 = vadd.f32 0.0, %v1855
      %v1857 = vpop.f32.mrf.mxu0
      %v1858 = vadd.f32 0.0, %v1857
      %1859 = vmatmul.bf16.gmra.mxu0 %v1799
      %v1860 = vpop.f32.mrf.mxu0
      %v1861 = vadd.f32 0.0, %v1860
      %v1862 = vpop.f32.mrf.mxu0
      %1863 = vdwg.mxu0
      %v1864 = vadd.f32 %v1667, %v1811
      %v1865 = vadd.f32 %v1669, %v1813
      %v1866 = vadd.f32 %v1672, %v1816
      %v1867 = vadd.f32 %v1674, %v1818
      %v1868 = vadd.f32 %v1677, %v1821
      %v1869 = vadd.f32 %v1679, %v1823
      %v1870 = vadd.f32 %v1682, %v1826
      %v1871 = vadd.f32 %v1684, %v1828
      %v1872 = vadd.f32 %v1687, %v1831
      %v1873 = vadd.f32 %v1689, %v1833
      %v1874 = vadd.f32 %v1692, %v1836
      %v1875 = vadd.f32 %v1694, %v1838
      %v1876 = vadd.f32 %v1697, %v1841
      %v1877 = vadd.f32 %v1699, %v1843
      %v1878 = vadd.f32 %v1702, %v1846
      %v1879 = vadd.f32 %v1704, %v1848
      %v1880 = vadd.f32 %v1707, %v1851
      %v1881 = vadd.f32 %v1709, %v1853
      %v1882 = vadd.f32 %v1712, %v1856
      %v1883 = vadd.f32 %v1714, %v1858
      %v1884 = vadd.f32 %v1717, %v1861
      %v1885 = vld [vmem:[#allocation2 + $0x3] sm:$0xff]
      %v1886 = vld [vmem:[#allocation2 + $0xb] sm:$0xff]
      %v1887 = vld [vmem:[#allocation2 + $0x13] sm:$0xff]
      %v1888 = vld [vmem:[#allocation2 + $0x1b] sm:$0xff]
      %v1889 = vld [vmem:[#allocation2 + $0x23] sm:$0xff]
      %v1890 = vld [vmem:[#allocation2 + $0x2b] sm:$0xff]
      %v1891 = vld [vmem:[#allocation2 + $0x33] sm:$0xff]
      %v1892 = vld [vmem:[#allocation2 + $0x3b] sm:$0xff]
      %v1893 = vld [vmem:[#allocation2 + $0x43] sm:$0xff]
      %v1894 = vld [vmem:[#allocation2 + $0x4b] sm:$0xff]
      %v1895 = vld [vmem:[#allocation2 + $0x53] sm:$0xff]
      %v1896 = vld [vmem:[#allocation2 + $0x5b] sm:$0xff]
      %v1897 = vld [vmem:[#allocation2 + $0x63] sm:$0xff]
      %v1898 = vld [vmem:[#allocation2 + $0x6b] sm:$0xff]
      %v1899 = vld [vmem:[#allocation2 + $0x73] sm:$0xff]
      %v1900 = vld [vmem:[#allocation2 + $0x7b] sm:$0xff]
      %v1901 = vld [vmem:[#allocation2 + $0x83] sm:$0xff]
      %v1902 = vld [vmem:[#allocation2 + $0x8b] sm:$0xff]
      %v1903 = vld [vmem:[#allocation2 + $0x93] sm:$0xff]
      %v1904 = vld [vmem:[#allocation2 + $0x9b] sm:$0xff]
      %v1905 = vld [vmem:[#allocation2 + $0xa3] sm:$0x1]
      %v1906 = vpack.c.bf16 %v1886, %v1885
      %v1907 = vpack.c.bf16 %v1888, %v1887
      %v1908 = vpack.c.bf16 %v1890, %v1889
      %v1909 = vpack.c.bf16 %v1892, %v1891
      %v1910 = vpack.c.bf16 %v1894, %v1893
      %v1911 = vpack.c.bf16 %v1896, %v1895
      %v1912 = vpack.c.bf16 %v1898, %v1897
      %v1913 = vpack.c.bf16 %v1900, %v1899
      %v1914 = vpack.c.bf16 %v1902, %v1901
      %v1915 = vpack.c.bf16 %v1904, %v1903
      %v1916 = vpack.c.bf16 %v1905, %v1905
      %v1917 = vld [vmem:[%s3 + $0x30] sm:$0xf]
      %v1918 = vld [vmem:[%s3 + $0x34] sm:$0xf]
      %v1919 = vld [vmem:[%s3 + $0x38] sm:$0xf]
      %v1920 = vld [vmem:[%s3 + $0x3c] sm:$0xf]
      %v1925 = vunpack.c.l.b16 %v1917
      %v1926 = vunpack.c.l.b16 %v1918
      %v1927 = vunpack.c.l.b16 %v1919
      %v1928 = vunpack.c.l.b16 %v1920
      %v1929 = vpack.c.b16 %v1926, %v1925
      %v1930 = vpack.c.b16 %v1928, %v1927
      %v1934 = vsel %vm1401, %v1906, 0
      %v1937 = vsel %vm1401, %v1907, 0
      %v1940 = vsel %vm1401, %v1908, 0
      %v1943 = vsel %vm1401, %v1909, 0
      %v1946 = vsel %vm1401, %v1910, 0
      %v1949 = vsel %vm1401, %v1911, 0
      %v1952 = vsel %vm1401, %v1912, 0
      %v1955 = vsel %vm1401, %v1913, 0
      %v1958 = vsel %vm1401, %v1914, 0
      %v1961 = vsel %vm1401, %v1915, 0
      %v1964 = vsel %vm1401, %v1916, 0
      %1966 = vmatpush.bf16.msra.mxu0 0
      %1967 = vmatpush.bf16.msra.mxu0 0
      %1968 = vmatpush.bf16.msra.mxu0 0
      %1969 = vmatpush.bf16.msra.mxu0 0
      %1970 = vmatpush.bf16.msra.mxu0 0
      %1971 = vmatpush.bf16.msra.mxu0 0
      %1972 = vmatpush.bf16.msra.mxu0 %v1930
      %1973 = vmatpush.bf16.msra.mxu0 %v1929
      %1974 = vmatmul.bf16.gmra.mxu0 %v1934
      %v1975 = vpop.f32.mrf.mxu0
      %v1976 = vadd.f32 0.0, %v1975
      %v1977 = vpop.f32.mrf.mxu0
      %v1978 = vadd.f32 0.0, %v1977
      %1979 = vmatmul.bf16.gmra.mxu0 %v1937
      %v1980 = vpop.f32.mrf.mxu0
      %v1981 = vadd.f32 0.0, %v1980
      %v1982 = vpop.f32.mrf.mxu0
      %v1983 = vadd.f32 0.0, %v1982
      %1984 = vmatmul.bf16.gmra.mxu0 %v1940
      %v1985 = vpop.f32.mrf.mxu0
      %v1986 = vadd.f32 0.0, %v1985
      %v1987 = vpop.f32.mrf.mxu0
      %v1988 = vadd.f32 0.0, %v1987
      %1989 = vmatmul.bf16.gmra.mxu0 %v1943
      %v1990 = vpop.f32.mrf.mxu0
      %v1991 = vadd.f32 0.0, %v1990
      %v1992 = vpop.f32.mrf.mxu0
      %v1993 = vadd.f32 0.0, %v1992
      %1994 = vmatmul.bf16.gmra.mxu0 %v1946
      %v1995 = vpop.f32.mrf.mxu0
      %v1996 = vadd.f32 0.0, %v1995
      %v1997 = vpop.f32.mrf.mxu0
      %v1998 = vadd.f32 0.0, %v1997
      %1999 = vmatmul.bf16.gmra.mxu0 %v1949
      %v2000 = vpop.f32.mrf.mxu0
      %v2001 = vadd.f32 0.0, %v2000
      %v2002 = vpop.f32.mrf.mxu0
      %v2003 = vadd.f32 0.0, %v2002
      %2004 = vmatmul.bf16.gmra.mxu0 %v1952
      %v2005 = vpop.f32.mrf.mxu0
      %v2006 = vadd.f32 0.0, %v2005
      %v2007 = vpop.f32.mrf.mxu0
      %v2008 = vadd.f32 0.0, %v2007
      %2009 = vmatmul.bf16.gmra.mxu0 %v1955
      %v2010 = vpop.f32.mrf.mxu0
      %v2011 = vadd.f32 0.0, %v2010
      %v2012 = vpop.f32.mrf.mxu0
      %v2013 = vadd.f32 0.0, %v2012
      %2014 = vmatmul.bf16.gmra.mxu0 %v1958
      %v2015 = vpop.f32.mrf.mxu0
      %v2016 = vadd.f32 0.0, %v2015
      %v2017 = vpop.f32.mrf.mxu0
      %v2018 = vadd.f32 0.0, %v2017
      %2019 = vmatmul.bf16.gmra.mxu0 %v1961
      %v2020 = vpop.f32.mrf.mxu0
      %v2021 = vadd.f32 0.0, %v2020
      %v2022 = vpop.f32.mrf.mxu0
      %v2023 = vadd.f32 0.0, %v2022
      %2024 = vmatmul.bf16.gmra.mxu0 %v1964
      %v2025 = vpop.f32.mrf.mxu0
      %v2026 = vadd.f32 0.0, %v2025
      %v2027 = vpop.f32.mrf.mxu0
      %2028 = vdwg.mxu0
      %v2029 = vadd.f32 %v1864, %v1976
      %v2030 = vadd.f32 %v1865, %v1978
      %v2031 = vadd.f32 %v1866, %v1981
      %v2032 = vadd.f32 %v1867, %v1983
      %v2033 = vadd.f32 %v1868, %v1986
      %v2034 = vadd.f32 %v1869, %v1988
      %v2035 = vadd.f32 %v1870, %v1991
      %v2036 = vadd.f32 %v1871, %v1993
      %v2037 = vadd.f32 %v1872, %v1996
      %v2038 = vadd.f32 %v1873, %v1998
      %v2039 = vadd.f32 %v1874, %v2001
      %v2040 = vadd.f32 %v1875, %v2003
      %v2041 = vadd.f32 %v1876, %v2006
      %v2042 = vadd.f32 %v1877, %v2008
      %v2043 = vadd.f32 %v1878, %v2011
      %v2044 = vadd.f32 %v1879, %v2013
      %v2045 = vadd.f32 %v1880, %v2016
      %v2046 = vadd.f32 %v1881, %v2018
      %v2047 = vadd.f32 %v1882, %v2021
      %v2048 = vadd.f32 %v1883, %v2023
      %v2049 = vadd.f32 %v1884, %v2026
      %v2050 = vld [vmem:[#allocation2 + $0x4] sm:$0xff]
      %v2051 = vld [vmem:[#allocation2 + $0xc] sm:$0xff]
      %v2052 = vld [vmem:[#allocation2 + $0x14] sm:$0xff]
      %v2053 = vld [vmem:[#allocation2 + $0x1c] sm:$0xff]
      %v2054 = vld [vmem:[#allocation2 + $0x24] sm:$0xff]
      %v2055 = vld [vmem:[#allocation2 + $0x2c] sm:$0xff]
      %v2056 = vld [vmem:[#allocation2 + $0x34] sm:$0xff]
      %v2057 = vld [vmem:[#allocation2 + $0x3c] sm:$0xff]
      %v2058 = vld [vmem:[#allocation2 + $0x44] sm:$0xff]
      %v2059 = vld [vmem:[#allocation2 + $0x4c] sm:$0xff]
      %v2060 = vld [vmem:[#allocation2 + $0x54] sm:$0xff]
      %v2061 = vld [vmem:[#allocation2 + $0x5c] sm:$0xff]
      %v2062 = vld [vmem:[#allocation2 + $0x64] sm:$0xff]
      %v2063 = vld [vmem:[#allocation2 + $0x6c] sm:$0xff]
      %v2064 = vld [vmem:[#allocation2 + $0x74] sm:$0xff]
      %v2065 = vld [vmem:[#allocation2 + $0x7c] sm:$0xff]
      %v2066 = vld [vmem:[#allocation2 + $0x84] sm:$0xff]
      %v2067 = vld [vmem:[#allocation2 + $0x8c] sm:$0xff]
      %v2068 = vld [vmem:[#allocation2 + $0x94] sm:$0xff]
      %v2069 = vld [vmem:[#allocation2 + $0x9c] sm:$0xff]
      %v2070 = vld [vmem:[#allocation2 + $0xa4] sm:$0x1]
      %v2071 = vpack.c.bf16 %v2051, %v2050
      %v2072 = vpack.c.bf16 %v2053, %v2052
      %v2073 = vpack.c.bf16 %v2055, %v2054
      %v2074 = vpack.c.bf16 %v2057, %v2056
      %v2075 = vpack.c.bf16 %v2059, %v2058
      %v2076 = vpack.c.bf16 %v2061, %v2060
      %v2077 = vpack.c.bf16 %v2063, %v2062
      %v2078 = vpack.c.bf16 %v2065, %v2064
      %v2079 = vpack.c.bf16 %v2067, %v2066
      %v2080 = vpack.c.bf16 %v2069, %v2068
      %v2081 = vpack.c.bf16 %v2070, %v2070
      %v2082 = vld [vmem:[%s3 + $0x40] sm:$0xf]
      %v2083 = vld [vmem:[%s3 + $0x44] sm:$0xf]
      %v2084 = vld [vmem:[%s3 + $0x48] sm:$0xf]
      %v2085 = vld [vmem:[%s3 + $0x4c] sm:$0xf]
      %v2090 = vunpack.c.l.b16 %v2082
      %v2091 = vunpack.c.l.b16 %v2083
      %v2092 = vunpack.c.l.b16 %v2084
      %v2093 = vunpack.c.l.b16 %v2085
      %v2094 = vpack.c.b16 %v2091, %v2090
      %v2095 = vpack.c.b16 %v2093, %v2092
      %v2099 = vsel %vm1401, %v2071, 0
      %v2102 = vsel %vm1401, %v2072, 0
      %v2105 = vsel %vm1401, %v2073, 0
      %v2108 = vsel %vm1401, %v2074, 0
      %v2111 = vsel %vm1401, %v2075, 0
      %v2114 = vsel %vm1401, %v2076, 0
      %v2117 = vsel %vm1401, %v2077, 0
      %v2120 = vsel %vm1401, %v2078, 0
      %v2123 = vsel %vm1401, %v2079, 0
      %v2126 = vsel %vm1401, %v2080, 0
      %v2129 = vsel %vm1401, %v2081, 0
      %2131 = vmatpush.bf16.msra.mxu0 0
      %2132 = vmatpush.bf16.msra.mxu0 0
      %2133 = vmatpush.bf16.msra.mxu0 0
      %2134 = vmatpush.bf16.msra.mxu0 0
      %2135 = vmatpush.bf16.msra.mxu0 0
      %2136 = vmatpush.bf16.msra.mxu0 0
      %2137 = vmatpush.bf16.msra.mxu0 %v2095
      %2138 = vmatpush.bf16.msra.mxu0 %v2094
      %2139 = vmatmul.bf16.gmra.mxu0 %v2099
      %v2140 = vpop.f32.mrf.mxu0
      %v2141 = vadd.f32 0.0, %v2140
      %v2142 = vpop.f32.mrf.mxu0
      %v2143 = vadd.f32 0.0, %v2142
      %2144 = vmatmul.bf16.gmra.mxu0 %v2102
      %v2145 = vpop.f32.mrf.mxu0
      %v2146 = vadd.f32 0.0, %v2145
      %v2147 = vpop.f32.mrf.mxu0
      %v2148 = vadd.f32 0.0, %v2147
      %2149 = vmatmul.bf16.gmra.mxu0 %v2105
      %v2150 = vpop.f32.mrf.mxu0
      %v2151 = vadd.f32 0.0, %v2150
      %v2152 = vpop.f32.mrf.mxu0
      %v2153 = vadd.f32 0.0, %v2152
      %2154 = vmatmul.bf16.gmra.mxu0 %v2108
      %v2155 = vpop.f32.mrf.mxu0
      %v2156 = vadd.f32 0.0, %v2155
      %v2157 = vpop.f32.mrf.mxu0
      %v2158 = vadd.f32 0.0, %v2157
      %2159 = vmatmul.bf16.gmra.mxu0 %v2111
      %v2160 = vpop.f32.mrf.mxu0
      %v2161 = vadd.f32 0.0, %v2160
      %v2162 = vpop.f32.mrf.mxu0
      %v2163 = vadd.f32 0.0, %v2162
      %2164 = vmatmul.bf16.gmra.mxu0 %v2114
      %v2165 = vpop.f32.mrf.mxu0
      %v2166 = vadd.f32 0.0, %v2165
      %v2167 = vpop.f32.mrf.mxu0
      %v2168 = vadd.f32 0.0, %v2167
      %2169 = vmatmul.bf16.gmra.mxu0 %v2117
      %v2170 = vpop.f32.mrf.mxu0
      %v2171 = vadd.f32 0.0, %v2170
      %v2172 = vpop.f32.mrf.mxu0
      %v2173 = vadd.f32 0.0, %v2172
      %2174 = vmatmul.bf16.gmra.mxu0 %v2120
      %v2175 = vpop.f32.mrf.mxu0
      %v2176 = vadd.f32 0.0, %v2175
      %v2177 = vpop.f32.mrf.mxu0
      %v2178 = vadd.f32 0.0, %v2177
      %2179 = vmatmul.bf16.gmra.mxu0 %v2123
      %v2180 = vpop.f32.mrf.mxu0
      %v2181 = vadd.f32 0.0, %v2180
      %v2182 = vpop.f32.mrf.mxu0
      %v2183 = vadd.f32 0.0, %v2182
      %2184 = vmatmul.bf16.gmra.mxu0 %v2126
      %v2185 = vpop.f32.mrf.mxu0
      %v2186 = vadd.f32 0.0, %v2185
      %v2187 = vpop.f32.mrf.mxu0
      %v2188 = vadd.f32 0.0, %v2187
      %2189 = vmatmul.bf16.gmra.mxu0 %v2129
      %v2190 = vpop.f32.mrf.mxu0
      %v2191 = vadd.f32 0.0, %v2190
      %v2192 = vpop.f32.mrf.mxu0
      %2193 = vdwg.mxu0
      %v2194 = vadd.f32 %v2029, %v2141
      %v2195 = vadd.f32 %v2030, %v2143
      %v2196 = vadd.f32 %v2031, %v2146
      %v2197 = vadd.f32 %v2032, %v2148
      %v2198 = vadd.f32 %v2033, %v2151
      %v2199 = vadd.f32 %v2034, %v2153
      %v2200 = vadd.f32 %v2035, %v2156
      %v2201 = vadd.f32 %v2036, %v2158
      %v2202 = vadd.f32 %v2037, %v2161
      %v2203 = vadd.f32 %v2038, %v2163
      %v2204 = vadd.f32 %v2039, %v2166
      %v2205 = vadd.f32 %v2040, %v2168
      %v2206 = vadd.f32 %v2041, %v2171
      %v2207 = vadd.f32 %v2042, %v2173
      %v2208 = vadd.f32 %v2043, %v2176
      %v2209 = vadd.f32 %v2044, %v2178
      %v2210 = vadd.f32 %v2045, %v2181
      %v2211 = vadd.f32 %v2046, %v2183
      %v2212 = vadd.f32 %v2047, %v2186
      %v2213 = vadd.f32 %v2048, %v2188
      %v2214 = vadd.f32 %v2049, %v2191
      %v2215 = vld [vmem:[#allocation2 + $0xf] sm:$0xff]
      %v2216 = vld [vmem:[#allocation2 + $0x17] sm:$0xff]
      %v2217 = vld [vmem:[#allocation2 + $0x1f] sm:$0xff]
      %v2218 = vld [vmem:[#allocation2 + $0x27] sm:$0xff]
      %v2219 = vld [vmem:[#allocation2 + $0x2f] sm:$0xff]
      %v2220 = vld [vmem:[#allocation2 + $0x37] sm:$0xff]
      %v2221 = vld [vmem:[#allocation2 + $0x3f] sm:$0xff]
      %v2222 = vld [vmem:[#allocation2 + $0x47] sm:$0xff]
      %v2223 = vld [vmem:[#allocation2 + $0x4f] sm:$0xff]
      %v2224 = vld [vmem:[#allocation2 + $0x57] sm:$0xff]
      %v2225 = vld [vmem:[#allocation2 + $0x5f] sm:$0xff]
      %v2226 = vld [vmem:[#allocation2 + $0x67] sm:$0xff]
      %v2227 = vld [vmem:[#allocation2 + $0x6f] sm:$0xff]
      %v2228 = vld [vmem:[#allocation2 + $0x77] sm:$0xff]
      %v2229 = vld [vmem:[#allocation2 + $0x7f] sm:$0xff]
      %v2230 = vld [vmem:[#allocation2 + $0x87] sm:$0xff]
      %v2231 = vld [vmem:[#allocation2 + $0x8f] sm:$0xff]
      %v2232 = vld [vmem:[#allocation2 + $0x97] sm:$0xff]
      %v2233 = vld [vmem:[#allocation2 + $0x9f] sm:$0xff]
      %v2234 = vld [vmem:[#allocation2 + $0xa7] sm:$0xff]
      %v2235 = vld [vmem:[#allocation2 + $0xaf] sm:$0x1]
      %v2236 = vpack.c.bf16 %v2216, %v2215
      %v2237 = vpack.c.bf16 %v2218, %v2217
      %v2238 = vpack.c.bf16 %v2220, %v2219
      %v2239 = vpack.c.bf16 %v2222, %v2221
      %v2240 = vpack.c.bf16 %v2224, %v2223
      %v2241 = vpack.c.bf16 %v2226, %v2225
      %v2242 = vpack.c.bf16 %v2228, %v2227
      %v2243 = vpack.c.bf16 %v2230, %v2229
      %v2244 = vpack.c.bf16 %v2232, %v2231
      %v2245 = vpack.c.bf16 %v2234, %v2233
      %v2246 = vpack.c.bf16 %v2235, %v2235
      %v2247 = vld [vmem:[%s3 + $0x50] sm:$0xf]
      %v2248 = vld [vmem:[%s3 + $0x54] sm:$0xf]
      %v2249 = vld [vmem:[%s3 + $0x58] sm:$0xf]
      %v2250 = vld [vmem:[%s3 + $0x5c] sm:$0xf]
      %v2255 = vunpack.c.l.b16 %v2247
      %v2256 = vunpack.c.l.b16 %v2248
      %v2257 = vunpack.c.l.b16 %v2249
      %v2258 = vunpack.c.l.b16 %v2250
      %v2259 = vpack.c.b16 %v2256, %v2255
      %v2260 = vpack.c.b16 %v2258, %v2257
      %v2264 = vsel %vm1401, %v2236, 0
      %v2267 = vsel %vm1401, %v2237, 0
      %v2270 = vsel %vm1401, %v2238, 0
      %v2273 = vsel %vm1401, %v2239, 0
      %v2276 = vsel %vm1401, %v2240, 0
      %v2279 = vsel %vm1401, %v2241, 0
      %v2282 = vsel %vm1401, %v2242, 0
      %v2285 = vsel %vm1401, %v2243, 0
      %v2288 = vsel %vm1401, %v2244, 0
      %v2291 = vsel %vm1401, %v2245, 0
      %v2294 = vsel %vm1401, %v2246, 0
      %2296 = vmatpush.bf16.msra.mxu0 0
      %2297 = vmatpush.bf16.msra.mxu0 0
      %2298 = vmatpush.bf16.msra.mxu0 0
      %2299 = vmatpush.bf16.msra.mxu0 0
      %2300 = vmatpush.bf16.msra.mxu0 0
      %2301 = vmatpush.bf16.msra.mxu0 0
      %2302 = vmatpush.bf16.msra.mxu0 %v2260
      %2303 = vmatpush.bf16.msra.mxu0 %v2259
      %2304 = vmatmul.bf16.gmra.mxu0 %v2264
      %v2305 = vpop.f32.mrf.mxu0
      %v2306 = vadd.f32 0.0, %v2305
      %v2307 = vpop.f32.mrf.mxu0
      %v2308 = vadd.f32 0.0, %v2307
      %2309 = vmatmul.bf16.gmra.mxu0 %v2267
      %v2310 = vpop.f32.mrf.mxu0
      %v2311 = vadd.f32 0.0, %v2310
      %v2312 = vpop.f32.mrf.mxu0
      %v2313 = vadd.f32 0.0, %v2312
      %2314 = vmatmul.bf16.gmra.mxu0 %v2270
      %v2315 = vpop.f32.mrf.mxu0
      %v2316 = vadd.f32 0.0, %v2315
      %v2317 = vpop.f32.mrf.mxu0
      %v2318 = vadd.f32 0.0, %v2317
      %2319 = vmatmul.bf16.gmra.mxu0 %v2273
      %v2320 = vpop.f32.mrf.mxu0
      %v2321 = vadd.f32 0.0, %v2320
      %v2322 = vpop.f32.mrf.mxu0
      %v2323 = vadd.f32 0.0, %v2322
      %2324 = vmatmul.bf16.gmra.mxu0 %v2276
      %v2325 = vpop.f32.mrf.mxu0
      %v2326 = vadd.f32 0.0, %v2325
      %v2327 = vpop.f32.mrf.mxu0
      %v2328 = vadd.f32 0.0, %v2327
      %2329 = vmatmul.bf16.gmra.mxu0 %v2279
      %v2330 = vpop.f32.mrf.mxu0
      %v2331 = vadd.f32 0.0, %v2330
      %v2332 = vpop.f32.mrf.mxu0
      %v2333 = vadd.f32 0.0, %v2332
      %2334 = vmatmul.bf16.gmra.mxu0 %v2282
      %v2335 = vpop.f32.mrf.mxu0
      %v2336 = vadd.f32 0.0, %v2335
      %v2337 = vpop.f32.mrf.mxu0
      %v2338 = vadd.f32 0.0, %v2337
      %2339 = vmatmul.bf16.gmra.mxu0 %v2285
      %v2340 = vpop.f32.mrf.mxu0
      %v2341 = vadd.f32 0.0, %v2340
      %v2342 = vpop.f32.mrf.mxu0
      %v2343 = vadd.f32 0.0, %v2342
      %2344 = vmatmul.bf16.gmra.mxu0 %v2288
      %v2345 = vpop.f32.mrf.mxu0
      %v2346 = vadd.f32 0.0, %v2345
      %v2347 = vpop.f32.mrf.mxu0
      %v2348 = vadd.f32 0.0, %v2347
      %2349 = vmatmul.bf16.gmra.mxu0 %v2291
      %v2350 = vpop.f32.mrf.mxu0
      %v2351 = vadd.f32 0.0, %v2350
      %v2352 = vpop.f32.mrf.mxu0
      %v2353 = vadd.f32 0.0, %v2352
      %2354 = vmatmul.bf16.gmra.mxu0 %v2294
      %v2355 = vpop.f32.mrf.mxu0
      %v2356 = vadd.f32 0.0, %v2355
      %v2357 = vpop.f32.mrf.mxu0
      %2358 = vdwg.mxu0
      %v2359 = vadd.f32 %v2194, %v2306
      %v2360 = vadd.f32 %v2195, %v2308
      %v2361 = vadd.f32 %v2196, %v2311
      %v2362 = vadd.f32 %v2197, %v2313
      %v2363 = vadd.f32 %v2198, %v2316
      %v2364 = vadd.f32 %v2199, %v2318
      %v2365 = vadd.f32 %v2200, %v2321
      %v2366 = vadd.f32 %v2201, %v2323
      %v2367 = vadd.f32 %v2202, %v2326
      %v2368 = vadd.f32 %v2203, %v2328
      %v2369 = vadd.f32 %v2204, %v2331
      %v2370 = vadd.f32 %v2205, %v2333
      %v2371 = vadd.f32 %v2206, %v2336
      %v2372 = vadd.f32 %v2207, %v2338
      %v2373 = vadd.f32 %v2208, %v2341
      %v2374 = vadd.f32 %v2209, %v2343
      %v2375 = vadd.f32 %v2210, %v2346
      %v2376 = vadd.f32 %v2211, %v2348
      %v2377 = vadd.f32 %v2212, %v2351
      %v2378 = vadd.f32 %v2213, %v2353
      %v2379 = vadd.f32 %v2214, %v2356
      %v2380 = vld [vmem:[#allocation2 + $0x10] sm:$0xff]
      %v2381 = vld [vmem:[#allocation2 + $0x18] sm:$0xff]
      %v2382 = vld [vmem:[#allocation2 + $0x20] sm:$0xff]
      %v2383 = vld [vmem:[#allocation2 + $0x28] sm:$0xff]
      %v2384 = vld [vmem:[#allocation2 + $0x30] sm:$0xff]
      %v2385 = vld [vmem:[#allocation2 + $0x38] sm:$0xff]
      %v2386 = vld [vmem:[#allocation2 + $0x40] sm:$0xff]
      %v2387 = vld [vmem:[#allocation2 + $0x48] sm:$0xff]
      %v2388 = vld [vmem:[#allocation2 + $0x50] sm:$0xff]
      %v2389 = vld [vmem:[#allocation2 + $0x58] sm:$0xff]
      %v2390 = vld [vmem:[#allocation2 + $0x60] sm:$0xff]
      %v2391 = vld [vmem:[#allocation2 + $0x68] sm:$0xff]
      %v2392 = vld [vmem:[#allocation2 + $0x70] sm:$0xff]
      %v2393 = vld [vmem:[#allocation2 + $0x78] sm:$0xff]
      %v2394 = vld [vmem:[#allocation2 + $0x80] sm:$0xff]
      %v2395 = vld [vmem:[#allocation2 + $0x88] sm:$0xff]
      %v2396 = vld [vmem:[#allocation2 + $0x90] sm:$0xff]
      %v2397 = vld [vmem:[#allocation2 + $0x98] sm:$0xff]
      %v2398 = vld [vmem:[#allocation2 + $0xa0] sm:$0xff]
      %v2399 = vld [vmem:[#allocation2 + $0xa8] sm:$0xff]
      %v2400 = vld [vmem:[#allocation2 + $0xb0] sm:$0x1]
      %v2401 = vpack.c.bf16 %v2381, %v2380
      %v2402 = vpack.c.bf16 %v2383, %v2382
      %v2403 = vpack.c.bf16 %v2385, %v2384
      %v2404 = vpack.c.bf16 %v2387, %v2386
      %v2405 = vpack.c.bf16 %v2389, %v2388
      %v2406 = vpack.c.bf16 %v2391, %v2390
      %v2407 = vpack.c.bf16 %v2393, %v2392
      %v2408 = vpack.c.bf16 %v2395, %v2394
      %v2409 = vpack.c.bf16 %v2397, %v2396
      %v2410 = vpack.c.bf16 %v2399, %v2398
      %v2411 = vpack.c.bf16 %v2400, %v2400
      %v2412 = vld [vmem:[%s3 + $0x60] sm:$0xf]
      %v2413 = vld [vmem:[%s3 + $0x64] sm:$0xf]
      %v2414 = vld [vmem:[%s3 + $0x68] sm:$0xf]
      %v2415 = vld [vmem:[%s3 + $0x6c] sm:$0xf]
      %v2420 = vunpack.c.l.b16 %v2412
      %v2421 = vunpack.c.l.b16 %v2413
      %v2422 = vunpack.c.l.b16 %v2414
      %v2423 = vunpack.c.l.b16 %v2415
      %v2424 = vpack.c.b16 %v2421, %v2420
      %v2425 = vpack.c.b16 %v2423, %v2422
      %v2429 = vsel %vm1401, %v2401, 0
      %v2432 = vsel %vm1401, %v2402, 0
      %v2435 = vsel %vm1401, %v2403, 0
      %v2438 = vsel %vm1401, %v2404, 0
      %v2441 = vsel %vm1401, %v2405, 0
      %v2444 = vsel %vm1401, %v2406, 0
      %v2447 = vsel %vm1401, %v2407, 0
      %v2450 = vsel %vm1401, %v2408, 0
      %v2453 = vsel %vm1401, %v2409, 0
      %v2456 = vsel %vm1401, %v2410, 0
      %v2459 = vsel %vm1401, %v2411, 0
      %2461 = vmatpush.bf16.msra.mxu0 0
      %2462 = vmatpush.bf16.msra.mxu0 0
      %2463 = vmatpush.bf16.msra.mxu0 0
      %2464 = vmatpush.bf16.msra.mxu0 0
      %2465 = vmatpush.bf16.msra.mxu0 0
      %2466 = vmatpush.bf16.msra.mxu0 0
      %2467 = vmatpush.bf16.msra.mxu0 %v2425
      %2468 = vmatpush.bf16.msra.mxu0 %v2424
      %2469 = vmatmul.bf16.gmra.mxu0 %v2429
      %v2470 = vpop.f32.mrf.mxu0
      %v2471 = vadd.f32 0.0, %v2470
      %v2472 = vpop.f32.mrf.mxu0
      %v2473 = vadd.f32 0.0, %v2472
      %2474 = vmatmul.bf16.gmra.mxu0 %v2432
      %v2475 = vpop.f32.mrf.mxu0
      %v2476 = vadd.f32 0.0, %v2475
      %v2477 = vpop.f32.mrf.mxu0
      %v2478 = vadd.f32 0.0, %v2477
      %2479 = vmatmul.bf16.gmra.mxu0 %v2435
      %v2480 = vpop.f32.mrf.mxu0
      %v2481 = vadd.f32 0.0, %v2480
      %v2482 = vpop.f32.mrf.mxu0
      %v2483 = vadd.f32 0.0, %v2482
      %2484 = vmatmul.bf16.gmra.mxu0 %v2438
      %v2485 = vpop.f32.mrf.mxu0
      %v2486 = vadd.f32 0.0, %v2485
      %v2487 = vpop.f32.mrf.mxu0
      %v2488 = vadd.f32 0.0, %v2487
      %2489 = vmatmul.bf16.gmra.mxu0 %v2441
      %v2490 = vpop.f32.mrf.mxu0
      %v2491 = vadd.f32 0.0, %v2490
      %v2492 = vpop.f32.mrf.mxu0
      %v2493 = vadd.f32 0.0, %v2492
      %2494 = vmatmul.bf16.gmra.mxu0 %v2444
      %v2495 = vpop.f32.mrf.mxu0
      %v2496 = vadd.f32 0.0, %v2495
      %v2497 = vpop.f32.mrf.mxu0
      %v2498 = vadd.f32 0.0, %v2497
      %2499 = vmatmul.bf16.gmra.mxu0 %v2447
      %v2500 = vpop.f32.mrf.mxu0
      %v2501 = vadd.f32 0.0, %v2500
      %v2502 = vpop.f32.mrf.mxu0
      %v2503 = vadd.f32 0.0, %v2502
      %2504 = vmatmul.bf16.gmra.mxu0 %v2450
      %v2505 = vpop.f32.mrf.mxu0
      %v2506 = vadd.f32 0.0, %v2505
      %v2507 = vpop.f32.mrf.mxu0
      %v2508 = vadd.f32 0.0, %v2507
      %2509 = vmatmul.bf16.gmra.mxu0 %v2453
      %v2510 = vpop.f32.mrf.mxu0
      %v2511 = vadd.f32 0.0, %v2510
      %v2512 = vpop.f32.mrf.mxu0
      %v2513 = vadd.f32 0.0, %v2512
      %2514 = vmatmul.bf16.gmra.mxu0 %v2456
      %v2515 = vpop.f32.mrf.mxu0
      %v2516 = vadd.f32 0.0, %v2515
      %v2517 = vpop.f32.mrf.mxu0
      %v2518 = vadd.f32 0.0, %v2517
      %2519 = vmatmul.bf16.gmra.mxu0 %v2459
      %v2520 = vpop.f32.mrf.mxu0
      %v2521 = vadd.f32 0.0, %v2520
      %v2522 = vpop.f32.mrf.mxu0
      %2523 = vdwg.mxu0
      %v2524 = vadd.f32 %v2359, %v2471
      %v2525 = vadd.f32 %v2360, %v2473
      %v2526 = vadd.f32 %v2361, %v2476
      %v2527 = vadd.f32 %v2362, %v2478
      %v2528 = vadd.f32 %v2363, %v2481
      %v2529 = vadd.f32 %v2364, %v2483
      %v2530 = vadd.f32 %v2365, %v2486
      %v2531 = vadd.f32 %v2366, %v2488
      %v2532 = vadd.f32 %v2367, %v2491
      %v2533 = vadd.f32 %v2368, %v2493
      %v2534 = vadd.f32 %v2369, %v2496
      %v2535 = vadd.f32 %v2370, %v2498
      %v2536 = vadd.f32 %v2371, %v2501
      %v2537 = vadd.f32 %v2372, %v2503
      %v2538 = vadd.f32 %v2373, %v2506
      %v2539 = vadd.f32 %v2374, %v2508
      %v2540 = vadd.f32 %v2375, %v2511
      %v2541 = vadd.f32 %v2376, %v2513
      %v2542 = vadd.f32 %v2377, %v2516
      %v2543 = vadd.f32 %v2378, %v2518
      %v2544 = vadd.f32 %v2379, %v2521
      %v2545 = vld [vmem:[#allocation2 + $0x11] sm:$0xff]
      %v2546 = vld [vmem:[#allocation2 + $0x19] sm:$0xff]
      %v2547 = vld [vmem:[#allocation2 + $0x21] sm:$0xff]
      %v2548 = vld [vmem:[#allocation2 + $0x29] sm:$0xff]
      %v2549 = vld [vmem:[#allocation2 + $0x31] sm:$0xff]
      %v2550 = vld [vmem:[#allocation2 + $0x39] sm:$0xff]
      %v2551 = vld [vmem:[#allocation2 + $0x41] sm:$0xff]
      %v2552 = vld [vmem:[#allocation2 + $0x49] sm:$0xff]
      %v2553 = vld [vmem:[#allocation2 + $0x51] sm:$0xff]
      %v2554 = vld [vmem:[#allocation2 + $0x59] sm:$0xff]
      %v2555 = vld [vmem:[#allocation2 + $0x61] sm:$0xff]
      %v2556 = vld [vmem:[#allocation2 + $0x69] sm:$0xff]
      %v2557 = vld [vmem:[#allocation2 + $0x71] sm:$0xff]
      %v2558 = vld [vmem:[#allocation2 + $0x79] sm:$0xff]
      %v2559 = vld [vmem:[#allocation2 + $0x81] sm:$0xff]
      %v2560 = vld [vmem:[#allocation2 + $0x89] sm:$0xff]
      %v2561 = vld [vmem:[#allocation2 + $0x91] sm:$0xff]
      %v2562 = vld [vmem:[#allocation2 + $0x99] sm:$0xff]
      %v2563 = vld [vmem:[#allocation2 + $0xa1] sm:$0xff]
      %v2564 = vld [vmem:[#allocation2 + $0xa9] sm:$0xff]
      %v2565 = vld [vmem:[#allocation2 + $0xb1] sm:$0x1]
      %v2566 = vpack.c.bf16 %v2546, %v2545
      %v2567 = vpack.c.bf16 %v2548, %v2547
      %v2568 = vpack.c.bf16 %v2550, %v2549
      %v2569 = vpack.c.bf16 %v2552, %v2551
      %v2570 = vpack.c.bf16 %v2554, %v2553
      %v2571 = vpack.c.bf16 %v2556, %v2555
      %v2572 = vpack.c.bf16 %v2558, %v2557
      %v2573 = vpack.c.bf16 %v2560, %v2559
      %v2574 = vpack.c.bf16 %v2562, %v2561
      %v2575 = vpack.c.bf16 %v2564, %v2563
      %v2576 = vpack.c.bf16 %v2565, %v2565
      %v2577 = vld [vmem:[%s3 + $0x70] sm:$0xf]
      %v2578 = vld [vmem:[%s3 + $0x74] sm:$0xf]
      %v2579 = vld [vmem:[%s3 + $0x78] sm:$0xf]
      %v2580 = vld [vmem:[%s3 + $0x7c] sm:$0xf]
      %v2585 = vunpack.c.l.b16 %v2577
      %v2586 = vunpack.c.l.b16 %v2578
      %v2587 = vunpack.c.l.b16 %v2579
      %v2588 = vunpack.c.l.b16 %v2580
      %v2589 = vpack.c.b16 %v2586, %v2585
      %v2590 = vpack.c.b16 %v2588, %v2587
      %v2594 = vsel %vm1401, %v2566, 0
      %v2597 = vsel %vm1401, %v2567, 0
      %v2600 = vsel %vm1401, %v2568, 0
      %v2603 = vsel %vm1401, %v2569, 0
      %v2606 = vsel %vm1401, %v2570, 0
      %v2609 = vsel %vm1401, %v2571, 0
      %v2612 = vsel %vm1401, %v2572, 0
      %v2615 = vsel %vm1401, %v2573, 0
      %v2618 = vsel %vm1401, %v2574, 0
      %v2621 = vsel %vm1401, %v2575, 0
      %v2624 = vsel %vm1401, %v2576, 0
      %2626 = vmatpush.bf16.msra.mxu0 0
      %2627 = vmatpush.bf16.msra.mxu0 0
      %2628 = vmatpush.bf16.msra.mxu0 0
      %2629 = vmatpush.bf16.msra.mxu0 0
      %2630 = vmatpush.bf16.msra.mxu0 0
      %2631 = vmatpush.bf16.msra.mxu0 0
      %2632 = vmatpush.bf16.msra.mxu0 %v2590
      %2633 = vmatpush.bf16.msra.mxu0 %v2589
      %2634 = vmatmul.bf16.gmra.mxu0 %v2594
      %v2635 = vpop.f32.mrf.mxu0
      %v2636 = vadd.f32 0.0, %v2635
      %v2637 = vpop.f32.mrf.mxu0
      %v2638 = vadd.f32 0.0, %v2637
      %2639 = vmatmul.bf16.gmra.mxu0 %v2597
      %v2640 = vpop.f32.mrf.mxu0
      %v2641 = vadd.f32 0.0, %v2640
      %v2642 = vpop.f32.mrf.mxu0
      %v2643 = vadd.f32 0.0, %v2642
      %2644 = vmatmul.bf16.gmra.mxu0 %v2600
      %v2645 = vpop.f32.mrf.mxu0
      %v2646 = vadd.f32 0.0, %v2645
      %v2647 = vpop.f32.mrf.mxu0
      %v2648 = vadd.f32 0.0, %v2647
      %2649 = vmatmul.bf16.gmra.mxu0 %v2603
      %v2650 = vpop.f32.mrf.mxu0
      %v2651 = vadd.f32 0.0, %v2650
      %v2652 = vpop.f32.mrf.mxu0
      %v2653 = vadd.f32 0.0, %v2652
      %2654 = vmatmul.bf16.gmra.mxu0 %v2606
      %v2655 = vpop.f32.mrf.mxu0
      %v2656 = vadd.f32 0.0, %v2655
      %v2657 = vpop.f32.mrf.mxu0
      %v2658 = vadd.f32 0.0, %v2657
      %2659 = vmatmul.bf16.gmra.mxu0 %v2609
      %v2660 = vpop.f32.mrf.mxu0
      %v2661 = vadd.f32 0.0, %v2660
      %v2662 = vpop.f32.mrf.mxu0
      %v2663 = vadd.f32 0.0, %v2662
      %2664 = vmatmul.bf16.gmra.mxu0 %v2612
      %v2665 = vpop.f32.mrf.mxu0
      %v2666 = vadd.f32 0.0, %v2665
      %v2667 = vpop.f32.mrf.mxu0
      %v2668 = vadd.f32 0.0, %v2667
      %2669 = vmatmul.bf16.gmra.mxu0 %v2615
      %v2670 = vpop.f32.mrf.mxu0
      %v2671 = vadd.f32 0.0, %v2670
      %v2672 = vpop.f32.mrf.mxu0
      %v2673 = vadd.f32 0.0, %v2672
      %2674 = vmatmul.bf16.gmra.mxu0 %v2618
      %v2675 = vpop.f32.mrf.mxu0
      %v2676 = vadd.f32 0.0, %v2675
      %v2677 = vpop.f32.mrf.mxu0
      %v2678 = vadd.f32 0.0, %v2677
      %2679 = vmatmul.bf16.gmra.mxu0 %v2621
      %v2680 = vpop.f32.mrf.mxu0
      %v2681 = vadd.f32 0.0, %v2680
      %v2682 = vpop.f32.mrf.mxu0
      %v2683 = vadd.f32 0.0, %v2682
      %2684 = vmatmul.bf16.gmra.mxu0 %v2624
      %v2685 = vpop.f32.mrf.mxu0
      %v2686 = vadd.f32 0.0, %v2685
      %v2687 = vpop.f32.mrf.mxu0
      %2688 = vdwg.mxu0
      %v2689 = vadd.f32 %v2524, %v2636
      %v2690 = vadd.f32 %v2525, %v2638
      %v2691 = vadd.f32 %v2526, %v2641
      %v2692 = vadd.f32 %v2527, %v2643
      %v2693 = vadd.f32 %v2528, %v2646
      %v2694 = vadd.f32 %v2529, %v2648
      %v2695 = vadd.f32 %v2530, %v2651
      %v2696 = vadd.f32 %v2531, %v2653
      %v2697 = vadd.f32 %v2532, %v2656
      %v2698 = vadd.f32 %v2533, %v2658
      %v2699 = vadd.f32 %v2534, %v2661
      %v2700 = vadd.f32 %v2535, %v2663
      %v2701 = vadd.f32 %v2536, %v2666
      %v2702 = vadd.f32 %v2537, %v2668
      %v2703 = vadd.f32 %v2538, %v2671
      %v2704 = vadd.f32 %v2539, %v2673
      %v2705 = vadd.f32 %v2540, %v2676
      %v2706 = vadd.f32 %v2541, %v2678
      %v2707 = vadd.f32 %v2542, %v2681
      %v2708 = vadd.f32 %v2543, %v2683
      %v2709 = vadd.f32 %v2544, %v2686
      %v2710 = vld [vmem:[#allocation2 + $0x12] sm:$0xff]
      %v2711 = vld [vmem:[#allocation2 + $0x1a] sm:$0xff]
      %v2712 = vld [vmem:[#allocation2 + $0x22] sm:$0xff]
      %v2713 = vld [vmem:[#allocation2 + $0x2a] sm:$0xff]
      %v2714 = vld [vmem:[#allocation2 + $0x32] sm:$0xff]
      %v2715 = vld [vmem:[#allocation2 + $0x3a] sm:$0xff]
      %v2716 = vld [vmem:[#allocation2 + $0x42] sm:$0xff]
      %v2717 = vld [vmem:[#allocation2 + $0x4a] sm:$0xff]
      %v2718 = vld [vmem:[#allocation2 + $0x52] sm:$0xff]
      %v2719 = vld [vmem:[#allocation2 + $0x5a] sm:$0xff]
      %v2720 = vld [vmem:[#allocation2 + $0x62] sm:$0xff]
      %v2721 = vld [vmem:[#allocation2 + $0x6a] sm:$0xff]
      %v2722 = vld [vmem:[#allocation2 + $0x72] sm:$0xff]
      %v2723 = vld [vmem:[#allocation2 + $0x7a] sm:$0xff]
      %v2724 = vld [vmem:[#allocation2 + $0x82] sm:$0xff]
      %v2725 = vld [vmem:[#allocation2 + $0x8a] sm:$0xff]
      %v2726 = vld [vmem:[#allocation2 + $0x92] sm:$0xff]
      %v2727 = vld [vmem:[#allocation2 + $0x9a] sm:$0xff]
      %v2728 = vld [vmem:[#allocation2 + $0xa2] sm:$0xff]
      %v2729 = vld [vmem:[#allocation2 + $0xaa] sm:$0xff]
      %v2730 = vld [vmem:[#allocation2 + $0xb2] sm:$0x1]
      %v2731 = vpack.c.bf16 %v2711, %v2710
      %v2732 = vpack.c.bf16 %v2713, %v2712
      %v2733 = vpack.c.bf16 %v2715, %v2714
      %v2734 = vpack.c.bf16 %v2717, %v2716
      %v2735 = vpack.c.bf16 %v2719, %v2718
      %v2736 = vpack.c.bf16 %v2721, %v2720
      %v2737 = vpack.c.bf16 %v2723, %v2722
      %v2738 = vpack.c.bf16 %v2725, %v2724
      %v2739 = vpack.c.bf16 %v2727, %v2726
      %v2740 = vpack.c.bf16 %v2729, %v2728
      %v2741 = vpack.c.bf16 %v2730, %v2730
      %v2742 = vld [vmem:[%s3 + $0x80] sm:$0xf]
      %v2743 = vld [vmem:[%s3 + $0x84] sm:$0xf]
      %v2744 = vld [vmem:[%s3 + $0x88] sm:$0xf]
      %v2745 = vld [vmem:[%s3 + $0x8c] sm:$0xf]
      %v2750 = vunpack.c.l.b16 %v2742
      %v2751 = vunpack.c.l.b16 %v2743
      %v2752 = vunpack.c.l.b16 %v2744
      %v2753 = vunpack.c.l.b16 %v2745
      %v2754 = vpack.c.b16 %v2751, %v2750
      %v2755 = vpack.c.b16 %v2753, %v2752
      %v2759 = vsel %vm1401, %v2731, 0
      %v2762 = vsel %vm1401, %v2732, 0
      %v2765 = vsel %vm1401, %v2733, 0
      %v2768 = vsel %vm1401, %v2734, 0
      %v2771 = vsel %vm1401, %v2735, 0
      %v2774 = vsel %vm1401, %v2736, 0
      %v2777 = vsel %vm1401, %v2737, 0
      %v2780 = vsel %vm1401, %v2738, 0
      %v2783 = vsel %vm1401, %v2739, 0
      %v2786 = vsel %vm1401, %v2740, 0
      %v2789 = vsel %vm1401, %v2741, 0
      %2791 = vmatpush.bf16.msra.mxu0 0
      %2792 = vmatpush.bf16.msra.mxu0 0
      %2793 = vmatpush.bf16.msra.mxu0 0
      %2794 = vmatpush.bf16.msra.mxu0 0
      %2795 = vmatpush.bf16.msra.mxu0 0
      %2796 = vmatpush.bf16.msra.mxu0 0
      %2797 = vmatpush.bf16.msra.mxu0 %v2755
      %2798 = vmatpush.bf16.msra.mxu0 %v2754
      %2799 = vmatmul.bf16.gmra.mxu0 %v2759
      %v2800 = vpop.f32.mrf.mxu0
      %v2801 = vadd.f32 0.0, %v2800
      %v2802 = vpop.f32.mrf.mxu0
      %v2803 = vadd.f32 0.0, %v2802
      %2804 = vmatmul.bf16.gmra.mxu0 %v2762
      %v2805 = vpop.f32.mrf.mxu0
      %v2806 = vadd.f32 0.0, %v2805
      %v2807 = vpop.f32.mrf.mxu0
      %v2808 = vadd.f32 0.0, %v2807
      %2809 = vmatmul.bf16.gmra.mxu0 %v2765
      %v2810 = vpop.f32.mrf.mxu0
      %v2811 = vadd.f32 0.0, %v2810
      %v2812 = vpop.f32.mrf.mxu0
      %v2813 = vadd.f32 0.0, %v2812
      %2814 = vmatmul.bf16.gmra.mxu0 %v2768
      %v2815 = vpop.f32.mrf.mxu0
      %v2816 = vadd.f32 0.0, %v2815
      %v2817 = vpop.f32.mrf.mxu0
      %v2818 = vadd.f32 0.0, %v2817
      %2819 = vmatmul.bf16.gmra.mxu0 %v2771
      %v2820 = vpop.f32.mrf.mxu0
      %v2821 = vadd.f32 0.0, %v2820
      %v2822 = vpop.f32.mrf.mxu0
      %v2823 = vadd.f32 0.0, %v2822
      %2824 = vmatmul.bf16.gmra.mxu0 %v2774
      %v2825 = vpop.f32.mrf.mxu0
      %v2826 = vadd.f32 0.0, %v2825
      %v2827 = vpop.f32.mrf.mxu0
      %v2828 = vadd.f32 0.0, %v2827
      %2829 = vmatmul.bf16.gmra.mxu0 %v2777
      %v2830 = vpop.f32.mrf.mxu0
      %v2831 = vadd.f32 0.0, %v2830
      %v2832 = vpop.f32.mrf.mxu0
      %v2833 = vadd.f32 0.0, %v2832
      %2834 = vmatmul.bf16.gmra.mxu0 %v2780
      %v2835 = vpop.f32.mrf.mxu0
      %v2836 = vadd.f32 0.0, %v2835
      %v2837 = vpop.f32.mrf.mxu0
      %v2838 = vadd.f32 0.0, %v2837
      %2839 = vmatmul.bf16.gmra.mxu0 %v2783
      %v2840 = vpop.f32.mrf.mxu0
      %v2841 = vadd.f32 0.0, %v2840
      %v2842 = vpop.f32.mrf.mxu0
      %v2843 = vadd.f32 0.0, %v2842
      %2844 = vmatmul.bf16.gmra.mxu0 %v2786
      %v2845 = vpop.f32.mrf.mxu0
      %v2846 = vadd.f32 0.0, %v2845
      %v2847 = vpop.f32.mrf.mxu0
      %v2848 = vadd.f32 0.0, %v2847
      %2849 = vmatmul.bf16.gmra.mxu0 %v2789
      %v2850 = vpop.f32.mrf.mxu0
      %v2851 = vadd.f32 0.0, %v2850
      %v2852 = vpop.f32.mrf.mxu0
      %2853 = vdwg.mxu0
      %v2854 = vadd.f32 %v2689, %v2801
      %v2855 = vadd.f32 %v2690, %v2803
      %v2856 = vadd.f32 %v2691, %v2806
      %v2857 = vadd.f32 %v2692, %v2808
      %v2858 = vadd.f32 %v2693, %v2811
      %v2859 = vadd.f32 %v2694, %v2813
      %v2860 = vadd.f32 %v2695, %v2816
      %v2861 = vadd.f32 %v2696, %v2818
      %v2862 = vadd.f32 %v2697, %v2821
      %v2863 = vadd.f32 %v2698, %v2823
      %v2864 = vadd.f32 %v2699, %v2826
      %v2865 = vadd.f32 %v2700, %v2828
      %v2866 = vadd.f32 %v2701, %v2831
      %v2867 = vadd.f32 %v2702, %v2833
      %v2868 = vadd.f32 %v2703, %v2836
      %v2869 = vadd.f32 %v2704, %v2838
      %v2870 = vadd.f32 %v2705, %v2841
      %v2871 = vadd.f32 %v2706, %v2843
      %v2872 = vadd.f32 %v2707, %v2846
      %v2873 = vadd.f32 %v2708, %v2848
      %v2874 = vadd.f32 %v2709, %v2851
      %v2875 = vld [vmem:[#allocation2 + $0x13] sm:$0xff]
      %v2876 = vld [vmem:[#allocation2 + $0x1b] sm:$0xff]
      %v2877 = vld [vmem:[#allocation2 + $0x23] sm:$0xff]
      %v2878 = vld [vmem:[#allocation2 + $0x2b] sm:$0xff]
      %v2879 = vld [vmem:[#allocation2 + $0x33] sm:$0xff]
      %v2880 = vld [vmem:[#allocation2 + $0x3b] sm:$0xff]
      %v2881 = vld [vmem:[#allocation2 + $0x43] sm:$0xff]
      %v2882 = vld [vmem:[#allocation2 + $0x4b] sm:$0xff]
      %v2883 = vld [vmem:[#allocation2 + $0x53] sm:$0xff]
      %v2884 = vld [vmem:[#allocation2 + $0x5b] sm:$0xff]
      %v2885 = vld [vmem:[#allocation2 + $0x63] sm:$0xff]
      %v2886 = vld [vmem:[#allocation2 + $0x6b] sm:$0xff]
      %v2887 = vld [vmem:[#allocation2 + $0x73] sm:$0xff]
      %v2888 = vld [vmem:[#allocation2 + $0x7b] sm:$0xff]
      %v2889 = vld [vmem:[#allocation2 + $0x83] sm:$0xff]
      %v2890 = vld [vmem:[#allocation2 + $0x8b] sm:$0xff]
      %v2891 = vld [vmem:[#allocation2 + $0x93] sm:$0xff]
      %v2892 = vld [vmem:[#allocation2 + $0x9b] sm:$0xff]
      %v2893 = vld [vmem:[#allocation2 + $0xa3] sm:$0xff]
      %v2894 = vld [vmem:[#allocation2 + $0xab] sm:$0xff]
      %v2895 = vld [vmem:[#allocation2 + $0xb3] sm:$0x1]
      %v2896 = vpack.c.bf16 %v2876, %v2875
      %v2897 = vpack.c.bf16 %v2878, %v2877
      %v2898 = vpack.c.bf16 %v2880, %v2879
      %v2899 = vpack.c.bf16 %v2882, %v2881
      %v2900 = vpack.c.bf16 %v2884, %v2883
      %v2901 = vpack.c.bf16 %v2886, %v2885
      %v2902 = vpack.c.bf16 %v2888, %v2887
      %v2903 = vpack.c.bf16 %v2890, %v2889
      %v2904 = vpack.c.bf16 %v2892, %v2891
      %v2905 = vpack.c.bf16 %v2894, %v2893
      %v2906 = vpack.c.bf16 %v2895, %v2895
      %v2907 = vld [vmem:[%s3 + $0x90] sm:$0xf]
      %v2908 = vld [vmem:[%s3 + $0x94] sm:$0xf]
      %v2909 = vld [vmem:[%s3 + $0x98] sm:$0xf]
      %v2910 = vld [vmem:[%s3 + $0x9c] sm:$0xf]
      %v2915 = vunpack.c.l.b16 %v2907
      %v2916 = vunpack.c.l.b16 %v2908
      %v2917 = vunpack.c.l.b16 %v2909
      %v2918 = vunpack.c.l.b16 %v2910
      %v2919 = vpack.c.b16 %v2916, %v2915
      %v2920 = vpack.c.b16 %v2918, %v2917
      %v2924 = vsel %vm1401, %v2896, 0
      %v2927 = vsel %vm1401, %v2897, 0
      %v2930 = vsel %vm1401, %v2898, 0
      %v2933 = vsel %vm1401, %v2899, 0
      %v2936 = vsel %vm1401, %v2900, 0
      %v2939 = vsel %vm1401, %v2901, 0
      %v2942 = vsel %vm1401, %v2902, 0
      %v2945 = vsel %vm1401, %v2903, 0
      %v2948 = vsel %vm1401, %v2904, 0
      %v2951 = vsel %vm1401, %v2905, 0
      %v2954 = vsel %vm1401, %v2906, 0
      %2956 = vmatpush.bf16.msra.mxu0 0
      %2957 = vmatpush.bf16.msra.mxu0 0
      %2958 = vmatpush.bf16.msra.mxu0 0
      %2959 = vmatpush.bf16.msra.mxu0 0
      %2960 = vmatpush.bf16.msra.mxu0 0
      %2961 = vmatpush.bf16.msra.mxu0 0
      %2962 = vmatpush.bf16.msra.mxu0 %v2920
      %2963 = vmatpush.bf16.msra.mxu0 %v2919
      %2964 = vmatmul.bf16.gmra.mxu0 %v2924
      %v2965 = vpop.f32.mrf.mxu0
      %v2966 = vadd.f32 0.0, %v2965
      %v2967 = vpop.f32.mrf.mxu0
      %v2968 = vadd.f32 0.0, %v2967
      %2969 = vmatmul.bf16.gmra.mxu0 %v2927
      %v2970 = vpop.f32.mrf.mxu0
      %v2971 = vadd.f32 0.0, %v2970
      %v2972 = vpop.f32.mrf.mxu0
      %v2973 = vadd.f32 0.0, %v2972
      %2974 = vmatmul.bf16.gmra.mxu0 %v2930
      %v2975 = vpop.f32.mrf.mxu0
      %v2976 = vadd.f32 0.0, %v2975
      %v2977 = vpop.f32.mrf.mxu0
      %v2978 = vadd.f32 0.0, %v2977
      %2979 = vmatmul.bf16.gmra.mxu0 %v2933
      %v2980 = vpop.f32.mrf.mxu0
      %v2981 = vadd.f32 0.0, %v2980
      %v2982 = vpop.f32.mrf.mxu0
      %v2983 = vadd.f32 0.0, %v2982
      %2984 = vmatmul.bf16.gmra.mxu0 %v2936
      %v2985 = vpop.f32.mrf.mxu0
      %v2986 = vadd.f32 0.0, %v2985
      %v2987 = vpop.f32.mrf.mxu0
      %v2988 = vadd.f32 0.0, %v2987
      %2989 = vmatmul.bf16.gmra.mxu0 %v2939
      %v2990 = vpop.f32.mrf.mxu0
      %v2991 = vadd.f32 0.0, %v2990
      %v2992 = vpop.f32.mrf.mxu0
      %v2993 = vadd.f32 0.0, %v2992
      %2994 = vmatmul.bf16.gmra.mxu0 %v2942
      %v2995 = vpop.f32.mrf.mxu0
      %v2996 = vadd.f32 0.0, %v2995
      %v2997 = vpop.f32.mrf.mxu0
      %v2998 = vadd.f32 0.0, %v2997
      %2999 = vmatmul.bf16.gmra.mxu0 %v2945
      %v3000 = vpop.f32.mrf.mxu0
      %v3001 = vadd.f32 0.0, %v3000
      %v3002 = vpop.f32.mrf.mxu0
      %v3003 = vadd.f32 0.0, %v3002
      %3004 = vmatmul.bf16.gmra.mxu0 %v2948
      %v3005 = vpop.f32.mrf.mxu0
      %v3006 = vadd.f32 0.0, %v3005
      %v3007 = vpop.f32.mrf.mxu0
      %v3008 = vadd.f32 0.0, %v3007
      %3009 = vmatmul.bf16.gmra.mxu0 %v2951
      %v3010 = vpop.f32.mrf.mxu0
      %v3011 = vadd.f32 0.0, %v3010
      %v3012 = vpop.f32.mrf.mxu0
      %v3013 = vadd.f32 0.0, %v3012
      %3014 = vmatmul.bf16.gmra.mxu0 %v2954
      %v3015 = vpop.f32.mrf.mxu0
      %v3016 = vadd.f32 0.0, %v3015
      %v3017 = vpop.f32.mrf.mxu0
      %3018 = vdwg.mxu0
      %v3019 = vadd.f32 %v2854, %v2966
      %v3020 = vadd.f32 %v2855, %v2968
      %v3021 = vadd.f32 %v2856, %v2971
      %v3022 = vadd.f32 %v2857, %v2973
      %v3023 = vadd.f32 %v2858, %v2976
      %v3024 = vadd.f32 %v2859, %v2978
      %v3025 = vadd.f32 %v2860, %v2981
      %v3026 = vadd.f32 %v2861, %v2983
      %v3027 = vadd.f32 %v2862, %v2986
      %v3028 = vadd.f32 %v2863, %v2988
      %v3029 = vadd.f32 %v2864, %v2991
      %v3030 = vadd.f32 %v2865, %v2993
      %v3031 = vadd.f32 %v2866, %v2996
      %v3032 = vadd.f32 %v2867, %v2998
      %v3033 = vadd.f32 %v2868, %v3001
      %v3034 = vadd.f32 %v2869, %v3003
      %v3035 = vadd.f32 %v2870, %v3006
      %v3036 = vadd.f32 %v2871, %v3008
      %v3037 = vadd.f32 %v2872, %v3011
      %v3038 = vadd.f32 %v2873, %v3013
      %v3039 = vadd.f32 %v2874, %v3016
      %v3040 = vld [vmem:[#allocation2 + $0x1e] sm:$0xff]
      %v3041 = vld [vmem:[#allocation2 + $0x26] sm:$0xff]
      %v3042 = vld [vmem:[#allocation2 + $0x2e] sm:$0xff]
      %v3043 = vld [vmem:[#allocation2 + $0x36] sm:$0xff]
      %v3044 = vld [vmem:[#allocation2 + $0x3e] sm:$0xff]
      %v3045 = vld [vmem:[#allocation2 + $0x46] sm:$0xff]
      %v3046 = vld [vmem:[#allocation2 + $0x4e] sm:$0xff]
      %v3047 = vld [vmem:[#allocation2 + $0x56] sm:$0xff]
      %v3048 = vld [vmem:[#allocation2 + $0x5e] sm:$0xff]
      %v3049 = vld [vmem:[#allocation2 + $0x66] sm:$0xff]
      %v3050 = vld [vmem:[#allocation2 + $0x6e] sm:$0xff]
      %v3051 = vld [vmem:[#allocation2 + $0x76] sm:$0xff]
      %v3052 = vld [vmem:[#allocation2 + $0x7e] sm:$0xff]
      %v3053 = vld [vmem:[#allocation2 + $0x86] sm:$0xff]
      %v3054 = vld [vmem:[#allocation2 + $0x8e] sm:$0xff]
      %v3055 = vld [vmem:[#allocation2 + $0x96] sm:$0xff]
      %v3056 = vld [vmem:[#allocation2 + $0x9e] sm:$0xff]
      %v3057 = vld [vmem:[#allocation2 + $0xa6] sm:$0xff]
      %v3058 = vld [vmem:[#allocation2 + $0xae] sm:$0xff]
      %v3059 = vld [vmem:[#allocation2 + $0xb6] sm:$0xff]
      %v3060 = vld [vmem:[#allocation2 + $0xbe] sm:$0x1]
      %v3061 = vpack.c.bf16 %v3041, %v3040
      %v3062 = vpack.c.bf16 %v3043, %v3042
      %v3063 = vpack.c.bf16 %v3045, %v3044
      %v3064 = vpack.c.bf16 %v3047, %v3046
      %v3065 = vpack.c.bf16 %v3049, %v3048
      %v3066 = vpack.c.bf16 %v3051, %v3050
      %v3067 = vpack.c.bf16 %v3053, %v3052
      %v3068 = vpack.c.bf16 %v3055, %v3054
      %v3069 = vpack.c.bf16 %v3057, %v3056
      %v3070 = vpack.c.bf16 %v3059, %v3058
      %v3071 = vpack.c.bf16 %v3060, %v3060
      %v3072 = vld [vmem:[%s3 + $0xa0] sm:$0xf]
      %v3073 = vld [vmem:[%s3 + $0xa4] sm:$0xf]
      %v3074 = vld [vmem:[%s3 + $0xa8] sm:$0xf]
      %v3075 = vld [vmem:[%s3 + $0xac] sm:$0xf]
      %v3080 = vunpack.c.l.b16 %v3072
      %v3081 = vunpack.c.l.b16 %v3073
      %v3082 = vunpack.c.l.b16 %v3074
      %v3083 = vunpack.c.l.b16 %v3075
      %v3084 = vpack.c.b16 %v3081, %v3080
      %v3085 = vpack.c.b16 %v3083, %v3082
      %v3089 = vsel %vm1401, %v3061, 0
      %v3092 = vsel %vm1401, %v3062, 0
      %v3095 = vsel %vm1401, %v3063, 0
      %v3098 = vsel %vm1401, %v3064, 0
      %v3101 = vsel %vm1401, %v3065, 0
      %v3104 = vsel %vm1401, %v3066, 0
      %v3107 = vsel %vm1401, %v3067, 0
      %v3110 = vsel %vm1401, %v3068, 0
      %v3113 = vsel %vm1401, %v3069, 0
      %v3116 = vsel %vm1401, %v3070, 0
      %v3119 = vsel %vm1401, %v3071, 0
      %3121 = vmatpush.bf16.msra.mxu0 0
      %3122 = vmatpush.bf16.msra.mxu0 0
      %3123 = vmatpush.bf16.msra.mxu0 0
      %3124 = vmatpush.bf16.msra.mxu0 0
      %3125 = vmatpush.bf16.msra.mxu0 0
      %3126 = vmatpush.bf16.msra.mxu0 0
      %3127 = vmatpush.bf16.msra.mxu0 %v3085
      %3128 = vmatpush.bf16.msra.mxu0 %v3084
      %3129 = vmatmul.bf16.gmra.mxu0 %v3089
      %v3130 = vpop.f32.mrf.mxu0
      %v3131 = vadd.f32 0.0, %v3130
      %v3132 = vpop.f32.mrf.mxu0
      %v3133 = vadd.f32 0.0, %v3132
      %3134 = vmatmul.bf16.gmra.mxu0 %v3092
      %v3135 = vpop.f32.mrf.mxu0
      %v3136 = vadd.f32 0.0, %v3135
      %v3137 = vpop.f32.mrf.mxu0
      %v3138 = vadd.f32 0.0, %v3137
      %3139 = vmatmul.bf16.gmra.mxu0 %v3095
      %v3140 = vpop.f32.mrf.mxu0
      %v3141 = vadd.f32 0.0, %v3140
      %v3142 = vpop.f32.mrf.mxu0
      %v3143 = vadd.f32 0.0, %v3142
      %3144 = vmatmul.bf16.gmra.mxu0 %v3098
      %v3145 = vpop.f32.mrf.mxu0
      %v3146 = vadd.f32 0.0, %v3145
      %v3147 = vpop.f32.mrf.mxu0
      %v3148 = vadd.f32 0.0, %v3147
      %3149 = vmatmul.bf16.gmra.mxu0 %v3101
      %v3150 = vpop.f32.mrf.mxu0
      %v3151 = vadd.f32 0.0, %v3150
      %v3152 = vpop.f32.mrf.mxu0
      %v3153 = vadd.f32 0.0, %v3152
      %3154 = vmatmul.bf16.gmra.mxu0 %v3104
      %v3155 = vpop.f32.mrf.mxu0
      %v3156 = vadd.f32 0.0, %v3155
      %v3157 = vpop.f32.mrf.mxu0
      %v3158 = vadd.f32 0.0, %v3157
      %3159 = vmatmul.bf16.gmra.mxu0 %v3107
      %v3160 = vpop.f32.mrf.mxu0
      %v3161 = vadd.f32 0.0, %v3160
      %v3162 = vpop.f32.mrf.mxu0
      %v3163 = vadd.f32 0.0, %v3162
      %3164 = vmatmul.bf16.gmra.mxu0 %v3110
      %v3165 = vpop.f32.mrf.mxu0
      %v3166 = vadd.f32 0.0, %v3165
      %v3167 = vpop.f32.mrf.mxu0
      %v3168 = vadd.f32 0.0, %v3167
      %3169 = vmatmul.bf16.gmra.mxu0 %v3113
      %v3170 = vpop.f32.mrf.mxu0
      %v3171 = vadd.f32 0.0, %v3170
      %v3172 = vpop.f32.mrf.mxu0
      %v3173 = vadd.f32 0.0, %v3172
      %3174 = vmatmul.bf16.gmra.mxu0 %v3116
      %v3175 = vpop.f32.mrf.mxu0
      %v3176 = vadd.f32 0.0, %v3175
      %v3177 = vpop.f32.mrf.mxu0
      %v3178 = vadd.f32 0.0, %v3177
      %3179 = vmatmul.bf16.gmra.mxu0 %v3119
      %v3180 = vpop.f32.mrf.mxu0
      %v3181 = vadd.f32 0.0, %v3180
      %v3182 = vpop.f32.mrf.mxu0
      %3183 = vdwg.mxu0
      %v3184 = vadd.f32 %v3019, %v3131
      %v3185 = vadd.f32 %v3020, %v3133
      %v3186 = vadd.f32 %v3021, %v3136
      %v3187 = vadd.f32 %v3022, %v3138
      %v3188 = vadd.f32 %v3023, %v3141
      %v3189 = vadd.f32 %v3024, %v3143
      %v3190 = vadd.f32 %v3025, %v3146
      %v3191 = vadd.f32 %v3026, %v3148
      %v3192 = vadd.f32 %v3027, %v3151
      %v3193 = vadd.f32 %v3028, %v3153
      %v3194 = vadd.f32 %v3029, %v3156
      %v3195 = vadd.f32 %v3030, %v3158
      %v3196 = vadd.f32 %v3031, %v3161
      %v3197 = vadd.f32 %v3032, %v3163
      %v3198 = vadd.f32 %v3033, %v3166
      %v3199 = vadd.f32 %v3034, %v3168
      %v3200 = vadd.f32 %v3035, %v3171
      %v3201 = vadd.f32 %v3036, %v3173
      %v3202 = vadd.f32 %v3037, %v3176
      %v3203 = vadd.f32 %v3038, %v3178
      %v3204 = vadd.f32 %v3039, %v3181
      %v3205 = vld [vmem:[#allocation2 + $0x1f] sm:$0xff]
      %v3206 = vld [vmem:[#allocation2 + $0x27] sm:$0xff]
      %v3207 = vld [vmem:[#allocation2 + $0x2f] sm:$0xff]
      %v3208 = vld [vmem:[#allocation2 + $0x37] sm:$0xff]
      %v3209 = vld [vmem:[#allocation2 + $0x3f] sm:$0xff]
      %v3210 = vld [vmem:[#allocation2 + $0x47] sm:$0xff]
      %v3211 = vld [vmem:[#allocation2 + $0x4f] sm:$0xff]
      %v3212 = vld [vmem:[#allocation2 + $0x57] sm:$0xff]
      %v3213 = vld [vmem:[#allocation2 + $0x5f] sm:$0xff]
      %v3214 = vld [vmem:[#allocation2 + $0x67] sm:$0xff]
      %v3215 = vld [vmem:[#allocation2 + $0x6f] sm:$0xff]
      %v3216 = vld [vmem:[#allocation2 + $0x77] sm:$0xff]
      %v3217 = vld [vmem:[#allocation2 + $0x7f] sm:$0xff]
      %v3218 = vld [vmem:[#allocation2 + $0x87] sm:$0xff]
      %v3219 = vld [vmem:[#allocation2 + $0x8f] sm:$0xff]
      %v3220 = vld [vmem:[#allocation2 + $0x97] sm:$0xff]
      %v3221 = vld [vmem:[#allocation2 + $0x9f] sm:$0xff]
      %v3222 = vld [vmem:[#allocation2 + $0xa7] sm:$0xff]
      %v3223 = vld [vmem:[#allocation2 + $0xaf] sm:$0xff]
      %v3224 = vld [vmem:[#allocation2 + $0xb7] sm:$0xff]
      %v3225 = vld [vmem:[#allocation2 + $0xbf] sm:$0x1]
      %v3226 = vpack.c.bf16 %v3206, %v3205
      %v3227 = vpack.c.bf16 %v3208, %v3207
      %v3228 = vpack.c.bf16 %v3210, %v3209
      %v3229 = vpack.c.bf16 %v3212, %v3211
      %v3230 = vpack.c.bf16 %v3214, %v3213
      %v3231 = vpack.c.bf16 %v3216, %v3215
      %v3232 = vpack.c.bf16 %v3218, %v3217
      %v3233 = vpack.c.bf16 %v3220, %v3219
      %v3234 = vpack.c.bf16 %v3222, %v3221
      %v3235 = vpack.c.bf16 %v3224, %v3223
      %v3236 = vpack.c.bf16 %v3225, %v3225
      %v3237 = vld [vmem:[%s3 + $0xb0] sm:$0xf]
      %v3238 = vld [vmem:[%s3 + $0xb4] sm:$0xf]
      %v3239 = vld [vmem:[%s3 + $0xb8] sm:$0xf]
      %v3240 = vld [vmem:[%s3 + $0xbc] sm:$0xf]
      %v3245 = vunpack.c.l.b16 %v3237
      %v3246 = vunpack.c.l.b16 %v3238
      %v3247 = vunpack.c.l.b16 %v3239
      %v3248 = vunpack.c.l.b16 %v3240
      %v3249 = vpack.c.b16 %v3246, %v3245
      %v3250 = vpack.c.b16 %v3248, %v3247
      %v3254 = vsel %vm1401, %v3226, 0
      %v3257 = vsel %vm1401, %v3227, 0
      %v3260 = vsel %vm1401, %v3228, 0
      %v3263 = vsel %vm1401, %v3229, 0
      %v3266 = vsel %vm1401, %v3230, 0
      %v3269 = vsel %vm1401, %v3231, 0
      %v3272 = vsel %vm1401, %v3232, 0
      %v3275 = vsel %vm1401, %v3233, 0
      %v3278 = vsel %vm1401, %v3234, 0
      %v3281 = vsel %vm1401, %v3235, 0
      %v3284 = vsel %vm1401, %v3236, 0
      %3286 = vmatpush.bf16.msra.mxu0 0
      %3287 = vmatpush.bf16.msra.mxu0 0
      %3288 = vmatpush.bf16.msra.mxu0 0
      %3289 = vmatpush.bf16.msra.mxu0 0
      %3290 = vmatpush.bf16.msra.mxu0 0
      %3291 = vmatpush.bf16.msra.mxu0 0
      %3292 = vmatpush.bf16.msra.mxu0 %v3250
      %3293 = vmatpush.bf16.msra.mxu0 %v3249
      %3294 = vmatmul.bf16.gmra.mxu0 %v3254
      %v3295 = vpop.f32.mrf.mxu0
      %v3296 = vadd.f32 0.0, %v3295
      %v3297 = vpop.f32.mrf.mxu0
      %v3298 = vadd.f32 0.0, %v3297
      %3299 = vmatmul.bf16.gmra.mxu0 %v3257
      %v3300 = vpop.f32.mrf.mxu0
      %v3301 = vadd.f32 0.0, %v3300
      %v3302 = vpop.f32.mrf.mxu0
      %v3303 = vadd.f32 0.0, %v3302
      %3304 = vmatmul.bf16.gmra.mxu0 %v3260
      %v3305 = vpop.f32.mrf.mxu0
      %v3306 = vadd.f32 0.0, %v3305
      %v3307 = vpop.f32.mrf.mxu0
      %v3308 = vadd.f32 0.0, %v3307
      %3309 = vmatmul.bf16.gmra.mxu0 %v3263
      %v3310 = vpop.f32.mrf.mxu0
      %v3311 = vadd.f32 0.0, %v3310
      %v3312 = vpop.f32.mrf.mxu0
      %v3313 = vadd.f32 0.0, %v3312
      %3314 = vmatmul.bf16.gmra.mxu0 %v3266
      %v3315 = vpop.f32.mrf.mxu0
      %v3316 = vadd.f32 0.0, %v3315
      %v3317 = vpop.f32.mrf.mxu0
      %v3318 = vadd.f32 0.0, %v3317
      %3319 = vmatmul.bf16.gmra.mxu0 %v3269
      %v3320 = vpop.f32.mrf.mxu0
      %v3321 = vadd.f32 0.0, %v3320
      %v3322 = vpop.f32.mrf.mxu0
      %v3323 = vadd.f32 0.0, %v3322
      %3324 = vmatmul.bf16.gmra.mxu0 %v3272
      %v3325 = vpop.f32.mrf.mxu0
      %v3326 = vadd.f32 0.0, %v3325
      %v3327 = vpop.f32.mrf.mxu0
      %v3328 = vadd.f32 0.0, %v3327
      %3329 = vmatmul.bf16.gmra.mxu0 %v3275
      %v3330 = vpop.f32.mrf.mxu0
      %v3331 = vadd.f32 0.0, %v3330
      %v3332 = vpop.f32.mrf.mxu0
      %v3333 = vadd.f32 0.0, %v3332
      %3334 = vmatmul.bf16.gmra.mxu0 %v3278
      %v3335 = vpop.f32.mrf.mxu0
      %v3336 = vadd.f32 0.0, %v3335
      %v3337 = vpop.f32.mrf.mxu0
      %v3338 = vadd.f32 0.0, %v3337
      %3339 = vmatmul.bf16.gmra.mxu0 %v3281
      %v3340 = vpop.f32.mrf.mxu0
      %v3341 = vadd.f32 0.0, %v3340
      %v3342 = vpop.f32.mrf.mxu0
      %v3343 = vadd.f32 0.0, %v3342
      %3344 = vmatmul.bf16.gmra.mxu0 %v3284
      %v3345 = vpop.f32.mrf.mxu0
      %v3346 = vadd.f32 0.0, %v3345
      %v3347 = vpop.f32.mrf.mxu0
      %3348 = vdwg.mxu0
      %v3349 = vadd.f32 %v3184, %v3296
      %v3350 = vadd.f32 %v3185, %v3298
      %v3351 = vadd.f32 %v3186, %v3301
      %v3352 = vadd.f32 %v3187, %v3303
      %v3353 = vadd.f32 %v3188, %v3306
      %v3354 = vadd.f32 %v3189, %v3308
      %v3355 = vadd.f32 %v3190, %v3311
      %v3356 = vadd.f32 %v3191, %v3313
      %v3357 = vadd.f32 %v3192, %v3316
      %v3358 = vadd.f32 %v3193, %v3318
      %v3359 = vadd.f32 %v3194, %v3321
      %v3360 = vadd.f32 %v3195, %v3323
      %v3361 = vadd.f32 %v3196, %v3326
      %v3362 = vadd.f32 %v3197, %v3328
      %v3363 = vadd.f32 %v3198, %v3331
      %v3364 = vadd.f32 %v3199, %v3333
      %v3365 = vadd.f32 %v3200, %v3336
      %v3366 = vadd.f32 %v3201, %v3338
      %v3367 = vadd.f32 %v3202, %v3341
      %v3368 = vadd.f32 %v3203, %v3343
      %v3369 = vadd.f32 %v3204, %v3346
      %v3370 = vld [vmem:[#allocation2 + $0x20] sm:$0xff]
      %v3371 = vld [vmem:[#allocation2 + $0x28] sm:$0xff]
      %v3372 = vld [vmem:[#allocation2 + $0x30] sm:$0xff]
      %v3373 = vld [vmem:[#allocation2 + $0x38] sm:$0xff]
      %v3374 = vld [vmem:[#allocation2 + $0x40] sm:$0xff]
      %v3375 = vld [vmem:[#allocation2 + $0x48] sm:$0xff]
      %v3376 = vld [vmem:[#allocation2 + $0x50] sm:$0xff]
      %v3377 = vld [vmem:[#allocation2 + $0x58] sm:$0xff]
      %v3378 = vld [vmem:[#allocation2 + $0x60] sm:$0xff]
      %v3379 = vld [vmem:[#allocation2 + $0x68] sm:$0xff]
      %v3380 = vld [vmem:[#allocation2 + $0x70] sm:$0xff]
      %v3381 = vld [vmem:[#allocation2 + $0x78] sm:$0xff]
      %v3382 = vld [vmem:[#allocation2 + $0x80] sm:$0xff]
      %v3383 = vld [vmem:[#allocation2 + $0x88] sm:$0xff]
      %v3384 = vld [vmem:[#allocation2 + $0x90] sm:$0xff]
      %v3385 = vld [vmem:[#allocation2 + $0x98] sm:$0xff]
      %v3386 = vld [vmem:[#allocation2 + $0xa0] sm:$0xff]
      %v3387 = vld [vmem:[#allocation2 + $0xa8] sm:$0xff]
      %v3388 = vld [vmem:[#allocation2 + $0xb0] sm:$0xff]
      %v3389 = vld [vmem:[#allocation2 + $0xb8] sm:$0xff]
      %v3390 = vld [vmem:[#allocation2 + $0xc0] sm:$0x1]
      %v3391 = vpack.c.bf16 %v3371, %v3370
      %v3392 = vpack.c.bf16 %v3373, %v3372
      %v3393 = vpack.c.bf16 %v3375, %v3374
      %v3394 = vpack.c.bf16 %v3377, %v3376
      %v3395 = vpack.c.bf16 %v3379, %v3378
      %v3396 = vpack.c.bf16 %v3381, %v3380
      %v3397 = vpack.c.bf16 %v3383, %v3382
      %v3398 = vpack.c.bf16 %v3385, %v3384
      %v3399 = vpack.c.bf16 %v3387, %v3386
      %v3400 = vpack.c.bf16 %v3389, %v3388
      %v3401 = vpack.c.bf16 %v3390, %v3390
      %v3402 = vld [vmem:[%s3 + $0xc0] sm:$0xf]
      %v3403 = vld [vmem:[%s3 + $0xc4] sm:$0xf]
      %v3404 = vld [vmem:[%s3 + $0xc8] sm:$0xf]
      %v3405 = vld [vmem:[%s3 + $0xcc] sm:$0xf]
      %v3410 = vunpack.c.l.b16 %v3402
      %v3411 = vunpack.c.l.b16 %v3403
      %v3412 = vunpack.c.l.b16 %v3404
      %v3413 = vunpack.c.l.b16 %v3405
      %v3414 = vpack.c.b16 %v3411, %v3410
      %v3415 = vpack.c.b16 %v3413, %v3412
      %v3419 = vsel %vm1401, %v3391, 0
      %v3422 = vsel %vm1401, %v3392, 0
      %v3425 = vsel %vm1401, %v3393, 0
      %v3428 = vsel %vm1401, %v3394, 0
      %v3431 = vsel %vm1401, %v3395, 0
      %v3434 = vsel %vm1401, %v3396, 0
      %v3437 = vsel %vm1401, %v3397, 0
      %v3440 = vsel %vm1401, %v3398, 0
      %v3443 = vsel %vm1401, %v3399, 0
      %v3446 = vsel %vm1401, %v3400, 0
      %v3449 = vsel %vm1401, %v3401, 0
      %3451 = vmatpush.bf16.msra.mxu0 0
      %3452 = vmatpush.bf16.msra.mxu0 0
      %3453 = vmatpush.bf16.msra.mxu0 0
      %3454 = vmatpush.bf16.msra.mxu0 0
      %3455 = vmatpush.bf16.msra.mxu0 0
      %3456 = vmatpush.bf16.msra.mxu0 0
      %3457 = vmatpush.bf16.msra.mxu0 %v3415
      %3458 = vmatpush.bf16.msra.mxu0 %v3414
      %3459 = vmatmul.bf16.gmra.mxu0 %v3419
      %v3460 = vpop.f32.mrf.mxu0
      %v3461 = vadd.f32 0.0, %v3460
      %v3462 = vpop.f32.mrf.mxu0
      %v3463 = vadd.f32 0.0, %v3462
      %3464 = vmatmul.bf16.gmra.mxu0 %v3422
      %v3465 = vpop.f32.mrf.mxu0
      %v3466 = vadd.f32 0.0, %v3465
      %v3467 = vpop.f32.mrf.mxu0
      %v3468 = vadd.f32 0.0, %v3467
      %3469 = vmatmul.bf16.gmra.mxu0 %v3425
      %v3470 = vpop.f32.mrf.mxu0
      %v3471 = vadd.f32 0.0, %v3470
      %v3472 = vpop.f32.mrf.mxu0
      %v3473 = vadd.f32 0.0, %v3472
      %3474 = vmatmul.bf16.gmra.mxu0 %v3428
      %v3475 = vpop.f32.mrf.mxu0
      %v3476 = vadd.f32 0.0, %v3475
      %v3477 = vpop.f32.mrf.mxu0
      %v3478 = vadd.f32 0.0, %v3477
      %3479 = vmatmul.bf16.gmra.mxu0 %v3431
      %v3480 = vpop.f32.mrf.mxu0
      %v3481 = vadd.f32 0.0, %v3480
      %v3482 = vpop.f32.mrf.mxu0
      %v3483 = vadd.f32 0.0, %v3482
      %3484 = vmatmul.bf16.gmra.mxu0 %v3434
      %v3485 = vpop.f32.mrf.mxu0
      %v3486 = vadd.f32 0.0, %v3485
      %v3487 = vpop.f32.mrf.mxu0
      %v3488 = vadd.f32 0.0, %v3487
      %3489 = vmatmul.bf16.gmra.mxu0 %v3437
      %v3490 = vpop.f32.mrf.mxu0
      %v3491 = vadd.f32 0.0, %v3490
      %v3492 = vpop.f32.mrf.mxu0
      %v3493 = vadd.f32 0.0, %v3492
      %3494 = vmatmul.bf16.gmra.mxu0 %v3440
      %v3495 = vpop.f32.mrf.mxu0
      %v3496 = vadd.f32 0.0, %v3495
      %v3497 = vpop.f32.mrf.mxu0
      %v3498 = vadd.f32 0.0, %v3497
      %3499 = vmatmul.bf16.gmra.mxu0 %v3443
      %v3500 = vpop.f32.mrf.mxu0
      %v3501 = vadd.f32 0.0, %v3500
      %v3502 = vpop.f32.mrf.mxu0
      %v3503 = vadd.f32 0.0, %v3502
      %3504 = vmatmul.bf16.gmra.mxu0 %v3446
      %v3505 = vpop.f32.mrf.mxu0
      %v3506 = vadd.f32 0.0, %v3505
      %v3507 = vpop.f32.mrf.mxu0
      %v3508 = vadd.f32 0.0, %v3507
      %3509 = vmatmul.bf16.gmra.mxu0 %v3449
      %v3510 = vpop.f32.mrf.mxu0
      %v3511 = vadd.f32 0.0, %v3510
      %v3512 = vpop.f32.mrf.mxu0
      %3513 = vdwg.mxu0
      %v3514 = vadd.f32 %v3349, %v3461
      %v3515 = vadd.f32 %v3350, %v3463
      %v3516 = vadd.f32 %v3351, %v3466
      %v3517 = vadd.f32 %v3352, %v3468
      %v3518 = vadd.f32 %v3353, %v3471
      %v3519 = vadd.f32 %v3354, %v3473
      %v3520 = vadd.f32 %v3355, %v3476
      %v3521 = vadd.f32 %v3356, %v3478
      %v3522 = vadd.f32 %v3357, %v3481
      %v3523 = vadd.f32 %v3358, %v3483
      %v3524 = vadd.f32 %v3359, %v3486
      %v3525 = vadd.f32 %v3360, %v3488
      %v3526 = vadd.f32 %v3361, %v3491
      %v3527 = vadd.f32 %v3362, %v3493
      %v3528 = vadd.f32 %v3363, %v3496
      %v3529 = vadd.f32 %v3364, %v3498
      %v3530 = vadd.f32 %v3365, %v3501
      %v3531 = vadd.f32 %v3366, %v3503
      %v3532 = vadd.f32 %v3367, %v3506
      %v3533 = vadd.f32 %v3368, %v3508
      %v3534 = vadd.f32 %v3369, %v3511
      %v3535 = vld [vmem:[#allocation2 + $0x21] sm:$0xff]
      %v3536 = vld [vmem:[#allocation2 + $0x29] sm:$0xff]
      %v3537 = vld [vmem:[#allocation2 + $0x31] sm:$0xff]
      %v3538 = vld [vmem:[#allocation2 + $0x39] sm:$0xff]
      %v3539 = vld [vmem:[#allocation2 + $0x41] sm:$0xff]
      %v3540 = vld [vmem:[#allocation2 + $0x49] sm:$0xff]
      %v3541 = vld [vmem:[#allocation2 + $0x51] sm:$0xff]
      %v3542 = vld [vmem:[#allocation2 + $0x59] sm:$0xff]
      %v3543 = vld [vmem:[#allocation2 + $0x61] sm:$0xff]
      %v3544 = vld [vmem:[#allocation2 + $0x69] sm:$0xff]
      %v3545 = vld [vmem:[#allocation2 + $0x71] sm:$0xff]
      %v3546 = vld [vmem:[#allocation2 + $0x79] sm:$0xff]
      %v3547 = vld [vmem:[#allocation2 + $0x81] sm:$0xff]
      %v3548 = vld [vmem:[#allocation2 + $0x89] sm:$0xff]
      %v3549 = vld [vmem:[#allocation2 + $0x91] sm:$0xff]
      %v3550 = vld [vmem:[#allocation2 + $0x99] sm:$0xff]
      %v3551 = vld [vmem:[#allocation2 + $0xa1] sm:$0xff]
      %v3552 = vld [vmem:[#allocation2 + $0xa9] sm:$0xff]
      %v3553 = vld [vmem:[#allocation2 + $0xb1] sm:$0xff]
      %v3554 = vld [vmem:[#allocation2 + $0xb9] sm:$0xff]
      %v3555 = vld [vmem:[#allocation2 + $0xc1] sm:$0x1]
      %v3556 = vpack.c.bf16 %v3536, %v3535
      %v3557 = vpack.c.bf16 %v3538, %v3537
      %v3558 = vpack.c.bf16 %v3540, %v3539
      %v3559 = vpack.c.bf16 %v3542, %v3541
      %v3560 = vpack.c.bf16 %v3544, %v3543
      %v3561 = vpack.c.bf16 %v3546, %v3545
      %v3562 = vpack.c.bf16 %v3548, %v3547
      %v3563 = vpack.c.bf16 %v3550, %v3549
      %v3564 = vpack.c.bf16 %v3552, %v3551
      %v3565 = vpack.c.bf16 %v3554, %v3553
      %v3566 = vpack.c.bf16 %v3555, %v3555
      %v3567 = vld [vmem:[%s3 + $0xd0] sm:$0xf]
      %v3568 = vld [vmem:[%s3 + $0xd4] sm:$0xf]
      %v3569 = vld [vmem:[%s3 + $0xd8] sm:$0xf]
      %v3570 = vld [vmem:[%s3 + $0xdc] sm:$0xf]
      %v3575 = vunpack.c.l.b16 %v3567
      %v3576 = vunpack.c.l.b16 %v3568
      %v3577 = vunpack.c.l.b16 %v3569
      %v3578 = vunpack.c.l.b16 %v3570
      %v3579 = vpack.c.b16 %v3576, %v3575
      %v3580 = vpack.c.b16 %v3578, %v3577
      %v3584 = vsel %vm1401, %v3556, 0
      %v3587 = vsel %vm1401, %v3557, 0
      %v3590 = vsel %vm1401, %v3558, 0
      %v3593 = vsel %vm1401, %v3559, 0
      %v3596 = vsel %vm1401, %v3560, 0
      %v3599 = vsel %vm1401, %v3561, 0
      %v3602 = vsel %vm1401, %v3562, 0
      %v3605 = vsel %vm1401, %v3563, 0
      %v3608 = vsel %vm1401, %v3564, 0
      %v3611 = vsel %vm1401, %v3565, 0
      %v3614 = vsel %vm1401, %v3566, 0
      %3616 = vmatpush.bf16.msra.mxu0 0
      %3617 = vmatpush.bf16.msra.mxu0 0
      %3618 = vmatpush.bf16.msra.mxu0 0
      %3619 = vmatpush.bf16.msra.mxu0 0
      %3620 = vmatpush.bf16.msra.mxu0 0
      %3621 = vmatpush.bf16.msra.mxu0 0
      %3622 = vmatpush.bf16.msra.mxu0 %v3580
      %3623 = vmatpush.bf16.msra.mxu0 %v3579
      %3624 = vmatmul.bf16.gmra.mxu0 %v3584
      %v3625 = vpop.f32.mrf.mxu0
      %v3626 = vadd.f32 0.0, %v3625
      %v3627 = vpop.f32.mrf.mxu0
      %v3628 = vadd.f32 0.0, %v3627
      %3629 = vmatmul.bf16.gmra.mxu0 %v3587
      %v3630 = vpop.f32.mrf.mxu0
      %v3631 = vadd.f32 0.0, %v3630
      %v3632 = vpop.f32.mrf.mxu0
      %v3633 = vadd.f32 0.0, %v3632
      %3634 = vmatmul.bf16.gmra.mxu0 %v3590
      %v3635 = vpop.f32.mrf.mxu0
      %v3636 = vadd.f32 0.0, %v3635
      %v3637 = vpop.f32.mrf.mxu0
      %v3638 = vadd.f32 0.0, %v3637
      %3639 = vmatmul.bf16.gmra.mxu0 %v3593
      %v3640 = vpop.f32.mrf.mxu0
      %v3641 = vadd.f32 0.0, %v3640
      %v3642 = vpop.f32.mrf.mxu0
      %v3643 = vadd.f32 0.0, %v3642
      %3644 = vmatmul.bf16.gmra.mxu0 %v3596
      %v3645 = vpop.f32.mrf.mxu0
      %v3646 = vadd.f32 0.0, %v3645
      %v3647 = vpop.f32.mrf.mxu0
      %v3648 = vadd.f32 0.0, %v3647
      %3649 = vmatmul.bf16.gmra.mxu0 %v3599
      %v3650 = vpop.f32.mrf.mxu0
      %v3651 = vadd.f32 0.0, %v3650
      %v3652 = vpop.f32.mrf.mxu0
      %v3653 = vadd.f32 0.0, %v3652
      %3654 = vmatmul.bf16.gmra.mxu0 %v3602
      %v3655 = vpop.f32.mrf.mxu0
      %v3656 = vadd.f32 0.0, %v3655
      %v3657 = vpop.f32.mrf.mxu0
      %v3658 = vadd.f32 0.0, %v3657
      %3659 = vmatmul.bf16.gmra.mxu0 %v3605
      %v3660 = vpop.f32.mrf.mxu0
      %v3661 = vadd.f32 0.0, %v3660
      %v3662 = vpop.f32.mrf.mxu0
      %v3663 = vadd.f32 0.0, %v3662
      %3664 = vmatmul.bf16.gmra.mxu0 %v3608
      %v3665 = vpop.f32.mrf.mxu0
      %v3666 = vadd.f32 0.0, %v3665
      %v3667 = vpop.f32.mrf.mxu0
      %v3668 = vadd.f32 0.0, %v3667
      %3669 = vmatmul.bf16.gmra.mxu0 %v3611
      %v3670 = vpop.f32.mrf.mxu0
      %v3671 = vadd.f32 0.0, %v3670
      %v3672 = vpop.f32.mrf.mxu0
      %v3673 = vadd.f32 0.0, %v3672
      %3674 = vmatmul.bf16.gmra.mxu0 %v3614
      %v3675 = vpop.f32.mrf.mxu0
      %v3676 = vadd.f32 0.0, %v3675
      %v3677 = vpop.f32.mrf.mxu0
      %3678 = vdwg.mxu0
      %v3679 = vadd.f32 %v3514, %v3626
      %v3680 = vadd.f32 %v3515, %v3628
      %v3681 = vadd.f32 %v3516, %v3631
      %v3682 = vadd.f32 %v3517, %v3633
      %v3683 = vadd.f32 %v3518, %v3636
      %v3684 = vadd.f32 %v3519, %v3638
      %v3685 = vadd.f32 %v3520, %v3641
      %v3686 = vadd.f32 %v3521, %v3643
      %v3687 = vadd.f32 %v3522, %v3646
      %v3688 = vadd.f32 %v3523, %v3648
      %v3689 = vadd.f32 %v3524, %v3651
      %v3690 = vadd.f32 %v3525, %v3653
      %v3691 = vadd.f32 %v3526, %v3656
      %v3692 = vadd.f32 %v3527, %v3658
      %v3693 = vadd.f32 %v3528, %v3661
      %v3694 = vadd.f32 %v3529, %v3663
      %v3695 = vadd.f32 %v3530, %v3666
      %v3696 = vadd.f32 %v3531, %v3668
      %v3697 = vadd.f32 %v3532, %v3671
      %v3698 = vadd.f32 %v3533, %v3673
      %v3699 = vadd.f32 %v3534, %v3676
      %v3700 = vld [vmem:[#allocation2 + $0x22] sm:$0xff]
      %v3701 = vld [vmem:[#allocation2 + $0x2a] sm:$0xff]
      %v3702 = vld [vmem:[#allocation2 + $0x32] sm:$0xff]
      %v3703 = vld [vmem:[#allocation2 + $0x3a] sm:$0xff]
      %v3704 = vld [vmem:[#allocation2 + $0x42] sm:$0xff]
      %v3705 = vld [vmem:[#allocation2 + $0x4a] sm:$0xff]
      %v3706 = vld [vmem:[#allocation2 + $0x52] sm:$0xff]
      %v3707 = vld [vmem:[#allocation2 + $0x5a] sm:$0xff]
      %v3708 = vld [vmem:[#allocation2 + $0x62] sm:$0xff]
      %v3709 = vld [vmem:[#allocation2 + $0x6a] sm:$0xff]
      %v3710 = vld [vmem:[#allocation2 + $0x72] sm:$0xff]
      %v3711 = vld [vmem:[#allocation2 + $0x7a] sm:$0xff]
      %v3712 = vld [vmem:[#allocation2 + $0x82] sm:$0xff]
      %v3713 = vld [vmem:[#allocation2 + $0x8a] sm:$0xff]
      %v3714 = vld [vmem:[#allocation2 + $0x92] sm:$0xff]
      %v3715 = vld [vmem:[#allocation2 + $0x9a] sm:$0xff]
      %v3716 = vld [vmem:[#allocation2 + $0xa2] sm:$0xff]
      %v3717 = vld [vmem:[#allocation2 + $0xaa] sm:$0xff]
      %v3718 = vld [vmem:[#allocation2 + $0xb2] sm:$0xff]
      %v3719 = vld [vmem:[#allocation2 + $0xba] sm:$0xff]
      %v3720 = vld [vmem:[#allocation2 + $0xc2] sm:$0x1]
      %v3721 = vpack.c.bf16 %v3701, %v3700
      %v3722 = vpack.c.bf16 %v3703, %v3702
      %v3723 = vpack.c.bf16 %v3705, %v3704
      %v3724 = vpack.c.bf16 %v3707, %v3706
      %v3725 = vpack.c.bf16 %v3709, %v3708
      %v3726 = vpack.c.bf16 %v3711, %v3710
      %v3727 = vpack.c.bf16 %v3713, %v3712
      %v3728 = vpack.c.bf16 %v3715, %v3714
      %v3729 = vpack.c.bf16 %v3717, %v3716
      %v3730 = vpack.c.bf16 %v3719, %v3718
      %v3731 = vpack.c.bf16 %v3720, %v3720
      %v3732 = vld [vmem:[%s3 + $0xe0] sm:$0xf]
      %v3733 = vld [vmem:[%s3 + $0xe4] sm:$0xf]
      %v3734 = vld [vmem:[%s3 + $0xe8] sm:$0xf]
      %v3735 = vld [vmem:[%s3 + $0xec] sm:$0xf]
      %v3740 = vunpack.c.l.b16 %v3732
      %v3741 = vunpack.c.l.b16 %v3733
      %v3742 = vunpack.c.l.b16 %v3734
      %v3743 = vunpack.c.l.b16 %v3735
      %v3744 = vpack.c.b16 %v3741, %v3740
      %v3745 = vpack.c.b16 %v3743, %v3742
      %v3749 = vsel %vm1401, %v3721, 0
      %v3752 = vsel %vm1401, %v3722, 0
      %v3755 = vsel %vm1401, %v3723, 0
      %v3758 = vsel %vm1401, %v3724, 0
      %v3761 = vsel %vm1401, %v3725, 0
      %v3764 = vsel %vm1401, %v3726, 0
      %v3767 = vsel %vm1401, %v3727, 0
      %v3770 = vsel %vm1401, %v3728, 0
      %v3773 = vsel %vm1401, %v3729, 0
      %v3776 = vsel %vm1401, %v3730, 0
      %v3779 = vsel %vm1401, %v3731, 0
      %3781 = vmatpush.bf16.msra.mxu0 0
      %3782 = vmatpush.bf16.msra.mxu0 0
      %3783 = vmatpush.bf16.msra.mxu0 0
      %3784 = vmatpush.bf16.msra.mxu0 0
      %3785 = vmatpush.bf16.msra.mxu0 0
      %3786 = vmatpush.bf16.msra.mxu0 0
      %3787 = vmatpush.bf16.msra.mxu0 %v3745
      %3788 = vmatpush.bf16.msra.mxu0 %v3744
      %3789 = vmatmul.bf16.gmra.mxu0 %v3749
      %v3790 = vpop.f32.mrf.mxu0
      %v3791 = vadd.f32 0.0, %v3790
      %v3792 = vpop.f32.mrf.mxu0
      %v3793 = vadd.f32 0.0, %v3792
      %3794 = vmatmul.bf16.gmra.mxu0 %v3752
      %v3795 = vpop.f32.mrf.mxu0
      %v3796 = vadd.f32 0.0, %v3795
      %v3797 = vpop.f32.mrf.mxu0
      %v3798 = vadd.f32 0.0, %v3797
      %3799 = vmatmul.bf16.gmra.mxu0 %v3755
      %v3800 = vpop.f32.mrf.mxu0
      %v3801 = vadd.f32 0.0, %v3800
      %v3802 = vpop.f32.mrf.mxu0
      %v3803 = vadd.f32 0.0, %v3802
      %3804 = vmatmul.bf16.gmra.mxu0 %v3758
      %v3805 = vpop.f32.mrf.mxu0
      %v3806 = vadd.f32 0.0, %v3805
      %v3807 = vpop.f32.mrf.mxu0
      %v3808 = vadd.f32 0.0, %v3807
      %3809 = vmatmul.bf16.gmra.mxu0 %v3761
      %v3810 = vpop.f32.mrf.mxu0
      %v3811 = vadd.f32 0.0, %v3810
      %v3812 = vpop.f32.mrf.mxu0
      %v3813 = vadd.f32 0.0, %v3812
      %3814 = vmatmul.bf16.gmra.mxu0 %v3764
      %v3815 = vpop.f32.mrf.mxu0
      %v3816 = vadd.f32 0.0, %v3815
      %v3817 = vpop.f32.mrf.mxu0
      %v3818 = vadd.f32 0.0, %v3817
      %3819 = vmatmul.bf16.gmra.mxu0 %v3767
      %v3820 = vpop.f32.mrf.mxu0
      %v3821 = vadd.f32 0.0, %v3820
      %v3822 = vpop.f32.mrf.mxu0
      %v3823 = vadd.f32 0.0, %v3822
      %3824 = vmatmul.bf16.gmra.mxu0 %v3770
      %v3825 = vpop.f32.mrf.mxu0
      %v3826 = vadd.f32 0.0, %v3825
      %v3827 = vpop.f32.mrf.mxu0
      %v3828 = vadd.f32 0.0, %v3827
      %3829 = vmatmul.bf16.gmra.mxu0 %v3773
      %v3830 = vpop.f32.mrf.mxu0
      %v3831 = vadd.f32 0.0, %v3830
      %v3832 = vpop.f32.mrf.mxu0
      %v3833 = vadd.f32 0.0, %v3832
      %3834 = vmatmul.bf16.gmra.mxu0 %v3776
      %v3835 = vpop.f32.mrf.mxu0
      %v3836 = vadd.f32 0.0, %v3835
      %v3837 = vpop.f32.mrf.mxu0
      %v3838 = vadd.f32 0.0, %v3837
      %3839 = vmatmul.bf16.gmra.mxu0 %v3779
      %v3840 = vpop.f32.mrf.mxu0
      %v3841 = vadd.f32 0.0, %v3840
      %v3842 = vpop.f32.mrf.mxu0
      %3843 = vdwg.mxu0
      %v3844 = vadd.f32 %v3679, %v3791
      %v3845 = vadd.f32 %v3680, %v3793
      %v3846 = vadd.f32 %v3681, %v3796
      %v3847 = vadd.f32 %v3682, %v3798
      %v3848 = vadd.f32 %v3683, %v3801
      %v3849 = vadd.f32 %v3684, %v3803
      %v3850 = vadd.f32 %v3685, %v3806
      %v3851 = vadd.f32 %v3686, %v3808
      %v3852 = vadd.f32 %v3687, %v3811
      %v3853 = vadd.f32 %v3688, %v3813
      %v3854 = vadd.f32 %v3689, %v3816
      %v3855 = vadd.f32 %v3690, %v3818
      %v3856 = vadd.f32 %v3691, %v3821
      %v3857 = vadd.f32 %v3692, %v3823
      %v3858 = vadd.f32 %v3693, %v3826
      %v3859 = vadd.f32 %v3694, %v3828
      %v3860 = vadd.f32 %v3695, %v3831
      %v3861 = vadd.f32 %v3696, %v3833
      %v3862 = vadd.f32 %v3697, %v3836
      %v3863 = vadd.f32 %v3698, %v3838
      %v3864 = vadd.f32 %v3699, %v3841
      %v3865 = vld [vmem:[#allocation2 + $0x2d] sm:$0xff]
      %v3866 = vld [vmem:[#allocation2 + $0x35] sm:$0xff]
      %v3867 = vld [vmem:[#allocation2 + $0x3d] sm:$0xff]
      %v3868 = vld [vmem:[#allocation2 + $0x45] sm:$0xff]
      %v3869 = vld [vmem:[#allocation2 + $0x4d] sm:$0xff]
      %v3870 = vld [vmem:[#allocation2 + $0x55] sm:$0xff]
      %v3871 = vld [vmem:[#allocation2 + $0x5d] sm:$0xff]
      %v3872 = vld [vmem:[#allocation2 + $0x65] sm:$0xff]
      %v3873 = vld [vmem:[#allocation2 + $0x6d] sm:$0xff]
      %v3874 = vld [vmem:[#allocation2 + $0x75] sm:$0xff]
      %v3875 = vld [vmem:[#allocation2 + $0x7d] sm:$0xff]
      %v3876 = vld [vmem:[#allocation2 + $0x85] sm:$0xff]
      %v3877 = vld [vmem:[#allocation2 + $0x8d] sm:$0xff]
      %v3878 = vld [vmem:[#allocation2 + $0x95] sm:$0xff]
      %v3879 = vld [vmem:[#allocation2 + $0x9d] sm:$0xff]
      %v3880 = vld [vmem:[#allocation2 + $0xa5] sm:$0xff]
      %v3881 = vld [vmem:[#allocation2 + $0xad] sm:$0xff]
      %v3882 = vld [vmem:[#allocation2 + $0xb5] sm:$0xff]
      %v3883 = vld [vmem:[#allocation2 + $0xbd] sm:$0xff]
      %v3884 = vld [vmem:[#allocation2 + $0xc5] sm:$0xff]
      %v3885 = vld [vmem:[#allocation2 + $0xcd] sm:$0x1]
      %v3886 = vpack.c.bf16 %v3866, %v3865
      %v3887 = vpack.c.bf16 %v3868, %v3867
      %v3888 = vpack.c.bf16 %v3870, %v3869
      %v3889 = vpack.c.bf16 %v3872, %v3871
      %v3890 = vpack.c.bf16 %v3874, %v3873
      %v3891 = vpack.c.bf16 %v3876, %v3875
      %v3892 = vpack.c.bf16 %v3878, %v3877
      %v3893 = vpack.c.bf16 %v3880, %v3879
      %v3894 = vpack.c.bf16 %v3882, %v3881
      %v3895 = vpack.c.bf16 %v3884, %v3883
      %v3896 = vpack.c.bf16 %v3885, %v3885
      %v3897 = vld [vmem:[%s3 + $0xf0] sm:$0xf]
      %v3898 = vld [vmem:[%s3 + $0xf4] sm:$0xf]
      %v3899 = vld [vmem:[%s3 + $0xf8] sm:$0xf]
      %v3900 = vld [vmem:[%s3 + $0xfc] sm:$0xf]
      %v3905 = vunpack.c.l.b16 %v3897
      %v3906 = vunpack.c.l.b16 %v3898
      %v3907 = vunpack.c.l.b16 %v3899
      %v3908 = vunpack.c.l.b16 %v3900
      %v3909 = vpack.c.b16 %v3906, %v3905
      %v3910 = vpack.c.b16 %v3908, %v3907
      %v3914 = vsel %vm1401, %v3886, 0
      %v3917 = vsel %vm1401, %v3887, 0
      %v3920 = vsel %vm1401, %v3888, 0
      %v3923 = vsel %vm1401, %v3889, 0
      %v3926 = vsel %vm1401, %v3890, 0
      %v3929 = vsel %vm1401, %v3891, 0
      %v3932 = vsel %vm1401, %v3892, 0
      %v3935 = vsel %vm1401, %v3893, 0
      %v3938 = vsel %vm1401, %v3894, 0
      %v3941 = vsel %vm1401, %v3895, 0
      %v3944 = vsel %vm1401, %v3896, 0
      %3946 = vmatpush.bf16.msra.mxu0 0
      %3947 = vmatpush.bf16.msra.mxu0 0
      %3948 = vmatpush.bf16.msra.mxu0 0
      %3949 = vmatpush.bf16.msra.mxu0 0
      %3950 = vmatpush.bf16.msra.mxu0 0
      %3951 = vmatpush.bf16.msra.mxu0 0
      %3952 = vmatpush.bf16.msra.mxu0 %v3910
      %3953 = vmatpush.bf16.msra.mxu0 %v3909
      %3954 = vmatmul.bf16.gmra.mxu0 %v3914
      %v3955 = vpop.f32.mrf.mxu0
      %v3956 = vadd.f32 0.0, %v3955
      %v3957 = vpop.f32.mrf.mxu0
      %v3958 = vadd.f32 0.0, %v3957
      %3959 = vmatmul.bf16.gmra.mxu0 %v3917
      %v3960 = vpop.f32.mrf.mxu0
      %v3961 = vadd.f32 0.0, %v3960
      %v3962 = vpop.f32.mrf.mxu0
      %v3963 = vadd.f32 0.0, %v3962
      %3964 = vmatmul.bf16.gmra.mxu0 %v3920
      %v3965 = vpop.f32.mrf.mxu0
      %v3966 = vadd.f32 0.0, %v3965
      %v3967 = vpop.f32.mrf.mxu0
      %v3968 = vadd.f32 0.0, %v3967
      %3969 = vmatmul.bf16.gmra.mxu0 %v3923
      %v3970 = vpop.f32.mrf.mxu0
      %v3971 = vadd.f32 0.0, %v3970
      %v3972 = vpop.f32.mrf.mxu0
      %v3973 = vadd.f32 0.0, %v3972
      %3974 = vmatmul.bf16.gmra.mxu0 %v3926
      %v3975 = vpop.f32.mrf.mxu0
      %v3976 = vadd.f32 0.0, %v3975
      %v3977 = vpop.f32.mrf.mxu0
      %v3978 = vadd.f32 0.0, %v3977
      %3979 = vmatmul.bf16.gmra.mxu0 %v3929
      %v3980 = vpop.f32.mrf.mxu0
      %v3981 = vadd.f32 0.0, %v3980
      %v3982 = vpop.f32.mrf.mxu0
      %v3983 = vadd.f32 0.0, %v3982
      %3984 = vmatmul.bf16.gmra.mxu0 %v3932
      %v3985 = vpop.f32.mrf.mxu0
      %v3986 = vadd.f32 0.0, %v3985
      %v3987 = vpop.f32.mrf.mxu0
      %v3988 = vadd.f32 0.0, %v3987
      %3989 = vmatmul.bf16.gmra.mxu0 %v3935
      %v3990 = vpop.f32.mrf.mxu0
      %v3991 = vadd.f32 0.0, %v3990
      %v3992 = vpop.f32.mrf.mxu0
      %v3993 = vadd.f32 0.0, %v3992
      %3994 = vmatmul.bf16.gmra.mxu0 %v3938
      %v3995 = vpop.f32.mrf.mxu0
      %v3996 = vadd.f32 0.0, %v3995
      %v3997 = vpop.f32.mrf.mxu0
      %v3998 = vadd.f32 0.0, %v3997
      %3999 = vmatmul.bf16.gmra.mxu0 %v3941
      %v4000 = vpop.f32.mrf.mxu0
      %v4001 = vadd.f32 0.0, %v4000
      %v4002 = vpop.f32.mrf.mxu0
      %v4003 = vadd.f32 0.0, %v4002
      %4004 = vmatmul.bf16.gmra.mxu0 %v3944
      %v4005 = vpop.f32.mrf.mxu0
      %v4006 = vadd.f32 0.0, %v4005
      %v4007 = vpop.f32.mrf.mxu0
      %4008 = vdwg.mxu0
      %v4009 = vadd.f32 %v3844, %v3956
      %v4010 = vadd.f32 %v3845, %v3958
      %v4011 = vadd.f32 %v3846, %v3961
      %v4012 = vadd.f32 %v3847, %v3963
      %v4013 = vadd.f32 %v3848, %v3966
      %v4014 = vadd.f32 %v3849, %v3968
      %v4015 = vadd.f32 %v3850, %v3971
      %v4016 = vadd.f32 %v3851, %v3973
      %v4017 = vadd.f32 %v3852, %v3976
      %v4018 = vadd.f32 %v3853, %v3978
      %v4019 = vadd.f32 %v3854, %v3981
      %v4020 = vadd.f32 %v3855, %v3983
      %v4021 = vadd.f32 %v3856, %v3986
      %v4022 = vadd.f32 %v3857, %v3988
      %v4023 = vadd.f32 %v3858, %v3991
      %v4024 = vadd.f32 %v3859, %v3993
      %v4025 = vadd.f32 %v3860, %v3996
      %v4026 = vadd.f32 %v3861, %v3998
      %v4027 = vadd.f32 %v3862, %v4001
      %v4028 = vadd.f32 %v3863, %v4003
      %v4029 = vadd.f32 %v3864, %v4006
      %v4030 = vld [vmem:[#allocation2 + $0x2e] sm:$0xff]
      %v4031 = vld [vmem:[#allocation2 + $0x36] sm:$0xff]
      %v4032 = vld [vmem:[#allocation2 + $0x3e] sm:$0xff]
      %v4033 = vld [vmem:[#allocation2 + $0x46] sm:$0xff]
      %v4034 = vld [vmem:[#allocation2 + $0x4e] sm:$0xff]
      %v4035 = vld [vmem:[#allocation2 + $0x56] sm:$0xff]
      %v4036 = vld [vmem:[#allocation2 + $0x5e] sm:$0xff]
      %v4037 = vld [vmem:[#allocation2 + $0x66] sm:$0xff]
      %v4038 = vld [vmem:[#allocation2 + $0x6e] sm:$0xff]
      %v4039 = vld [vmem:[#allocation2 + $0x76] sm:$0xff]
      %v4040 = vld [vmem:[#allocation2 + $0x7e] sm:$0xff]
      %v4041 = vld [vmem:[#allocation2 + $0x86] sm:$0xff]
      %v4042 = vld [vmem:[#allocation2 + $0x8e] sm:$0xff]
      %v4043 = vld [vmem:[#allocation2 + $0x96] sm:$0xff]
      %v4044 = vld [vmem:[#allocation2 + $0x9e] sm:$0xff]
      %v4045 = vld [vmem:[#allocation2 + $0xa6] sm:$0xff]
      %v4046 = vld [vmem:[#allocation2 + $0xae] sm:$0xff]
      %v4047 = vld [vmem:[#allocation2 + $0xb6] sm:$0xff]
      %v4048 = vld [vmem:[#allocation2 + $0xbe] sm:$0xff]
      %v4049 = vld [vmem:[#allocation2 + $0xc6] sm:$0xff]
      %v4050 = vld [vmem:[#allocation2 + $0xce] sm:$0x1]
      %v4051 = vpack.c.bf16 %v4031, %v4030
      %v4052 = vpack.c.bf16 %v4033, %v4032
      %v4053 = vpack.c.bf16 %v4035, %v4034
      %v4054 = vpack.c.bf16 %v4037, %v4036
      %v4055 = vpack.c.bf16 %v4039, %v4038
      %v4056 = vpack.c.bf16 %v4041, %v4040
      %v4057 = vpack.c.bf16 %v4043, %v4042
      %v4058 = vpack.c.bf16 %v4045, %v4044
      %v4059 = vpack.c.bf16 %v4047, %v4046
      %v4060 = vpack.c.bf16 %v4049, %v4048
      %v4061 = vpack.c.bf16 %v4050, %v4050
      %v4062 = vld [vmem:[%s3 + $0x100] sm:$0xf]
      %v4063 = vld [vmem:[%s3 + $0x104] sm:$0xf]
      %v4064 = vld [vmem:[%s3 + $0x108] sm:$0xf]
      %v4065 = vld [vmem:[%s3 + $0x10c] sm:$0xf]
      %v4070 = vunpack.c.l.b16 %v4062
      %v4071 = vunpack.c.l.b16 %v4063
      %v4072 = vunpack.c.l.b16 %v4064
      %v4073 = vunpack.c.l.b16 %v4065
      %v4074 = vpack.c.b16 %v4071, %v4070
      %v4075 = vpack.c.b16 %v4073, %v4072
      %v4079 = vsel %vm1401, %v4051, 0
      %v4082 = vsel %vm1401, %v4052, 0
      %v4085 = vsel %vm1401, %v4053, 0
      %v4088 = vsel %vm1401, %v4054, 0
      %v4091 = vsel %vm1401, %v4055, 0
      %v4094 = vsel %vm1401, %v4056, 0
      %v4097 = vsel %vm1401, %v4057, 0
      %v4100 = vsel %vm1401, %v4058, 0
      %v4103 = vsel %vm1401, %v4059, 0
      %v4106 = vsel %vm1401, %v4060, 0
      %v4109 = vsel %vm1401, %v4061, 0
      %4111 = vmatpush.bf16.msra.mxu0 0
      %4112 = vmatpush.bf16.msra.mxu0 0
      %4113 = vmatpush.bf16.msra.mxu0 0
      %4114 = vmatpush.bf16.msra.mxu0 0
      %4115 = vmatpush.bf16.msra.mxu0 0
      %4116 = vmatpush.bf16.msra.mxu0 0
      %4117 = vmatpush.bf16.msra.mxu0 %v4075
      %4118 = vmatpush.bf16.msra.mxu0 %v4074
      %4119 = vmatmul.bf16.gmra.mxu0 %v4079
      %v4120 = vpop.f32.mrf.mxu0
      %v4121 = vadd.f32 0.0, %v4120
      %v4122 = vpop.f32.mrf.mxu0
      %v4123 = vadd.f32 0.0, %v4122
      %4124 = vmatmul.bf16.gmra.mxu0 %v4082
      %v4125 = vpop.f32.mrf.mxu0
      %v4126 = vadd.f32 0.0, %v4125
      %v4127 = vpop.f32.mrf.mxu0
      %v4128 = vadd.f32 0.0, %v4127
      %4129 = vmatmul.bf16.gmra.mxu0 %v4085
      %v4130 = vpop.f32.mrf.mxu0
      %v4131 = vadd.f32 0.0, %v4130
      %v4132 = vpop.f32.mrf.mxu0
      %v4133 = vadd.f32 0.0, %v4132
      %4134 = vmatmul.bf16.gmra.mxu0 %v4088
      %v4135 = vpop.f32.mrf.mxu0
      %v4136 = vadd.f32 0.0, %v4135
      %v4137 = vpop.f32.mrf.mxu0
      %v4138 = vadd.f32 0.0, %v4137
      %4139 = vmatmul.bf16.gmra.mxu0 %v4091
      %v4140 = vpop.f32.mrf.mxu0
      %v4141 = vadd.f32 0.0, %v4140
      %v4142 = vpop.f32.mrf.mxu0
      %v4143 = vadd.f32 0.0, %v4142
      %4144 = vmatmul.bf16.gmra.mxu0 %v4094
      %v4145 = vpop.f32.mrf.mxu0
      %v4146 = vadd.f32 0.0, %v4145
      %v4147 = vpop.f32.mrf.mxu0
      %v4148 = vadd.f32 0.0, %v4147
      %4149 = vmatmul.bf16.gmra.mxu0 %v4097
      %v4150 = vpop.f32.mrf.mxu0
      %v4151 = vadd.f32 0.0, %v4150
      %v4152 = vpop.f32.mrf.mxu0
      %v4153 = vadd.f32 0.0, %v4152
      %4154 = vmatmul.bf16.gmra.mxu0 %v4100
      %v4155 = vpop.f32.mrf.mxu0
      %v4156 = vadd.f32 0.0, %v4155
      %v4157 = vpop.f32.mrf.mxu0
      %v4158 = vadd.f32 0.0, %v4157
      %4159 = vmatmul.bf16.gmra.mxu0 %v4103
      %v4160 = vpop.f32.mrf.mxu0
      %v4161 = vadd.f32 0.0, %v4160
      %v4162 = vpop.f32.mrf.mxu0
      %v4163 = vadd.f32 0.0, %v4162
      %4164 = vmatmul.bf16.gmra.mxu0 %v4106
      %v4165 = vpop.f32.mrf.mxu0
      %v4166 = vadd.f32 0.0, %v4165
      %v4167 = vpop.f32.mrf.mxu0
      %v4168 = vadd.f32 0.0, %v4167
      %4169 = vmatmul.bf16.gmra.mxu0 %v4109
      %v4170 = vpop.f32.mrf.mxu0
      %v4171 = vadd.f32 0.0, %v4170
      %v4172 = vpop.f32.mrf.mxu0
      %4173 = vdwg.mxu0
      %v4174 = vadd.f32 %v4009, %v4121
      %v4175 = vadd.f32 %v4010, %v4123
      %v4176 = vadd.f32 %v4011, %v4126
      %v4177 = vadd.f32 %v4012, %v4128
      %v4178 = vadd.f32 %v4013, %v4131
      %v4179 = vadd.f32 %v4014, %v4133
      %v4180 = vadd.f32 %v4015, %v4136
      %v4181 = vadd.f32 %v4016, %v4138
      %v4182 = vadd.f32 %v4017, %v4141
      %v4183 = vadd.f32 %v4018, %v4143
      %v4184 = vadd.f32 %v4019, %v4146
      %v4185 = vadd.f32 %v4020, %v4148
      %v4186 = vadd.f32 %v4021, %v4151
      %v4187 = vadd.f32 %v4022, %v4153
      %v4188 = vadd.f32 %v4023, %v4156
      %v4189 = vadd.f32 %v4024, %v4158
      %v4190 = vadd.f32 %v4025, %v4161
      %v4191 = vadd.f32 %v4026, %v4163
      %v4192 = vadd.f32 %v4027, %v4166
      %v4193 = vadd.f32 %v4028, %v4168
      %v4194 = vadd.f32 %v4029, %v4171
      %v4195 = vld [vmem:[#allocation2 + $0x2f] sm:$0xff]
      %v4196 = vld [vmem:[#allocation2 + $0x37] sm:$0xff]
      %v4197 = vld [vmem:[#allocation2 + $0x3f] sm:$0xff]
      %v4198 = vld [vmem:[#allocation2 + $0x47] sm:$0xff]
      %v4199 = vld [vmem:[#allocation2 + $0x4f] sm:$0xff]
      %v4200 = vld [vmem:[#allocation2 + $0x57] sm:$0xff]
      %v4201 = vld [vmem:[#allocation2 + $0x5f] sm:$0xff]
      %v4202 = vld [vmem:[#allocation2 + $0x67] sm:$0xff]
      %v4203 = vld [vmem:[#allocation2 + $0x6f] sm:$0xff]
      %v4204 = vld [vmem:[#allocation2 + $0x77] sm:$0xff]
      %v4205 = vld [vmem:[#allocation2 + $0x7f] sm:$0xff]
      %v4206 = vld [vmem:[#allocation2 + $0x87] sm:$0xff]
      %v4207 = vld [vmem:[#allocation2 + $0x8f] sm:$0xff]
      %v4208 = vld [vmem:[#allocation2 + $0x97] sm:$0xff]
      %v4209 = vld [vmem:[#allocation2 + $0x9f] sm:$0xff]
      %v4210 = vld [vmem:[#allocation2 + $0xa7] sm:$0xff]
      %v4211 = vld [vmem:[#allocation2 + $0xaf] sm:$0xff]
      %v4212 = vld [vmem:[#allocation2 + $0xb7] sm:$0xff]
      %v4213 = vld [vmem:[#allocation2 + $0xbf] sm:$0xff]
      %v4214 = vld [vmem:[#allocation2 + $0xc7] sm:$0xff]
      %v4215 = vld [vmem:[#allocation2 + $0xcf] sm:$0x1]
      %v4216 = vpack.c.bf16 %v4196, %v4195
      %v4217 = vpack.c.bf16 %v4198, %v4197
      %v4218 = vpack.c.bf16 %v4200, %v4199
      %v4219 = vpack.c.bf16 %v4202, %v4201
      %v4220 = vpack.c.bf16 %v4204, %v4203
      %v4221 = vpack.c.bf16 %v4206, %v4205
      %v4222 = vpack.c.bf16 %v4208, %v4207
      %v4223 = vpack.c.bf16 %v4210, %v4209
      %v4224 = vpack.c.bf16 %v4212, %v4211
      %v4225 = vpack.c.bf16 %v4214, %v4213
      %v4226 = vpack.c.bf16 %v4215, %v4215
      %v4227 = vld [vmem:[%s3 + $0x110] sm:$0xf]
      %v4228 = vld [vmem:[%s3 + $0x114] sm:$0xf]
      %v4229 = vld [vmem:[%s3 + $0x118] sm:$0xf]
      %v4230 = vld [vmem:[%s3 + $0x11c] sm:$0xf]
      %v4235 = vunpack.c.l.b16 %v4227
      %v4236 = vunpack.c.l.b16 %v4228
      %v4237 = vunpack.c.l.b16 %v4229
      %v4238 = vunpack.c.l.b16 %v4230
      %v4239 = vpack.c.b16 %v4236, %v4235
      %v4240 = vpack.c.b16 %v4238, %v4237
      %v4244 = vsel %vm1401, %v4216, 0
      %v4247 = vsel %vm1401, %v4217, 0
      %v4250 = vsel %vm1401, %v4218, 0
      %v4253 = vsel %vm1401, %v4219, 0
      %v4256 = vsel %vm1401, %v4220, 0
      %v4259 = vsel %vm1401, %v4221, 0
      %v4262 = vsel %vm1401, %v4222, 0
      %v4265 = vsel %vm1401, %v4223, 0
      %v4268 = vsel %vm1401, %v4224, 0
      %v4271 = vsel %vm1401, %v4225, 0
      %v4274 = vsel %vm1401, %v4226, 0
      %4276 = vmatpush.bf16.msra.mxu0 0
      %4277 = vmatpush.bf16.msra.mxu0 0
      %4278 = vmatpush.bf16.msra.mxu0 0
      %4279 = vmatpush.bf16.msra.mxu0 0
      %4280 = vmatpush.bf16.msra.mxu0 0
      %4281 = vmatpush.bf16.msra.mxu0 0
      %4282 = vmatpush.bf16.msra.mxu0 %v4240
      %4283 = vmatpush.bf16.msra.mxu0 %v4239
      %4284 = vmatmul.bf16.gmra.mxu0 %v4244
      %v4285 = vpop.f32.mrf.mxu0
      %v4286 = vadd.f32 0.0, %v4285
      %v4287 = vpop.f32.mrf.mxu0
      %v4288 = vadd.f32 0.0, %v4287
      %4289 = vmatmul.bf16.gmra.mxu0 %v4247
      %v4290 = vpop.f32.mrf.mxu0
      %v4291 = vadd.f32 0.0, %v4290
      %v4292 = vpop.f32.mrf.mxu0
      %v4293 = vadd.f32 0.0, %v4292
      %4294 = vmatmul.bf16.gmra.mxu0 %v4250
      %v4295 = vpop.f32.mrf.mxu0
      %v4296 = vadd.f32 0.0, %v4295
      %v4297 = vpop.f32.mrf.mxu0
      %v4298 = vadd.f32 0.0, %v4297
      %4299 = vmatmul.bf16.gmra.mxu0 %v4253
      %v4300 = vpop.f32.mrf.mxu0
      %v4301 = vadd.f32 0.0, %v4300
      %v4302 = vpop.f32.mrf.mxu0
      %v4303 = vadd.f32 0.0, %v4302
      %4304 = vmatmul.bf16.gmra.mxu0 %v4256
      %v4305 = vpop.f32.mrf.mxu0
      %v4306 = vadd.f32 0.0, %v4305
      %v4307 = vpop.f32.mrf.mxu0
      %v4308 = vadd.f32 0.0, %v4307
      %4309 = vmatmul.bf16.gmra.mxu0 %v4259
      %v4310 = vpop.f32.mrf.mxu0
      %v4311 = vadd.f32 0.0, %v4310
      %v4312 = vpop.f32.mrf.mxu0
      %v4313 = vadd.f32 0.0, %v4312
      %4314 = vmatmul.bf16.gmra.mxu0 %v4262
      %v4315 = vpop.f32.mrf.mxu0
      %v4316 = vadd.f32 0.0, %v4315
      %v4317 = vpop.f32.mrf.mxu0
      %v4318 = vadd.f32 0.0, %v4317
      %4319 = vmatmul.bf16.gmra.mxu0 %v4265
      %v4320 = vpop.f32.mrf.mxu0
      %v4321 = vadd.f32 0.0, %v4320
      %v4322 = vpop.f32.mrf.mxu0
      %v4323 = vadd.f32 0.0, %v4322
      %4324 = vmatmul.bf16.gmra.mxu0 %v4268
      %v4325 = vpop.f32.mrf.mxu0
      %v4326 = vadd.f32 0.0, %v4325
      %v4327 = vpop.f32.mrf.mxu0
      %v4328 = vadd.f32 0.0, %v4327
      %4329 = vmatmul.bf16.gmra.mxu0 %v4271
      %v4330 = vpop.f32.mrf.mxu0
      %v4331 = vadd.f32 0.0, %v4330
      %v4332 = vpop.f32.mrf.mxu0
      %v4333 = vadd.f32 0.0, %v4332
      %4334 = vmatmul.bf16.gmra.mxu0 %v4274
      %v4335 = vpop.f32.mrf.mxu0
      %v4336 = vadd.f32 0.0, %v4335
      %v4337 = vpop.f32.mrf.mxu0
      %4338 = vdwg.mxu0
      %v4339 = vadd.f32 %v4174, %v4286
      %v4340 = vadd.f32 %v4175, %v4288
      %v4341 = vadd.f32 %v4176, %v4291
      %v4342 = vadd.f32 %v4177, %v4293
      %v4343 = vadd.f32 %v4178, %v4296
      %v4344 = vadd.f32 %v4179, %v4298
      %v4345 = vadd.f32 %v4180, %v4301
      %v4346 = vadd.f32 %v4181, %v4303
      %v4347 = vadd.f32 %v4182, %v4306
      %v4348 = vadd.f32 %v4183, %v4308
      %v4349 = vadd.f32 %v4184, %v4311
      %v4350 = vadd.f32 %v4185, %v4313
      %v4351 = vadd.f32 %v4186, %v4316
      %v4352 = vadd.f32 %v4187, %v4318
      %v4353 = vadd.f32 %v4188, %v4321
      %v4354 = vadd.f32 %v4189, %v4323
      %v4355 = vadd.f32 %v4190, %v4326
      %v4356 = vadd.f32 %v4191, %v4328
      %v4357 = vadd.f32 %v4192, %v4331
      %v4358 = vadd.f32 %v4193, %v4333
      %v4359 = vadd.f32 %v4194, %v4336
      %v4360 = vld [vmem:[#allocation2 + $0x30] sm:$0xff]
      %v4361 = vld [vmem:[#allocation2 + $0x38] sm:$0xff]
      %v4362 = vld [vmem:[#allocation2 + $0x40] sm:$0xff]
      %v4363 = vld [vmem:[#allocation2 + $0x48] sm:$0xff]
      %v4364 = vld [vmem:[#allocation2 + $0x50] sm:$0xff]
      %v4365 = vld [vmem:[#allocation2 + $0x58] sm:$0xff]
      %v4366 = vld [vmem:[#allocation2 + $0x60] sm:$0xff]
      %v4367 = vld [vmem:[#allocation2 + $0x68] sm:$0xff]
      %v4368 = vld [vmem:[#allocation2 + $0x70] sm:$0xff]
      %v4369 = vld [vmem:[#allocation2 + $0x78] sm:$0xff]
      %v4370 = vld [vmem:[#allocation2 + $0x80] sm:$0xff]
      %v4371 = vld [vmem:[#allocation2 + $0x88] sm:$0xff]
      %v4372 = vld [vmem:[#allocation2 + $0x90] sm:$0xff]
      %v4373 = vld [vmem:[#allocation2 + $0x98] sm:$0xff]
      %v4374 = vld [vmem:[#allocation2 + $0xa0] sm:$0xff]
      %v4375 = vld [vmem:[#allocation2 + $0xa8] sm:$0xff]
      %v4376 = vld [vmem:[#allocation2 + $0xb0] sm:$0xff]
      %v4377 = vld [vmem:[#allocation2 + $0xb8] sm:$0xff]
      %v4378 = vld [vmem:[#allocation2 + $0xc0] sm:$0xff]
      %v4379 = vld [vmem:[#allocation2 + $0xc8] sm:$0xff]
      %v4380 = vld [vmem:[#allocation2 + $0xd0] sm:$0x1]
      %v4381 = vpack.c.bf16 %v4361, %v4360
      %v4382 = vpack.c.bf16 %v4363, %v4362
      %v4383 = vpack.c.bf16 %v4365, %v4364
      %v4384 = vpack.c.bf16 %v4367, %v4366
      %v4385 = vpack.c.bf16 %v4369, %v4368
      %v4386 = vpack.c.bf16 %v4371, %v4370
      %v4387 = vpack.c.bf16 %v4373, %v4372
      %v4388 = vpack.c.bf16 %v4375, %v4374
      %v4389 = vpack.c.bf16 %v4377, %v4376
      %v4390 = vpack.c.bf16 %v4379, %v4378
      %v4391 = vpack.c.bf16 %v4380, %v4380
      %v4392 = vld [vmem:[%s3 + $0x120] sm:$0xf]
      %v4393 = vld [vmem:[%s3 + $0x124] sm:$0xf]
      %v4394 = vld [vmem:[%s3 + $0x128] sm:$0xf]
      %v4395 = vld [vmem:[%s3 + $0x12c] sm:$0xf]
      %v4400 = vunpack.c.l.b16 %v4392
      %v4401 = vunpack.c.l.b16 %v4393
      %v4402 = vunpack.c.l.b16 %v4394
      %v4403 = vunpack.c.l.b16 %v4395
      %v4404 = vpack.c.b16 %v4401, %v4400
      %v4405 = vpack.c.b16 %v4403, %v4402
      %v4409 = vsel %vm1401, %v4381, 0
      %v4412 = vsel %vm1401, %v4382, 0
      %v4415 = vsel %vm1401, %v4383, 0
      %v4418 = vsel %vm1401, %v4384, 0
      %v4421 = vsel %vm1401, %v4385, 0
      %v4424 = vsel %vm1401, %v4386, 0
      %v4427 = vsel %vm1401, %v4387, 0
      %v4430 = vsel %vm1401, %v4388, 0
      %v4433 = vsel %vm1401, %v4389, 0
      %v4436 = vsel %vm1401, %v4390, 0
      %v4439 = vsel %vm1401, %v4391, 0
      %4441 = vmatpush.bf16.msra.mxu0 0
      %4442 = vmatpush.bf16.msra.mxu0 0
      %4443 = vmatpush.bf16.msra.mxu0 0
      %4444 = vmatpush.bf16.msra.mxu0 0
      %4445 = vmatpush.bf16.msra.mxu0 0
      %4446 = vmatpush.bf16.msra.mxu0 0
      %4447 = vmatpush.bf16.msra.mxu0 %v4405
      %4448 = vmatpush.bf16.msra.mxu0 %v4404
      %4449 = vmatmul.bf16.gmra.mxu0 %v4409
      %v4450 = vpop.f32.mrf.mxu0
      %v4451 = vadd.f32 0.0, %v4450
      %v4452 = vpop.f32.mrf.mxu0
      %v4453 = vadd.f32 0.0, %v4452
      %4454 = vmatmul.bf16.gmra.mxu0 %v4412
      %v4455 = vpop.f32.mrf.mxu0
      %v4456 = vadd.f32 0.0, %v4455
      %v4457 = vpop.f32.mrf.mxu0
      %v4458 = vadd.f32 0.0, %v4457
      %4459 = vmatmul.bf16.gmra.mxu0 %v4415
      %v4460 = vpop.f32.mrf.mxu0
      %v4461 = vadd.f32 0.0, %v4460
      %v4462 = vpop.f32.mrf.mxu0
      %v4463 = vadd.f32 0.0, %v4462
      %4464 = vmatmul.bf16.gmra.mxu0 %v4418
      %v4465 = vpop.f32.mrf.mxu0
      %v4466 = vadd.f32 0.0, %v4465
      %v4467 = vpop.f32.mrf.mxu0
      %v4468 = vadd.f32 0.0, %v4467
      %4469 = vmatmul.bf16.gmra.mxu0 %v4421
      %v4470 = vpop.f32.mrf.mxu0
      %v4471 = vadd.f32 0.0, %v4470
      %v4472 = vpop.f32.mrf.mxu0
      %v4473 = vadd.f32 0.0, %v4472
      %4474 = vmatmul.bf16.gmra.mxu0 %v4424
      %v4475 = vpop.f32.mrf.mxu0
      %v4476 = vadd.f32 0.0, %v4475
      %v4477 = vpop.f32.mrf.mxu0
      %v4478 = vadd.f32 0.0, %v4477
      %4479 = vmatmul.bf16.gmra.mxu0 %v4427
      %v4480 = vpop.f32.mrf.mxu0
      %v4481 = vadd.f32 0.0, %v4480
      %v4482 = vpop.f32.mrf.mxu0
      %v4483 = vadd.f32 0.0, %v4482
      %4484 = vmatmul.bf16.gmra.mxu0 %v4430
      %v4485 = vpop.f32.mrf.mxu0
      %v4486 = vadd.f32 0.0, %v4485
      %v4487 = vpop.f32.mrf.mxu0
      %v4488 = vadd.f32 0.0, %v4487
      %4489 = vmatmul.bf16.gmra.mxu0 %v4433
      %v4490 = vpop.f32.mrf.mxu0
      %v4491 = vadd.f32 0.0, %v4490
      %v4492 = vpop.f32.mrf.mxu0
      %v4493 = vadd.f32 0.0, %v4492
      %4494 = vmatmul.bf16.gmra.mxu0 %v4436
      %v4495 = vpop.f32.mrf.mxu0
      %v4496 = vadd.f32 0.0, %v4495
      %v4497 = vpop.f32.mrf.mxu0
      %v4498 = vadd.f32 0.0, %v4497
      %4499 = vmatmul.bf16.gmra.mxu0 %v4439
      %v4500 = vpop.f32.mrf.mxu0
      %v4501 = vadd.f32 0.0, %v4500
      %v4502 = vpop.f32.mrf.mxu0
      %4503 = vdwg.mxu0
      %v4504 = vadd.f32 %v4339, %v4451
      %v4505 = vadd.f32 %v4340, %v4453
      %v4506 = vadd.f32 %v4341, %v4456
      %v4507 = vadd.f32 %v4342, %v4458
      %v4508 = vadd.f32 %v4343, %v4461
      %v4509 = vadd.f32 %v4344, %v4463
      %v4510 = vadd.f32 %v4345, %v4466
      %v4511 = vadd.f32 %v4346, %v4468
      %v4512 = vadd.f32 %v4347, %v4471
      %v4513 = vadd.f32 %v4348, %v4473
      %v4514 = vadd.f32 %v4349, %v4476
      %v4515 = vadd.f32 %v4350, %v4478
      %v4516 = vadd.f32 %v4351, %v4481
      %v4517 = vadd.f32 %v4352, %v4483
      %v4518 = vadd.f32 %v4353, %v4486
      %v4519 = vadd.f32 %v4354, %v4488
      %v4520 = vadd.f32 %v4355, %v4491
      %v4521 = vadd.f32 %v4356, %v4493
      %v4522 = vadd.f32 %v4357, %v4496
      %v4523 = vadd.f32 %v4358, %v4498
      %v4524 = vadd.f32 %v4359, %v4501
      %v4525 = vld [vmem:[#allocation2 + $0x31] sm:$0xff]
      %v4526 = vld [vmem:[#allocation2 + $0x39] sm:$0xff]
      %v4527 = vld [vmem:[#allocation2 + $0x41] sm:$0xff]
      %v4528 = vld [vmem:[#allocation2 + $0x49] sm:$0xff]
      %v4529 = vld [vmem:[#allocation2 + $0x51] sm:$0xff]
      %v4530 = vld [vmem:[#allocation2 + $0x59] sm:$0xff]
      %v4531 = vld [vmem:[#allocation2 + $0x61] sm:$0xff]
      %v4532 = vld [vmem:[#allocation2 + $0x69] sm:$0xff]
      %v4533 = vld [vmem:[#allocation2 + $0x71] sm:$0xff]
      %v4534 = vld [vmem:[#allocation2 + $0x79] sm:$0xff]
      %v4535 = vld [vmem:[#allocation2 + $0x81] sm:$0xff]
      %v4536 = vld [vmem:[#allocation2 + $0x89] sm:$0xff]
      %v4537 = vld [vmem:[#allocation2 + $0x91] sm:$0xff]
      %v4538 = vld [vmem:[#allocation2 + $0x99] sm:$0xff]
      %v4539 = vld [vmem:[#allocation2 + $0xa1] sm:$0xff]
      %v4540 = vld [vmem:[#allocation2 + $0xa9] sm:$0xff]
      %v4541 = vld [vmem:[#allocation2 + $0xb1] sm:$0xff]
      %v4542 = vld [vmem:[#allocation2 + $0xb9] sm:$0xff]
      %v4543 = vld [vmem:[#allocation2 + $0xc1] sm:$0xff]
      %v4544 = vld [vmem:[#allocation2 + $0xc9] sm:$0xff]
      %v4545 = vld [vmem:[#allocation2 + $0xd1] sm:$0x1]
      %v4546 = vpack.c.bf16 %v4526, %v4525
      %v4547 = vpack.c.bf16 %v4528, %v4527
      %v4548 = vpack.c.bf16 %v4530, %v4529
      %v4549 = vpack.c.bf16 %v4532, %v4531
      %v4550 = vpack.c.bf16 %v4534, %v4533
      %v4551 = vpack.c.bf16 %v4536, %v4535
      %v4552 = vpack.c.bf16 %v4538, %v4537
      %v4553 = vpack.c.bf16 %v4540, %v4539
      %v4554 = vpack.c.bf16 %v4542, %v4541
      %v4555 = vpack.c.bf16 %v4544, %v4543
      %v4556 = vpack.c.bf16 %v4545, %v4545
      %v4557 = vld [vmem:[%s3 + $0x130] sm:$0xf]
      %v4558 = vld [vmem:[%s3 + $0x134] sm:$0xf]
      %v4559 = vld [vmem:[%s3 + $0x138] sm:$0xf]
      %v4560 = vld [vmem:[%s3 + $0x13c] sm:$0xf]
      %v4565 = vunpack.c.l.b16 %v4557
      %v4566 = vunpack.c.l.b16 %v4558
      %v4567 = vunpack.c.l.b16 %v4559
      %v4568 = vunpack.c.l.b16 %v4560
      %v4569 = vpack.c.b16 %v4566, %v4565
      %v4570 = vpack.c.b16 %v4568, %v4567
      %v4574 = vsel %vm1401, %v4546, 0
      %v4577 = vsel %vm1401, %v4547, 0
      %v4580 = vsel %vm1401, %v4548, 0
      %v4583 = vsel %vm1401, %v4549, 0
      %v4586 = vsel %vm1401, %v4550, 0
      %v4589 = vsel %vm1401, %v4551, 0
      %v4592 = vsel %vm1401, %v4552, 0
      %v4595 = vsel %vm1401, %v4553, 0
      %v4598 = vsel %vm1401, %v4554, 0
      %v4601 = vsel %vm1401, %v4555, 0
      %v4604 = vsel %vm1401, %v4556, 0
      %4606 = vmatpush.bf16.msra.mxu0 0
      %4607 = vmatpush.bf16.msra.mxu0 0
      %4608 = vmatpush.bf16.msra.mxu0 0
      %4609 = vmatpush.bf16.msra.mxu0 0
      %4610 = vmatpush.bf16.msra.mxu0 0
      %4611 = vmatpush.bf16.msra.mxu0 0
      %4612 = vmatpush.bf16.msra.mxu0 %v4570
      %4613 = vmatpush.bf16.msra.mxu0 %v4569
      %4614 = vmatmul.bf16.gmra.mxu0 %v4574
      %v4615 = vpop.f32.mrf.mxu0
      %v4616 = vadd.f32 0.0, %v4615
      %v4617 = vpop.f32.mrf.mxu0
      %v4618 = vadd.f32 0.0, %v4617
      %4619 = vmatmul.bf16.gmra.mxu0 %v4577
      %v4620 = vpop.f32.mrf.mxu0
      %v4621 = vadd.f32 0.0, %v4620
      %v4622 = vpop.f32.mrf.mxu0
      %v4623 = vadd.f32 0.0, %v4622
      %4624 = vmatmul.bf16.gmra.mxu0 %v4580
      %v4625 = vpop.f32.mrf.mxu0
      %v4626 = vadd.f32 0.0, %v4625
      %v4627 = vpop.f32.mrf.mxu0
      %v4628 = vadd.f32 0.0, %v4627
      %4629 = vmatmul.bf16.gmra.mxu0 %v4583
      %v4630 = vpop.f32.mrf.mxu0
      %v4631 = vadd.f32 0.0, %v4630
      %v4632 = vpop.f32.mrf.mxu0
      %v4633 = vadd.f32 0.0, %v4632
      %4634 = vmatmul.bf16.gmra.mxu0 %v4586
      %v4635 = vpop.f32.mrf.mxu0
      %v4636 = vadd.f32 0.0, %v4635
      %v4637 = vpop.f32.mrf.mxu0
      %v4638 = vadd.f32 0.0, %v4637
      %4639 = vmatmul.bf16.gmra.mxu0 %v4589
      %v4640 = vpop.f32.mrf.mxu0
      %v4641 = vadd.f32 0.0, %v4640
      %v4642 = vpop.f32.mrf.mxu0
      %v4643 = vadd.f32 0.0, %v4642
      %4644 = vmatmul.bf16.gmra.mxu0 %v4592
      %v4645 = vpop.f32.mrf.mxu0
      %v4646 = vadd.f32 0.0, %v4645
      %v4647 = vpop.f32.mrf.mxu0
      %v4648 = vadd.f32 0.0, %v4647
      %4649 = vmatmul.bf16.gmra.mxu0 %v4595
      %v4650 = vpop.f32.mrf.mxu0
      %v4651 = vadd.f32 0.0, %v4650
      %v4652 = vpop.f32.mrf.mxu0
      %v4653 = vadd.f32 0.0, %v4652
      %4654 = vmatmul.bf16.gmra.mxu0 %v4598
      %v4655 = vpop.f32.mrf.mxu0
      %v4656 = vadd.f32 0.0, %v4655
      %v4657 = vpop.f32.mrf.mxu0
      %v4658 = vadd.f32 0.0, %v4657
      %4659 = vmatmul.bf16.gmra.mxu0 %v4601
      %v4660 = vpop.f32.mrf.mxu0
      %v4661 = vadd.f32 0.0, %v4660
      %v4662 = vpop.f32.mrf.mxu0
      %v4663 = vadd.f32 0.0, %v4662
      %4664 = vmatmul.bf16.gmra.mxu0 %v4604
      %v4665 = vpop.f32.mrf.mxu0
      %v4666 = vadd.f32 0.0, %v4665
      %v4667 = vpop.f32.mrf.mxu0
      %4668 = vdwg.mxu0
      %v4669 = vadd.f32 %v4504, %v4616
      %v4670 = vadd.f32 %v4505, %v4618
      %v4671 = vadd.f32 %v4506, %v4621
      %v4672 = vadd.f32 %v4507, %v4623
      %v4673 = vadd.f32 %v4508, %v4626
      %v4674 = vadd.f32 %v4509, %v4628
      %v4675 = vadd.f32 %v4510, %v4631
      %v4676 = vadd.f32 %v4511, %v4633
      %v4677 = vadd.f32 %v4512, %v4636
      %v4678 = vadd.f32 %v4513, %v4638
      %v4679 = vadd.f32 %v4514, %v4641
      %v4680 = vadd.f32 %v4515, %v4643
      %v4681 = vadd.f32 %v4516, %v4646
      %v4682 = vadd.f32 %v4517, %v4648
      %v4683 = vadd.f32 %v4518, %v4651
      %v4684 = vadd.f32 %v4519, %v4653
      %v4685 = vadd.f32 %v4520, %v4656
      %v4686 = vadd.f32 %v4521, %v4658
      %v4687 = vadd.f32 %v4522, %v4661
      %v4688 = vadd.f32 %v4523, %v4663
      %v4689 = vadd.f32 %v4524, %v4666
      %v4690 = vld [vmem:[#allocation2 + $0x3c] sm:$0xff]
      %v4691 = vld [vmem:[#allocation2 + $0x44] sm:$0xff]
      %v4692 = vld [vmem:[#allocation2 + $0x4c] sm:$0xff]
      %v4693 = vld [vmem:[#allocation2 + $0x54] sm:$0xff]
      %v4694 = vld [vmem:[#allocation2 + $0x5c] sm:$0xff]
      %v4695 = vld [vmem:[#allocation2 + $0x64] sm:$0xff]
      %v4696 = vld [vmem:[#allocation2 + $0x6c] sm:$0xff]
      %v4697 = vld [vmem:[#allocation2 + $0x74] sm:$0xff]
      %v4698 = vld [vmem:[#allocation2 + $0x7c] sm:$0xff]
      %v4699 = vld [vmem:[#allocation2 + $0x84] sm:$0xff]
      %v4700 = vld [vmem:[#allocation2 + $0x8c] sm:$0xff]
      %v4701 = vld [vmem:[#allocation2 + $0x94] sm:$0xff]
      %v4702 = vld [vmem:[#allocation2 + $0x9c] sm:$0xff]
      %v4703 = vld [vmem:[#allocation2 + $0xa4] sm:$0xff]
      %v4704 = vld [vmem:[#allocation2 + $0xac] sm:$0xff]
      %v4705 = vld [vmem:[#allocation2 + $0xb4] sm:$0xff]
      %v4706 = vld [vmem:[#allocation2 + $0xbc] sm:$0xff]
      %v4707 = vld [vmem:[#allocation2 + $0xc4] sm:$0xff]
      %v4708 = vld [vmem:[#allocation2 + $0xcc] sm:$0xff]
      %v4709 = vld [vmem:[#allocation2 + $0xd4] sm:$0xff]
      %v4710 = vld [vmem:[#allocation2 + $0xdc] sm:$0x1]
      %v4711 = vpack.c.bf16 %v4691, %v4690
      %v4712 = vpack.c.bf16 %v4693, %v4692
      %v4713 = vpack.c.bf16 %v4695, %v4694
      %v4714 = vpack.c.bf16 %v4697, %v4696
      %v4715 = vpack.c.bf16 %v4699, %v4698
      %v4716 = vpack.c.bf16 %v4701, %v4700
      %v4717 = vpack.c.bf16 %v4703, %v4702
      %v4718 = vpack.c.bf16 %v4705, %v4704
      %v4719 = vpack.c.bf16 %v4707, %v4706
      %v4720 = vpack.c.bf16 %v4709, %v4708
      %v4721 = vpack.c.bf16 %v4710, %v4710
      %v4722 = vld [vmem:[%s3 + $0x140] sm:$0xf]
      %v4723 = vld [vmem:[%s3 + $0x144] sm:$0xf]
      %v4724 = vld [vmem:[%s3 + $0x148] sm:$0xf]
      %v4725 = vld [vmem:[%s3 + $0x14c] sm:$0xf]
      %v4730 = vunpack.c.l.b16 %v4722
      %v4731 = vunpack.c.l.b16 %v4723
      %v4732 = vunpack.c.l.b16 %v4724
      %v4733 = vunpack.c.l.b16 %v4725
      %v4734 = vpack.c.b16 %v4731, %v4730
      %v4735 = vpack.c.b16 %v4733, %v4732
      %v4739 = vsel %vm1401, %v4711, 0
      %v4742 = vsel %vm1401, %v4712, 0
      %v4745 = vsel %vm1401, %v4713, 0
      %v4748 = vsel %vm1401, %v4714, 0
      %v4751 = vsel %vm1401, %v4715, 0
      %v4754 = vsel %vm1401, %v4716, 0
      %v4757 = vsel %vm1401, %v4717, 0
      %v4760 = vsel %vm1401, %v4718, 0
      %v4763 = vsel %vm1401, %v4719, 0
      %v4766 = vsel %vm1401, %v4720, 0
      %v4769 = vsel %vm1401, %v4721, 0
      %4771 = vmatpush.bf16.msra.mxu0 0
      %4772 = vmatpush.bf16.msra.mxu0 0
      %4773 = vmatpush.bf16.msra.mxu0 0
      %4774 = vmatpush.bf16.msra.mxu0 0
      %4775 = vmatpush.bf16.msra.mxu0 0
      %4776 = vmatpush.bf16.msra.mxu0 0
      %4777 = vmatpush.bf16.msra.mxu0 %v4735
      %4778 = vmatpush.bf16.msra.mxu0 %v4734
      %4779 = vmatmul.bf16.gmra.mxu0 %v4739
      %v4780 = vpop.f32.mrf.mxu0
      %v4781 = vadd.f32 0.0, %v4780
      %v4782 = vpop.f32.mrf.mxu0
      %v4783 = vadd.f32 0.0, %v4782
      %4784 = vmatmul.bf16.gmra.mxu0 %v4742
      %v4785 = vpop.f32.mrf.mxu0
      %v4786 = vadd.f32 0.0, %v4785
      %v4787 = vpop.f32.mrf.mxu0
      %v4788 = vadd.f32 0.0, %v4787
      %4789 = vmatmul.bf16.gmra.mxu0 %v4745
      %v4790 = vpop.f32.mrf.mxu0
      %v4791 = vadd.f32 0.0, %v4790
      %v4792 = vpop.f32.mrf.mxu0
      %v4793 = vadd.f32 0.0, %v4792
      %4794 = vmatmul.bf16.gmra.mxu0 %v4748
      %v4795 = vpop.f32.mrf.mxu0
      %v4796 = vadd.f32 0.0, %v4795
      %v4797 = vpop.f32.mrf.mxu0
      %v4798 = vadd.f32 0.0, %v4797
      %4799 = vmatmul.bf16.gmra.mxu0 %v4751
      %v4800 = vpop.f32.mrf.mxu0
      %v4801 = vadd.f32 0.0, %v4800
      %v4802 = vpop.f32.mrf.mxu0
      %v4803 = vadd.f32 0.0, %v4802
      %4804 = vmatmul.bf16.gmra.mxu0 %v4754
      %v4805 = vpop.f32.mrf.mxu0
      %v4806 = vadd.f32 0.0, %v4805
      %v4807 = vpop.f32.mrf.mxu0
      %v4808 = vadd.f32 0.0, %v4807
      %4809 = vmatmul.bf16.gmra.mxu0 %v4757
      %v4810 = vpop.f32.mrf.mxu0
      %v4811 = vadd.f32 0.0, %v4810
      %v4812 = vpop.f32.mrf.mxu0
      %v4813 = vadd.f32 0.0, %v4812
      %4814 = vmatmul.bf16.gmra.mxu0 %v4760
      %v4815 = vpop.f32.mrf.mxu0
      %v4816 = vadd.f32 0.0, %v4815
      %v4817 = vpop.f32.mrf.mxu0
      %v4818 = vadd.f32 0.0, %v4817
      %4819 = vmatmul.bf16.gmra.mxu0 %v4763
      %v4820 = vpop.f32.mrf.mxu0
      %v4821 = vadd.f32 0.0, %v4820
      %v4822 = vpop.f32.mrf.mxu0
      %v4823 = vadd.f32 0.0, %v4822
      %4824 = vmatmul.bf16.gmra.mxu0 %v4766
      %v4825 = vpop.f32.mrf.mxu0
      %v4826 = vadd.f32 0.0, %v4825
      %v4827 = vpop.f32.mrf.mxu0
      %v4828 = vadd.f32 0.0, %v4827
      %4829 = vmatmul.bf16.gmra.mxu0 %v4769
      %v4830 = vpop.f32.mrf.mxu0
      %v4831 = vadd.f32 0.0, %v4830
      %v4832 = vpop.f32.mrf.mxu0
      %4833 = vdwg.mxu0
      %v4834 = vadd.f32 %v4669, %v4781
      %v4835 = vadd.f32 %v4670, %v4783
      %v4836 = vadd.f32 %v4671, %v4786
      %v4837 = vadd.f32 %v4672, %v4788
      %v4838 = vadd.f32 %v4673, %v4791
      %v4839 = vadd.f32 %v4674, %v4793
      %v4840 = vadd.f32 %v4675, %v4796
      %v4841 = vadd.f32 %v4676, %v4798
      %v4842 = vadd.f32 %v4677, %v4801
      %v4843 = vadd.f32 %v4678, %v4803
      %v4844 = vadd.f32 %v4679, %v4806
      %v4845 = vadd.f32 %v4680, %v4808
      %v4846 = vadd.f32 %v4681, %v4811
      %v4847 = vadd.f32 %v4682, %v4813
      %v4848 = vadd.f32 %v4683, %v4816
      %v4849 = vadd.f32 %v4684, %v4818
      %v4850 = vadd.f32 %v4685, %v4821
      %v4851 = vadd.f32 %v4686, %v4823
      %v4852 = vadd.f32 %v4687, %v4826
      %v4853 = vadd.f32 %v4688, %v4828
      %v4854 = vadd.f32 %v4689, %v4831
      %v4855 = vld [vmem:[#allocation2 + $0x3d] sm:$0xff]
      %v4856 = vld [vmem:[#allocation2 + $0x45] sm:$0xff]
      %v4857 = vld [vmem:[#allocation2 + $0x4d] sm:$0xff]
      %v4858 = vld [vmem:[#allocation2 + $0x55] sm:$0xff]
      %v4859 = vld [vmem:[#allocation2 + $0x5d] sm:$0xff]
      %v4860 = vld [vmem:[#allocation2 + $0x65] sm:$0xff]
      %v4861 = vld [vmem:[#allocation2 + $0x6d] sm:$0xff]
      %v4862 = vld [vmem:[#allocation2 + $0x75] sm:$0xff]
      %v4863 = vld [vmem:[#allocation2 + $0x7d] sm:$0xff]
      %v4864 = vld [vmem:[#allocation2 + $0x85] sm:$0xff]
      %v4865 = vld [vmem:[#allocation2 + $0x8d] sm:$0xff]
      %v4866 = vld [vmem:[#allocation2 + $0x95] sm:$0xff]
      %v4867 = vld [vmem:[#allocation2 + $0x9d] sm:$0xff]
      %v4868 = vld [vmem:[#allocation2 + $0xa5] sm:$0xff]
      %v4869 = vld [vmem:[#allocation2 + $0xad] sm:$0xff]
      %v4870 = vld [vmem:[#allocation2 + $0xb5] sm:$0xff]
      %v4871 = vld [vmem:[#allocation2 + $0xbd] sm:$0xff]
      %v4872 = vld [vmem:[#allocation2 + $0xc5] sm:$0xff]
      %v4873 = vld [vmem:[#allocation2 + $0xcd] sm:$0xff]
      %v4874 = vld [vmem:[#allocation2 + $0xd5] sm:$0xff]
      %v4875 = vld [vmem:[#allocation2 + $0xdd] sm:$0x1]
      %v4876 = vpack.c.bf16 %v4856, %v4855
      %v4877 = vpack.c.bf16 %v4858, %v4857
      %v4878 = vpack.c.bf16 %v4860, %v4859
      %v4879 = vpack.c.bf16 %v4862, %v4861
      %v4880 = vpack.c.bf16 %v4864, %v4863
      %v4881 = vpack.c.bf16 %v4866, %v4865
      %v4882 = vpack.c.bf16 %v4868, %v4867
      %v4883 = vpack.c.bf16 %v4870, %v4869
      %v4884 = vpack.c.bf16 %v4872, %v4871
      %v4885 = vpack.c.bf16 %v4874, %v4873
      %v4886 = vpack.c.bf16 %v4875, %v4875
      %v4887 = vld [vmem:[%s3 + $0x150] sm:$0xf]
      %v4888 = vld [vmem:[%s3 + $0x154] sm:$0xf]
      %v4889 = vld [vmem:[%s3 + $0x158] sm:$0xf]
      %v4890 = vld [vmem:[%s3 + $0x15c] sm:$0xf]
      %v4895 = vunpack.c.l.b16 %v4887
      %v4896 = vunpack.c.l.b16 %v4888
      %v4897 = vunpack.c.l.b16 %v4889
      %v4898 = vunpack.c.l.b16 %v4890
      %v4899 = vpack.c.b16 %v4896, %v4895
      %v4900 = vpack.c.b16 %v4898, %v4897
      %v4904 = vsel %vm1401, %v4876, 0
      %v4907 = vsel %vm1401, %v4877, 0
      %v4910 = vsel %vm1401, %v4878, 0
      %v4913 = vsel %vm1401, %v4879, 0
      %v4916 = vsel %vm1401, %v4880, 0
      %v4919 = vsel %vm1401, %v4881, 0
      %v4922 = vsel %vm1401, %v4882, 0
      %v4925 = vsel %vm1401, %v4883, 0
      %v4928 = vsel %vm1401, %v4884, 0
      %v4931 = vsel %vm1401, %v4885, 0
      %v4934 = vsel %vm1401, %v4886, 0
      %4936 = vmatpush.bf16.msra.mxu0 0
      %4937 = vmatpush.bf16.msra.mxu0 0
      %4938 = vmatpush.bf16.msra.mxu0 0
      %4939 = vmatpush.bf16.msra.mxu0 0
      %4940 = vmatpush.bf16.msra.mxu0 0
      %4941 = vmatpush.bf16.msra.mxu0 0
      %4942 = vmatpush.bf16.msra.mxu0 %v4900
      %4943 = vmatpush.bf16.msra.mxu0 %v4899
      %4944 = vmatmul.bf16.gmra.mxu0 %v4904
      %v4945 = vpop.f32.mrf.mxu0
      %v4946 = vadd.f32 0.0, %v4945
      %v4947 = vpop.f32.mrf.mxu0
      %v4948 = vadd.f32 0.0, %v4947
      %4949 = vmatmul.bf16.gmra.mxu0 %v4907
      %v4950 = vpop.f32.mrf.mxu0
      %v4951 = vadd.f32 0.0, %v4950
      %v4952 = vpop.f32.mrf.mxu0
      %v4953 = vadd.f32 0.0, %v4952
      %4954 = vmatmul.bf16.gmra.mxu0 %v4910
      %v4955 = vpop.f32.mrf.mxu0
      %v4956 = vadd.f32 0.0, %v4955
      %v4957 = vpop.f32.mrf.mxu0
      %v4958 = vadd.f32 0.0, %v4957
      %4959 = vmatmul.bf16.gmra.mxu0 %v4913
      %v4960 = vpop.f32.mrf.mxu0
      %v4961 = vadd.f32 0.0, %v4960
      %v4962 = vpop.f32.mrf.mxu0
      %v4963 = vadd.f32 0.0, %v4962
      %4964 = vmatmul.bf16.gmra.mxu0 %v4916
      %v4965 = vpop.f32.mrf.mxu0
      %v4966 = vadd.f32 0.0, %v4965
      %v4967 = vpop.f32.mrf.mxu0
      %v4968 = vadd.f32 0.0, %v4967
      %4969 = vmatmul.bf16.gmra.mxu0 %v4919
      %v4970 = vpop.f32.mrf.mxu0
      %v4971 = vadd.f32 0.0, %v4970
      %v4972 = vpop.f32.mrf.mxu0
      %v4973 = vadd.f32 0.0, %v4972
      %4974 = vmatmul.bf16.gmra.mxu0 %v4922
      %v4975 = vpop.f32.mrf.mxu0
      %v4976 = vadd.f32 0.0, %v4975
      %v4977 = vpop.f32.mrf.mxu0
      %v4978 = vadd.f32 0.0, %v4977
      %4979 = vmatmul.bf16.gmra.mxu0 %v4925
      %v4980 = vpop.f32.mrf.mxu0
      %v4981 = vadd.f32 0.0, %v4980
      %v4982 = vpop.f32.mrf.mxu0
      %v4983 = vadd.f32 0.0, %v4982
      %4984 = vmatmul.bf16.gmra.mxu0 %v4928
      %v4985 = vpop.f32.mrf.mxu0
      %v4986 = vadd.f32 0.0, %v4985
      %v4987 = vpop.f32.mrf.mxu0
      %v4988 = vadd.f32 0.0, %v4987
      %4989 = vmatmul.bf16.gmra.mxu0 %v4931
      %v4990 = vpop.f32.mrf.mxu0
      %v4991 = vadd.f32 0.0, %v4990
      %v4992 = vpop.f32.mrf.mxu0
      %v4993 = vadd.f32 0.0, %v4992
      %4994 = vmatmul.bf16.gmra.mxu0 %v4934
      %v4995 = vpop.f32.mrf.mxu0
      %v4996 = vadd.f32 0.0, %v4995
      %v4997 = vpop.f32.mrf.mxu0
      %4998 = vdwg.mxu0
      %v4999 = vadd.f32 %v4834, %v4946
      %v5000 = vadd.f32 %v4835, %v4948
      %v5001 = vadd.f32 %v4836, %v4951
      %v5002 = vadd.f32 %v4837, %v4953
      %v5003 = vadd.f32 %v4838, %v4956
      %v5004 = vadd.f32 %v4839, %v4958
      %v5005 = vadd.f32 %v4840, %v4961
      %v5006 = vadd.f32 %v4841, %v4963
      %v5007 = vadd.f32 %v4842, %v4966
      %v5008 = vadd.f32 %v4843, %v4968
      %v5009 = vadd.f32 %v4844, %v4971
      %v5010 = vadd.f32 %v4845, %v4973
      %v5011 = vadd.f32 %v4846, %v4976
      %v5012 = vadd.f32 %v4847, %v4978
      %v5013 = vadd.f32 %v4848, %v4981
      %v5014 = vadd.f32 %v4849, %v4983
      %v5015 = vadd.f32 %v4850, %v4986
      %v5016 = vadd.f32 %v4851, %v4988
      %v5017 = vadd.f32 %v4852, %v4991
      %v5018 = vadd.f32 %v4853, %v4993
      %v5019 = vadd.f32 %v4854, %v4996
      %v5020 = vld [vmem:[#allocation2 + $0x3e] sm:$0xff]
      %v5021 = vld [vmem:[#allocation2 + $0x46] sm:$0xff]
      %v5022 = vld [vmem:[#allocation2 + $0x4e] sm:$0xff]
      %v5023 = vld [vmem:[#allocation2 + $0x56] sm:$0xff]
      %v5024 = vld [vmem:[#allocation2 + $0x5e] sm:$0xff]
      %v5025 = vld [vmem:[#allocation2 + $0x66] sm:$0xff]
      %v5026 = vld [vmem:[#allocation2 + $0x6e] sm:$0xff]
      %v5027 = vld [vmem:[#allocation2 + $0x76] sm:$0xff]
      %v5028 = vld [vmem:[#allocation2 + $0x7e] sm:$0xff]
      %v5029 = vld [vmem:[#allocation2 + $0x86] sm:$0xff]
      %v5030 = vld [vmem:[#allocation2 + $0x8e] sm:$0xff]
      %v5031 = vld [vmem:[#allocation2 + $0x96] sm:$0xff]
      %v5032 = vld [vmem:[#allocation2 + $0x9e] sm:$0xff]
      %v5033 = vld [vmem:[#allocation2 + $0xa6] sm:$0xff]
      %v5034 = vld [vmem:[#allocation2 + $0xae] sm:$0xff]
      %v5035 = vld [vmem:[#allocation2 + $0xb6] sm:$0xff]
      %v5036 = vld [vmem:[#allocation2 + $0xbe] sm:$0xff]
      %v5037 = vld [vmem:[#allocation2 + $0xc6] sm:$0xff]
      %v5038 = vld [vmem:[#allocation2 + $0xce] sm:$0xff]
      %v5039 = vld [vmem:[#allocation2 + $0xd6] sm:$0xff]
      %v5040 = vld [vmem:[#allocation2 + $0xde] sm:$0x1]
      %v5041 = vpack.c.bf16 %v5021, %v5020
      %v5042 = vpack.c.bf16 %v5023, %v5022
      %v5043 = vpack.c.bf16 %v5025, %v5024
      %v5044 = vpack.c.bf16 %v5027, %v5026
      %v5045 = vpack.c.bf16 %v5029, %v5028
      %v5046 = vpack.c.bf16 %v5031, %v5030
      %v5047 = vpack.c.bf16 %v5033, %v5032
      %v5048 = vpack.c.bf16 %v5035, %v5034
      %v5049 = vpack.c.bf16 %v5037, %v5036
      %v5050 = vpack.c.bf16 %v5039, %v5038
      %v5051 = vpack.c.bf16 %v5040, %v5040
      %v5052 = vld [vmem:[%s3 + $0x160] sm:$0xf]
      %v5053 = vld [vmem:[%s3 + $0x164] sm:$0xf]
      %v5054 = vld [vmem:[%s3 + $0x168] sm:$0xf]
      %v5055 = vld [vmem:[%s3 + $0x16c] sm:$0xf]
      %v5060 = vunpack.c.l.b16 %v5052
      %v5061 = vunpack.c.l.b16 %v5053
      %v5062 = vunpack.c.l.b16 %v5054
      %v5063 = vunpack.c.l.b16 %v5055
      %v5064 = vpack.c.b16 %v5061, %v5060
      %v5065 = vpack.c.b16 %v5063, %v5062
      %v5069 = vsel %vm1401, %v5041, 0
      %v5072 = vsel %vm1401, %v5042, 0
      %v5075 = vsel %vm1401, %v5043, 0
      %v5078 = vsel %vm1401, %v5044, 0
      %v5081 = vsel %vm1401, %v5045, 0
      %v5084 = vsel %vm1401, %v5046, 0
      %v5087 = vsel %vm1401, %v5047, 0
      %v5090 = vsel %vm1401, %v5048, 0
      %v5093 = vsel %vm1401, %v5049, 0
      %v5096 = vsel %vm1401, %v5050, 0
      %v5099 = vsel %vm1401, %v5051, 0
      %5101 = vmatpush.bf16.msra.mxu0 0
      %5102 = vmatpush.bf16.msra.mxu0 0
      %5103 = vmatpush.bf16.msra.mxu0 0
      %5104 = vmatpush.bf16.msra.mxu0 0
      %5105 = vmatpush.bf16.msra.mxu0 0
      %5106 = vmatpush.bf16.msra.mxu0 0
      %5107 = vmatpush.bf16.msra.mxu0 %v5065
      %5108 = vmatpush.bf16.msra.mxu0 %v5064
      %5109 = vmatmul.bf16.gmra.mxu0 %v5069
      %v5110 = vpop.f32.mrf.mxu0
      %v5111 = vadd.f32 0.0, %v5110
      %v5112 = vpop.f32.mrf.mxu0
      %v5113 = vadd.f32 0.0, %v5112
      %5114 = vmatmul.bf16.gmra.mxu0 %v5072
      %v5115 = vpop.f32.mrf.mxu0
      %v5116 = vadd.f32 0.0, %v5115
      %v5117 = vpop.f32.mrf.mxu0
      %v5118 = vadd.f32 0.0, %v5117
      %5119 = vmatmul.bf16.gmra.mxu0 %v5075
      %v5120 = vpop.f32.mrf.mxu0
      %v5121 = vadd.f32 0.0, %v5120
      %v5122 = vpop.f32.mrf.mxu0
      %v5123 = vadd.f32 0.0, %v5122
      %5124 = vmatmul.bf16.gmra.mxu0 %v5078
      %v5125 = vpop.f32.mrf.mxu0
      %v5126 = vadd.f32 0.0, %v5125
      %v5127 = vpop.f32.mrf.mxu0
      %v5128 = vadd.f32 0.0, %v5127
      %5129 = vmatmul.bf16.gmra.mxu0 %v5081
      %v5130 = vpop.f32.mrf.mxu0
      %v5131 = vadd.f32 0.0, %v5130
      %v5132 = vpop.f32.mrf.mxu0
      %v5133 = vadd.f32 0.0, %v5132
      %5134 = vmatmul.bf16.gmra.mxu0 %v5084
      %v5135 = vpop.f32.mrf.mxu0
      %v5136 = vadd.f32 0.0, %v5135
      %v5137 = vpop.f32.mrf.mxu0
      %v5138 = vadd.f32 0.0, %v5137
      %5139 = vmatmul.bf16.gmra.mxu0 %v5087
      %v5140 = vpop.f32.mrf.mxu0
      %v5141 = vadd.f32 0.0, %v5140
      %v5142 = vpop.f32.mrf.mxu0
      %v5143 = vadd.f32 0.0, %v5142
      %5144 = vmatmul.bf16.gmra.mxu0 %v5090
      %v5145 = vpop.f32.mrf.mxu0
      %v5146 = vadd.f32 0.0, %v5145
      %v5147 = vpop.f32.mrf.mxu0
      %v5148 = vadd.f32 0.0, %v5147
      %5149 = vmatmul.bf16.gmra.mxu0 %v5093
      %v5150 = vpop.f32.mrf.mxu0
      %v5151 = vadd.f32 0.0, %v5150
      %v5152 = vpop.f32.mrf.mxu0
      %v5153 = vadd.f32 0.0, %v5152
      %5154 = vmatmul.bf16.gmra.mxu0 %v5096
      %v5155 = vpop.f32.mrf.mxu0
      %v5156 = vadd.f32 0.0, %v5155
      %v5157 = vpop.f32.mrf.mxu0
      %v5158 = vadd.f32 0.0, %v5157
      %5159 = vmatmul.bf16.gmra.mxu0 %v5099
      %v5160 = vpop.f32.mrf.mxu0
      %v5161 = vadd.f32 0.0, %v5160
      %v5162 = vpop.f32.mrf.mxu0
      %5163 = vdwg.mxu0
      %v5164 = vadd.f32 %v4999, %v5111
      %v5165 = vadd.f32 %v5000, %v5113
      %v5166 = vadd.f32 %v5001, %v5116
      %v5167 = vadd.f32 %v5002, %v5118
      %v5168 = vadd.f32 %v5003, %v5121
      %v5169 = vadd.f32 %v5004, %v5123
      %v5170 = vadd.f32 %v5005, %v5126
      %v5171 = vadd.f32 %v5006, %v5128
      %v5172 = vadd.f32 %v5007, %v5131
      %v5173 = vadd.f32 %v5008, %v5133
      %v5174 = vadd.f32 %v5009, %v5136
      %v5175 = vadd.f32 %v5010, %v5138
      %v5176 = vadd.f32 %v5011, %v5141
      %v5177 = vadd.f32 %v5012, %v5143
      %v5178 = vadd.f32 %v5013, %v5146
      %v5179 = vadd.f32 %v5014, %v5148
      %v5180 = vadd.f32 %v5015, %v5151
      %v5181 = vadd.f32 %v5016, %v5153
      %v5182 = vadd.f32 %v5017, %v5156
      %v5183 = vadd.f32 %v5018, %v5158
      %v5184 = vadd.f32 %v5019, %v5161
      %v5185 = vld [vmem:[#allocation2 + $0x3f] sm:$0xff]
      %v5186 = vld [vmem:[#allocation2 + $0x47] sm:$0xff]
      %v5187 = vld [vmem:[#allocation2 + $0x4f] sm:$0xff]
      %v5188 = vld [vmem:[#allocation2 + $0x57] sm:$0xff]
      %v5189 = vld [vmem:[#allocation2 + $0x5f] sm:$0xff]
      %v5190 = vld [vmem:[#allocation2 + $0x67] sm:$0xff]
      %v5191 = vld [vmem:[#allocation2 + $0x6f] sm:$0xff]
      %v5192 = vld [vmem:[#allocation2 + $0x77] sm:$0xff]
      %v5193 = vld [vmem:[#allocation2 + $0x7f] sm:$0xff]
      %v5194 = vld [vmem:[#allocation2 + $0x87] sm:$0xff]
      %v5195 = vld [vmem:[#allocation2 + $0x8f] sm:$0xff]
      %v5196 = vld [vmem:[#allocation2 + $0x97] sm:$0xff]
      %v5197 = vld [vmem:[#allocation2 + $0x9f] sm:$0xff]
      %v5198 = vld [vmem:[#allocation2 + $0xa7] sm:$0xff]
      %v5199 = vld [vmem:[#allocation2 + $0xaf] sm:$0xff]
      %v5200 = vld [vmem:[#allocation2 + $0xb7] sm:$0xff]
      %v5201 = vld [vmem:[#allocation2 + $0xbf] sm:$0xff]
      %v5202 = vld [vmem:[#allocation2 + $0xc7] sm:$0xff]
      %v5203 = vld [vmem:[#allocation2 + $0xcf] sm:$0xff]
      %v5204 = vld [vmem:[#allocation2 + $0xd7] sm:$0xff]
      %v5205 = vld [vmem:[#allocation2 + $0xdf] sm:$0x1]
      %v5206 = vpack.c.bf16 %v5186, %v5185
      %v5207 = vpack.c.bf16 %v5188, %v5187
      %v5208 = vpack.c.bf16 %v5190, %v5189
      %v5209 = vpack.c.bf16 %v5192, %v5191
      %v5210 = vpack.c.bf16 %v5194, %v5193
      %v5211 = vpack.c.bf16 %v5196, %v5195
      %v5212 = vpack.c.bf16 %v5198, %v5197
      %v5213 = vpack.c.bf16 %v5200, %v5199
      %v5214 = vpack.c.bf16 %v5202, %v5201
      %v5215 = vpack.c.bf16 %v5204, %v5203
      %v5216 = vpack.c.bf16 %v5205, %v5205
      %v5217 = vld [vmem:[%s3 + $0x170] sm:$0xf]
      %v5218 = vld [vmem:[%s3 + $0x174] sm:$0xf]
      %v5219 = vld [vmem:[%s3 + $0x178] sm:$0xf]
      %v5220 = vld [vmem:[%s3 + $0x17c] sm:$0xf]
      %v5225 = vunpack.c.l.b16 %v5217
      %v5226 = vunpack.c.l.b16 %v5218
      %v5227 = vunpack.c.l.b16 %v5219
      %v5228 = vunpack.c.l.b16 %v5220
      %v5229 = vpack.c.b16 %v5226, %v5225
      %v5230 = vpack.c.b16 %v5228, %v5227
      %v5234 = vsel %vm1401, %v5206, 0
      %v5237 = vsel %vm1401, %v5207, 0
      %v5240 = vsel %vm1401, %v5208, 0
      %v5243 = vsel %vm1401, %v5209, 0
      %v5246 = vsel %vm1401, %v5210, 0
      %v5249 = vsel %vm1401, %v5211, 0
      %v5252 = vsel %vm1401, %v5212, 0
      %v5255 = vsel %vm1401, %v5213, 0
      %v5258 = vsel %vm1401, %v5214, 0
      %v5261 = vsel %vm1401, %v5215, 0
      %v5264 = vsel %vm1401, %v5216, 0
      %5266 = vmatpush.bf16.msra.mxu0 0
      %5267 = vmatpush.bf16.msra.mxu0 0
      %5268 = vmatpush.bf16.msra.mxu0 0
      %5269 = vmatpush.bf16.msra.mxu0 0
      %5270 = vmatpush.bf16.msra.mxu0 0
      %5271 = vmatpush.bf16.msra.mxu0 0
      %5272 = vmatpush.bf16.msra.mxu0 %v5230
      %5273 = vmatpush.bf16.msra.mxu0 %v5229
      %5274 = vmatmul.bf16.gmra.mxu0 %v5234
      %v5275 = vpop.f32.mrf.mxu0
      %v5276 = vadd.f32 0.0, %v5275
      %v5277 = vpop.f32.mrf.mxu0
      %v5278 = vadd.f32 0.0, %v5277
      %5279 = vmatmul.bf16.gmra.mxu0 %v5237
      %v5280 = vpop.f32.mrf.mxu0
      %v5281 = vadd.f32 0.0, %v5280
      %v5282 = vpop.f32.mrf.mxu0
      %v5283 = vadd.f32 0.0, %v5282
      %5284 = vmatmul.bf16.gmra.mxu0 %v5240
      %v5285 = vpop.f32.mrf.mxu0
      %v5286 = vadd.f32 0.0, %v5285
      %v5287 = vpop.f32.mrf.mxu0
      %v5288 = vadd.f32 0.0, %v5287
      %5289 = vmatmul.bf16.gmra.mxu0 %v5243
      %v5290 = vpop.f32.mrf.mxu0
      %v5291 = vadd.f32 0.0, %v5290
      %v5292 = vpop.f32.mrf.mxu0
      %v5293 = vadd.f32 0.0, %v5292
      %5294 = vmatmul.bf16.gmra.mxu0 %v5246
      %v5295 = vpop.f32.mrf.mxu0
      %v5296 = vadd.f32 0.0, %v5295
      %v5297 = vpop.f32.mrf.mxu0
      %v5298 = vadd.f32 0.0, %v5297
      %5299 = vmatmul.bf16.gmra.mxu0 %v5249
      %v5300 = vpop.f32.mrf.mxu0
      %v5301 = vadd.f32 0.0, %v5300
      %v5302 = vpop.f32.mrf.mxu0
      %v5303 = vadd.f32 0.0, %v5302
      %5304 = vmatmul.bf16.gmra.mxu0 %v5252
      %v5305 = vpop.f32.mrf.mxu0
      %v5306 = vadd.f32 0.0, %v5305
      %v5307 = vpop.f32.mrf.mxu0
      %v5308 = vadd.f32 0.0, %v5307
      %5309 = vmatmul.bf16.gmra.mxu0 %v5255
      %v5310 = vpop.f32.mrf.mxu0
      %v5311 = vadd.f32 0.0, %v5310
      %v5312 = vpop.f32.mrf.mxu0
      %v5313 = vadd.f32 0.0, %v5312
      %5314 = vmatmul.bf16.gmra.mxu0 %v5258
      %v5315 = vpop.f32.mrf.mxu0
      %v5316 = vadd.f32 0.0, %v5315
      %v5317 = vpop.f32.mrf.mxu0
      %v5318 = vadd.f32 0.0, %v5317
      %5319 = vmatmul.bf16.gmra.mxu0 %v5261
      %v5320 = vpop.f32.mrf.mxu0
      %v5321 = vadd.f32 0.0, %v5320
      %v5322 = vpop.f32.mrf.mxu0
      %v5323 = vadd.f32 0.0, %v5322
      %5324 = vmatmul.bf16.gmra.mxu0 %v5264
      %v5325 = vpop.f32.mrf.mxu0
      %v5326 = vadd.f32 0.0, %v5325
      %v5327 = vpop.f32.mrf.mxu0
      %5328 = vdwg.mxu0
      %v5329 = vadd.f32 %v5164, %v5276
      %v5330 = vadd.f32 %v5165, %v5278
      %v5331 = vadd.f32 %v5166, %v5281
      %v5332 = vadd.f32 %v5167, %v5283
      %v5333 = vadd.f32 %v5168, %v5286
      %v5334 = vadd.f32 %v5169, %v5288
      %v5335 = vadd.f32 %v5170, %v5291
      %v5336 = vadd.f32 %v5171, %v5293
      %v5337 = vadd.f32 %v5172, %v5296
      %v5338 = vadd.f32 %v5173, %v5298
      %v5339 = vadd.f32 %v5174, %v5301
      %v5340 = vadd.f32 %v5175, %v5303
      %v5341 = vadd.f32 %v5176, %v5306
      %v5342 = vadd.f32 %v5177, %v5308
      %v5343 = vadd.f32 %v5178, %v5311
      %v5344 = vadd.f32 %v5179, %v5313
      %v5345 = vadd.f32 %v5180, %v5316
      %v5346 = vadd.f32 %v5181, %v5318
      %v5347 = vadd.f32 %v5182, %v5321
      %v5348 = vadd.f32 %v5183, %v5323
      %v5349 = vadd.f32 %v5184, %v5326
      %v5350 = vld [vmem:[#allocation2 + $0x40] sm:$0xff]
      %v5351 = vld [vmem:[#allocation2 + $0x48] sm:$0xff]
      %v5352 = vld [vmem:[#allocation2 + $0x50] sm:$0xff]
      %v5353 = vld [vmem:[#allocation2 + $0x58] sm:$0xff]
      %v5354 = vld [vmem:[#allocation2 + $0x60] sm:$0xff]
      %v5355 = vld [vmem:[#allocation2 + $0x68] sm:$0xff]
      %v5356 = vld [vmem:[#allocation2 + $0x70] sm:$0xff]
      %v5357 = vld [vmem:[#allocation2 + $0x78] sm:$0xff]
      %v5358 = vld [vmem:[#allocation2 + $0x80] sm:$0xff]
      %v5359 = vld [vmem:[#allocation2 + $0x88] sm:$0xff]
      %v5360 = vld [vmem:[#allocation2 + $0x90] sm:$0xff]
      %v5361 = vld [vmem:[#allocation2 + $0x98] sm:$0xff]
      %v5362 = vld [vmem:[#allocation2 + $0xa0] sm:$0xff]
      %v5363 = vld [vmem:[#allocation2 + $0xa8] sm:$0xff]
      %v5364 = vld [vmem:[#allocation2 + $0xb0] sm:$0xff]
      %v5365 = vld [vmem:[#allocation2 + $0xb8] sm:$0xff]
      %v5366 = vld [vmem:[#allocation2 + $0xc0] sm:$0xff]
      %v5367 = vld [vmem:[#allocation2 + $0xc8] sm:$0xff]
      %v5368 = vld [vmem:[#allocation2 + $0xd0] sm:$0xff]
      %v5369 = vld [vmem:[#allocation2 + $0xd8] sm:$0xff]
      %v5370 = vld [vmem:[#allocation2 + $0xe0] sm:$0x1]
      %v5371 = vpack.c.bf16 %v5351, %v5350
      %v5372 = vpack.c.bf16 %v5353, %v5352
      %v5373 = vpack.c.bf16 %v5355, %v5354
      %v5374 = vpack.c.bf16 %v5357, %v5356
      %v5375 = vpack.c.bf16 %v5359, %v5358
      %v5376 = vpack.c.bf16 %v5361, %v5360
      %v5377 = vpack.c.bf16 %v5363, %v5362
      %v5378 = vpack.c.bf16 %v5365, %v5364
      %v5379 = vpack.c.bf16 %v5367, %v5366
      %v5380 = vpack.c.bf16 %v5369, %v5368
      %v5381 = vpack.c.bf16 %v5370, %v5370
      %v5382 = vld [vmem:[%s3 + $0x180] sm:$0xf]
      %v5383 = vld [vmem:[%s3 + $0x184] sm:$0xf]
      %v5384 = vld [vmem:[%s3 + $0x188] sm:$0xf]
      %v5385 = vld [vmem:[%s3 + $0x18c] sm:$0xf]
      %v5390 = vunpack.c.l.b16 %v5382
      %v5391 = vunpack.c.l.b16 %v5383
      %v5392 = vunpack.c.l.b16 %v5384
      %v5393 = vunpack.c.l.b16 %v5385
      %v5394 = vpack.c.b16 %v5391, %v5390
      %v5395 = vpack.c.b16 %v5393, %v5392
      %v5399 = vsel %vm1401, %v5371, 0
      %v5402 = vsel %vm1401, %v5372, 0
      %v5405 = vsel %vm1401, %v5373, 0
      %v5408 = vsel %vm1401, %v5374, 0
      %v5411 = vsel %vm1401, %v5375, 0
      %v5414 = vsel %vm1401, %v5376, 0
      %v5417 = vsel %vm1401, %v5377, 0
      %v5420 = vsel %vm1401, %v5378, 0
      %v5423 = vsel %vm1401, %v5379, 0
      %v5426 = vsel %vm1401, %v5380, 0
      %v5429 = vsel %vm1401, %v5381, 0
      %5431 = vmatpush.bf16.msra.mxu0 0
      %5432 = vmatpush.bf16.msra.mxu0 0
      %5433 = vmatpush.bf16.msra.mxu0 0
      %5434 = vmatpush.bf16.msra.mxu0 0
      %5435 = vmatpush.bf16.msra.mxu0 0
      %5436 = vmatpush.bf16.msra.mxu0 0
      %5437 = vmatpush.bf16.msra.mxu0 %v5395
      %5438 = vmatpush.bf16.msra.mxu0 %v5394
      %5439 = vmatmul.bf16.gmra.mxu0 %v5399
      %v5440 = vpop.f32.mrf.mxu0
      %v5441 = vadd.f32 0.0, %v5440
      %v5442 = vpop.f32.mrf.mxu0
      %v5443 = vadd.f32 0.0, %v5442
      %5444 = vmatmul.bf16.gmra.mxu0 %v5402
      %v5445 = vpop.f32.mrf.mxu0
      %v5446 = vadd.f32 0.0, %v5445
      %v5447 = vpop.f32.mrf.mxu0
      %v5448 = vadd.f32 0.0, %v5447
      %5449 = vmatmul.bf16.gmra.mxu0 %v5405
      %v5450 = vpop.f32.mrf.mxu0
      %v5451 = vadd.f32 0.0, %v5450
      %v5452 = vpop.f32.mrf.mxu0
      %v5453 = vadd.f32 0.0, %v5452
      %5454 = vmatmul.bf16.gmra.mxu0 %v5408
      %v5455 = vpop.f32.mrf.mxu0
      %v5456 = vadd.f32 0.0, %v5455
      %v5457 = vpop.f32.mrf.mxu0
      %v5458 = vadd.f32 0.0, %v5457
      %5459 = vmatmul.bf16.gmra.mxu0 %v5411
      %v5460 = vpop.f32.mrf.mxu0
      %v5461 = vadd.f32 0.0, %v5460
      %v5462 = vpop.f32.mrf.mxu0
      %v5463 = vadd.f32 0.0, %v5462
      %5464 = vmatmul.bf16.gmra.mxu0 %v5414
      %v5465 = vpop.f32.mrf.mxu0
      %v5466 = vadd.f32 0.0, %v5465
      %v5467 = vpop.f32.mrf.mxu0
      %v5468 = vadd.f32 0.0, %v5467
      %5469 = vmatmul.bf16.gmra.mxu0 %v5417
      %v5470 = vpop.f32.mrf.mxu0
      %v5471 = vadd.f32 0.0, %v5470
      %v5472 = vpop.f32.mrf.mxu0
      %v5473 = vadd.f32 0.0, %v5472
      %5474 = vmatmul.bf16.gmra.mxu0 %v5420
      %v5475 = vpop.f32.mrf.mxu0
      %v5476 = vadd.f32 0.0, %v5475
      %v5477 = vpop.f32.mrf.mxu0
      %v5478 = vadd.f32 0.0, %v5477
      %5479 = vmatmul.bf16.gmra.mxu0 %v5423
      %v5480 = vpop.f32.mrf.mxu0
      %v5481 = vadd.f32 0.0, %v5480
      %v5482 = vpop.f32.mrf.mxu0
      %v5483 = vadd.f32 0.0, %v5482
      %5484 = vmatmul.bf16.gmra.mxu0 %v5426
      %v5485 = vpop.f32.mrf.mxu0
      %v5486 = vadd.f32 0.0, %v5485
      %v5487 = vpop.f32.mrf.mxu0
      %v5488 = vadd.f32 0.0, %v5487
      %5489 = vmatmul.bf16.gmra.mxu0 %v5429
      %v5490 = vpop.f32.mrf.mxu0
      %v5491 = vadd.f32 0.0, %v5490
      %v5492 = vpop.f32.mrf.mxu0
      %5493 = vdwg.mxu0
      %v5494 = vadd.f32 %v5329, %v5441
      %v5495 = vadd.f32 %v5330, %v5443
      %v5496 = vadd.f32 %v5331, %v5446
      %v5497 = vadd.f32 %v5332, %v5448
      %v5498 = vadd.f32 %v5333, %v5451
      %v5499 = vadd.f32 %v5334, %v5453
      %v5500 = vadd.f32 %v5335, %v5456
      %v5501 = vadd.f32 %v5336, %v5458
      %v5502 = vadd.f32 %v5337, %v5461
      %v5503 = vadd.f32 %v5338, %v5463
      %v5504 = vadd.f32 %v5339, %v5466
      %v5505 = vadd.f32 %v5340, %v5468
      %v5506 = vadd.f32 %v5341, %v5471
      %v5507 = vadd.f32 %v5342, %v5473
      %v5508 = vadd.f32 %v5343, %v5476
      %v5509 = vadd.f32 %v5344, %v5478
      %v5510 = vadd.f32 %v5345, %v5481
      %v5511 = vadd.f32 %v5346, %v5483
      %v5512 = vadd.f32 %v5347, %v5486
      %v5513 = vadd.f32 %v5348, %v5488
      %v5514 = vadd.f32 %v5349, %v5491
      %v5515 = vld [vmem:[%s4] sm:$0x1]
      %v5517 = vperm.slane %v5515, 0
      %v5519 = vadd.f32 %v5494, %v5517
      %v5520 = vadd.f32 %v5495, %v5517
      %v5521 = vadd.f32 %v5496, %v5517
      %v5522 = vadd.f32 %v5497, %v5517
      %v5523 = vadd.f32 %v5498, %v5517
      %v5524 = vadd.f32 %v5499, %v5517
      %v5525 = vadd.f32 %v5500, %v5517
      %v5526 = vadd.f32 %v5501, %v5517
      %v5527 = vadd.f32 %v5502, %v5517
      %v5528 = vadd.f32 %v5503, %v5517
      %v5529 = vadd.f32 %v5504, %v5517
      %v5530 = vadd.f32 %v5505, %v5517
      %v5531 = vadd.f32 %v5506, %v5517
      %v5532 = vadd.f32 %v5507, %v5517
      %v5533 = vadd.f32 %v5508, %v5517
      %v5534 = vadd.f32 %v5509, %v5517
      %v5535 = vadd.f32 %v5510, %v5517
      %v5536 = vadd.f32 %v5511, %v5517
      %v5537 = vadd.f32 %v5512, %v5517
      %v5538 = vadd.f32 %v5513, %v5517
      %v5539 = vadd.f32 %v5514, %v5517
      %v5540 = vld [vmem:[%s5] sm:$0xff]
      %v5541 = vld [vmem:[%s5 + $0x8] sm:$0xff]
      %v5542 = vld [vmem:[%s5 + $0x10] sm:$0xff]
      %v5543 = vld [vmem:[%s5 + $0x18] sm:$0xff]
      %v5544 = vld [vmem:[%s5 + $0x20] sm:$0xff]
      %v5545 = vld [vmem:[%s5 + $0x28] sm:$0xff]
      %v5546 = vld [vmem:[%s5 + $0x30] sm:$0xff]
      %v5547 = vld [vmem:[%s5 + $0x38] sm:$0xff]
      %v5548 = vld [vmem:[%s5 + $0x40] sm:$0xff]
      %v5549 = vld [vmem:[%s5 + $0x48] sm:$0xff]
      %v5550 = vld [vmem:[%s5 + $0x50] sm:$0xff]
      %v5551 = vld [vmem:[%s5 + $0x58] sm:$0xff]
      %v5552 = vld [vmem:[%s5 + $0x60] sm:$0xff]
      %v5553 = vld [vmem:[%s5 + $0x68] sm:$0xff]
      %v5554 = vld [vmem:[%s5 + $0x70] sm:$0xff]
      %v5555 = vld [vmem:[%s5 + $0x78] sm:$0xff]
      %v5556 = vld [vmem:[%s5 + $0x80] sm:$0xff]
      %v5557 = vld [vmem:[%s5 + $0x88] sm:$0xff]
      %v5558 = vld [vmem:[%s5 + $0x90] sm:$0xff]
      %v5559 = vld [vmem:[%s5 + $0x98] sm:$0xff]
      %v5560 = vld [vmem:[%s5 + $0xa0] sm:$0x1]
      %5562 = vset.pattern.permute.xlu0 0
      %5563 = vperm.xlu0 %5562, %v5540
      %v5564 = vpop.permute.xlu0 %5563
      %5567 = vset.pattern.permute.xlu0 0
      %5568 = vperm.xlu0 %5567, %v5541
      %v5569 = vpop.permute.xlu0 %5568
      %5572 = vset.pattern.permute.xlu0 0
      %5573 = vperm.xlu0 %5572, %v5542
      %v5574 = vpop.permute.xlu0 %5573
      %5577 = vset.pattern.permute.xlu0 0
      %5578 = vperm.xlu0 %5577, %v5543
      %v5579 = vpop.permute.xlu0 %5578
      %5582 = vset.pattern.permute.xlu0 0
      %5583 = vperm.xlu0 %5582, %v5544
      %v5584 = vpop.permute.xlu0 %5583
      %5587 = vset.pattern.permute.xlu0 0
      %5588 = vperm.xlu0 %5587, %v5545
      %v5589 = vpop.permute.xlu0 %5588
      %5592 = vset.pattern.permute.xlu0 0
      %5593 = vperm.xlu0 %5592, %v5546
      %v5594 = vpop.permute.xlu0 %5593
      %5597 = vset.pattern.permute.xlu0 0
      %5598 = vperm.xlu0 %5597, %v5547
      %v5599 = vpop.permute.xlu0 %5598
      %5602 = vset.pattern.permute.xlu0 0
      %5603 = vperm.xlu0 %5602, %v5548
      %v5604 = vpop.permute.xlu0 %5603
      %5607 = vset.pattern.permute.xlu0 0
      %5608 = vperm.xlu0 %5607, %v5549
      %v5609 = vpop.permute.xlu0 %5608
      %5612 = vset.pattern.permute.xlu0 0
      %5613 = vperm.xlu0 %5612, %v5550
      %v5614 = vpop.permute.xlu0 %5613
      %5617 = vset.pattern.permute.xlu0 0
      %5618 = vperm.xlu0 %5617, %v5551
      %v5619 = vpop.permute.xlu0 %5618
      %5622 = vset.pattern.permute.xlu0 0
      %5623 = vperm.xlu0 %5622, %v5552
      %v5624 = vpop.permute.xlu0 %5623
      %5627 = vset.pattern.permute.xlu0 0
      %5628 = vperm.xlu0 %5627, %v5553
      %v5629 = vpop.permute.xlu0 %5628
      %5632 = vset.pattern.permute.xlu0 0
      %5633 = vperm.xlu0 %5632, %v5554
      %v5634 = vpop.permute.xlu0 %5633
      %5637 = vset.pattern.permute.xlu0 0
      %5638 = vperm.xlu0 %5637, %v5555
      %v5639 = vpop.permute.xlu0 %5638
      %5642 = vset.pattern.permute.xlu0 0
      %5643 = vperm.xlu0 %5642, %v5556
      %v5644 = vpop.permute.xlu0 %5643
      %5647 = vset.pattern.permute.xlu0 0
      %5648 = vperm.xlu0 %5647, %v5557
      %v5649 = vpop.permute.xlu0 %5648
      %5652 = vset.pattern.permute.xlu0 0
      %5653 = vperm.xlu0 %5652, %v5558
      %v5654 = vpop.permute.xlu0 %5653
      %5657 = vset.pattern.permute.xlu0 0
      %5658 = vperm.xlu0 %5657, %v5559
      %v5659 = vpop.permute.xlu0 %5658
      %5662 = vset.pattern.permute.xlu0 0
      %5663 = vperm.xlu0 %5662, %v5560
      %v5664 = vpop.permute.xlu0 %5663
      %v5666 = vadd.f32 %v5519, %v5564
      %v5667 = vadd.f32 %v5520, %v5569
      %v5668 = vadd.f32 %v5521, %v5574
      %v5669 = vadd.f32 %v5522, %v5579
      %v5670 = vadd.f32 %v5523, %v5584
      %v5671 = vadd.f32 %v5524, %v5589
      %v5672 = vadd.f32 %v5525, %v5594
      %v5673 = vadd.f32 %v5526, %v5599
      %v5674 = vadd.f32 %v5527, %v5604
      %v5675 = vadd.f32 %v5528, %v5609
      %v5676 = vadd.f32 %v5529, %v5614
      %v5677 = vadd.f32 %v5530, %v5619
      %v5678 = vadd.f32 %v5531, %v5624
      %v5679 = vadd.f32 %v5532, %v5629
      %v5680 = vadd.f32 %v5533, %v5634
      %v5681 = vadd.f32 %v5534, %v5639
      %v5682 = vadd.f32 %v5535, %v5644
      %v5683 = vadd.f32 %v5536, %v5649
      %v5684 = vadd.f32 %v5537, %v5654
      %v5685 = vadd.f32 %v5538, %v5659
      %v5686 = vadd.f32 %v5539, %v5664
      %vm5687 = vcmask 523264
      %v5688 = vsel %vm5687, %v5666, -inf
      %v5689 = vsel %vm5687, %v5667, -inf
      %v5690 = vsel %vm5687, %v5668, -inf
      %v5691 = vsel %vm5687, %v5669, -inf
      %v5692 = vsel %vm5687, %v5670, -inf
      %v5693 = vmax.f32 %v5688, %v5692
      %v5694 = vsel %vm5687, %v5671, -inf
      %v5695 = vmax.f32 %v5689, %v5694
      %v5696 = vsel %vm5687, %v5672, -inf
      %v5697 = vmax.f32 %v5690, %v5696
      %v5698 = vsel %vm5687, %v5673, -inf
      %v5699 = vmax.f32 %v5691, %v5698
      %v5700 = vsel %vm5687, %v5674, -inf
      %v5701 = vmax.f32 %v5693, %v5700
      %v5702 = vsel %vm5687, %v5675, -inf
      %v5703 = vmax.f32 %v5695, %v5702
      %v5704 = vsel %vm5687, %v5676, -inf
      %v5705 = vmax.f32 %v5697, %v5704
      %v5706 = vsel %vm5687, %v5677, -inf
      %v5707 = vmax.f32 %v5699, %v5706
      %v5708 = vsel %vm5687, %v5678, -inf
      %v5709 = vmax.f32 %v5701, %v5708
      %v5710 = vsel %vm5687, %v5679, -inf
      %v5711 = vmax.f32 %v5703, %v5710
      %v5712 = vsel %vm5687, %v5680, -inf
      %v5713 = vmax.f32 %v5705, %v5712
      %v5714 = vsel %vm5687, %v5681, -inf
      %v5715 = vmax.f32 %v5707, %v5714
      %v5716 = vsel %vm5687, %v5682, -inf
      %v5717 = vmax.f32 %v5709, %v5716
      %v5718 = vsel %vm5687, %v5683, -inf
      %v5719 = vmax.f32 %v5711, %v5718
      %v5720 = vsel %vm5687, %v5684, -inf
      %v5721 = vmax.f32 %v5713, %v5720
      %v5722 = vsel %vm5687, %v5685, -inf
      %v5723 = vmax.f32 %v5715, %v5722
      %vm5724 = vcmask 516096
      %v5725 = vsel %vm5724, %v5686, -inf
      %v5726 = vmax.f32 %v5717, %v5725
      %v5727 = vmax.f32 %v5726, %v5719
      %v5728 = vmax.f32 %v5721, %v5723
      %v5729 = vmax.f32 %v5727, %v5728
      %v5730 = vrot.slane %v5729, 4
      %v5731 = vmax.f32 %v5729, %v5730
      %v5732 = vrot.slane %v5731, 2
      %v5733 = vmax.f32 %v5731, %v5732
      %v5734 = vrot.slane %v5733, 1
      %v5735 = vmax.f32 %v5733, %v5734
      %v5736 = vld [vmem:[%s6] sm:$0xff]
      %v5737 = vld [vmem:[%s6 + $0x8] sm:$0xff]
      %v5738 = vld [vmem:[%s6 + $0x10] sm:$0xff]
      %v5739 = vld [vmem:[%s6 + $0x18] sm:$0xff]
      %v5740 = vld [vmem:[%s6 + $0x20] sm:$0xff]
      %v5741 = vld [vmem:[%s6 + $0x28] sm:$0xff]
      %v5742 = vld [vmem:[%s6 + $0x30] sm:$0xff]
      %v5743 = vld [vmem:[%s6 + $0x38] sm:$0xff]
      %v5744 = vld [vmem:[%s7] sm:$0x1]
      %v5746 = vsel %vm5687, %v5735, 0
      %5748 = vmatpush.msra.mxu0 0.0
      %5749 = vmatpush.msra.mxu0 0.0
      %5750 = vmatpush.msra.mxu0 0.0
      %5751 = vmatpush.msra.mxu0 0.0
      %5752 = vmatpush.msra.mxu0 0.0
      %5753 = vmatpush.msra.mxu0 0.0
      %5754 = vmatpush.msra.mxu0 0.0
      %5755 = vmatpush.msra.mxu0 0.0
      %5756 = vmatpush.msra.mxu0 %v5743
      %5757 = vmatpush.msra.mxu0 %v5742
      %5758 = vmatpush.msra.mxu0 %v5741
      %5759 = vmatpush.msra.mxu0 %v5740
      %5760 = vmatpush.msra.mxu0 %v5739
      %5761 = vmatpush.msra.mxu0 %v5738
      %5762 = vmatpush.msra.mxu0 %v5737
      %5763 = vmatpush.msra.mxu0 %v5736
      %5764 = vmatmul.f32.gmra.mxu0 %v5746
      %v5765 = vpop.f32.mrf.mxu0
      %v5766 = vadd.f32 %v5744, %v5765
      %5767 = vdwg.mxu0
      %v5768 = vmax.f32 %v5766, 0.0
      %v5769 = vld [vmem:[%s8] sm:$0x1]
      %v5770 = vmul.f32 %v5768, %v5769
      %vm5771 = vcmask 253952
      %v5772 = vsel %vm5771, %v5770, 0.0
      %5773 = vadd.xlane.f32.xlu0 %v5772
      %v5774 = vpop.xlane.xlu0 %5773
      %v5775 = vld [vmem:[#allocation3] sm:$0x1]
      %v5776 = vadd.f32 %v5774, %v5775
      %v5777 = vsub.f32 0.0, %v5776
      %v5778 = vmul.f32 %v5777, 1.442695
      %v5779 = vpow.pop %v5778
      %v5780 = vadd.f32 %v5779, 1.0
      %v5781 = vrcp.pop %v5780
      %v5782 = vmul.f32 %v5780, %v5781
      %v5783 = vsub.f32 1.0, %v5782
      %v5784 = vmul.f32 %v5781, %v5783
      %v5785 = vadd.f32 %v5781, %v5784
      %vm5786 = vweird.f32 %v5780
      %vm5787 = vweird.f32 %v5781
      %vm5788 = vmor %vm5786, %vm5787
      %v5789 = vsel %vm5788, %v5781, %v5785
      %v5790 = vand.u32 2147483647, %v5780
      %vm5791 = vcmp.eq.f32.partialorder %v5790, 8.507059e+37
      %v5792 = vand.u32 %v5780, 2147483648
      %v5793 = vor.u32 1.1754944e-38, %v5792
      %v5794 = vsel %vm5791, %v5793, %v5789
      %v5795 = vmul.f32 1.0, %v5794
      %s5796 = scalar_lea.vmem %s10, %s23
      %vm5797 = vcmask 0
      %5798 = vst.msk [vmem:[%s5796] sm:$0x1] %vm5797, %v5795
      // Predicated region
      $region61: #{net_forward.1} parent=59 // pred_check
        %p5799 = pneg %p251
      $region62: #{net_forward.1} parent=59 // pred_check_branch
        %5801 = sbr.rel (%p5799) target = $region64
      $region63: #{net_forward.1} parent=59 // pred_region
        _
      $region64: #{net_forward.1} parent=59 // pred_fallthru
        _
      // Predicated region
      $region65: #{net_forward.1} parent=59 // pred_check
        %p5802 = pneg %p251
      $region66: #{net_forward.1} parent=59 // pred_check_branch
        %5804 = sbr.rel (%p5802) target = $region68
      $region67: #{net_forward.1} parent=59 // pred_region
        _
      $region68: #{net_forward.1} parent=59 // pred_fallthru
        _
    $region60: #{net_forward.1} parent=5 // pred_fallthru
      _
    %p5805 = scmp.le.s32.totalorder 2, %s18
    // Predicated region
    $region69: #{net_forward.1} parent=5 // pred_check
      %p5806 = pneg %p5805
    $region70: #{net_forward.1} parent=5 // pred_check_branch
      %5808 = sbr.rel (%p5806) target = $region72
    $region71: #{net_forward.1} parent=5 // pred_region
      %s5809 = ssub.s32 %s18, 2
    $region72: #{net_forward.1} parent=5 // pred_fallthru
      _
  $region6: #{net_forward.1} parent=0 // loop_footer
    %s22 = sadd.s32 1, %s18
  $region7: #{net_forward.1} parent=0 // loop_footer_branch
    %17 = sbr.rel target = $region3
  $region8: #{net_forward.1} parent=0 // loop_exit
    _

</llo_original>
